<compile_context>
chip_gen: v7x
topology: tpu7x:2x2x1
jax: 0.10.0
libtpu: 0.0.40
codegen_flags: <defaults>
</compile_context>

<pallas_src>
import math
import jax
import jax.numpy as jnp
from jax.experimental import pallas as pl
from jax.experimental.pallas import tpu as pltpu

# -------------------- tiny-BERT configuration (small shapes) --------------------
VOCAB      = 128
MAX_POS    = 32
BATCH      = 2
SEQ        = 8
HIDDEN     = 32
NUM_HEADS  = 4
HEAD_DIM   = HIDDEN // NUM_HEADS
INTER      = 64
NUM_LAYERS = 2
LN_EPS     = 1e-12

# packed-array row layout (static, shared by wrapper and kernel)
_R_ELNG, _R_ELNB = 0, 1          # embedding LayerNorm gamma / beta
_R_POS           = 2             # rows 2 .. 2+SEQ-1 : pos_emb[:S] + type_emb[0]
_R_PB            = 2 + SEQ       # pooler bias
_R_DB            = 3 + SEQ       # dense (classifier) bias, col 0


# -------------------- in-kernel helpers --------------------
def _layernorm(x, gamma, beta):
    mu = jnp.mean(x, axis=-1, keepdims=True)
    var = jnp.mean((x - mu) ** 2, axis=-1, keepdims=True)
    return (x - mu) * jax.lax.rsqrt(var + LN_EPS) * gamma + beta


def _gelu(x):
    # tanh-approximate GELU
    return 0.5 * x * (1.0 + jnp.tanh(0.7978845608028654 * (x + 0.044715 * x * x * x)))


def _split_heads(t):
    # [B*S, H] -> [B*NH, S, HD]; static lane slices + leading-dim stack/reshape only.
    heads = [t[:, n * HEAD_DIM:(n + 1) * HEAD_DIM].reshape(BATCH, SEQ, HEAD_DIM)
             for n in range(NUM_HEADS)]
    th = jnp.stack(heads, axis=1)                     # [B, NH, S, HD]
    return th.reshape(BATCH * NUM_HEADS, SEQ, HEAD_DIM)


def _merge_heads(t):
    # [B*NH, S, HD] -> [B*S, H]; lane-axis concat of the NH head slices.
    t4 = t.reshape(BATCH, NUM_HEADS, SEQ, HEAD_DIM)
    merged = jnp.concatenate([t4[:, n] for n in range(NUM_HEADS)], axis=-1)  # [B, S, H]
    return merged.reshape(BATCH * SEQ, HIDDEN)


# -------------------- fused forward kernel --------------------
def fused_bert_kernel(ids_ref, bias_ref, wemb_ref, wbig_ref, w2_ref,
                      lsmall_ref, esmall_ref, o_ref):
    f32, bf16 = jnp.float32, jnp.bfloat16
    B, S, H, NH, HD = BATCH, SEQ, HIDDEN, NUM_HEADS, HEAD_DIM
    G, BS = B * NH, B * S

    # ---- embedding lookup as one-hot matmul (contraction dim = VOCAB = 128) ----
    iota = jax.lax.broadcasted_iota(jnp.int32, (BS, VOCAB), 1)
    one_hot = (iota == ids_ref[...]).astype(bf16)                        # [BS, VOCAB]
    emb = jnp.dot(one_hot, wemb_ref[...], preferred_element_type=f32)    # [BS, H]
    emb = emb + jnp.tile(esmall_ref[_R_POS:_R_POS + S, :], (B, 1))       # + pos + type
    x = _layernorm(emb,
                   esmall_ref[_R_ELNG:_R_ELNG + 1, :],
                   esmall_ref[_R_ELNB:_R_ELNB + 1, :])                   # [BS, H] f32

    # ---- additive attention bias, replicated per (batch, head): [G, 1, S] ----
    neg_g = jnp.broadcast_to(bias_ref[...][:, None, None, :], (B, NH, 1, S)).reshape(G, 1, S)

    scale = 1.0 / math.sqrt(HD)

    # ---- static loop over encoder layers (all weights VMEM-resident) ----
    for l in range(NUM_LAYERS):
        wqkv = wbig_ref[l, :, 0:3 * H]                      # [H, 3H]   bf16
        wo   = wbig_ref[l, :, 3 * H:4 * H]                  # [H, H]    bf16
        w1   = wbig_ref[l, :, 4 * H:4 * H + INTER]          # [H, I]    bf16
        w2   = w2_ref[l]                                    # [I, H]    bf16

        bqkv = lsmall_ref[l, 0:1, 0:3 * H]                  # [1, 3H]   f32
        bo   = lsmall_ref[l, 1:2, 0:H]
        ln1g = lsmall_ref[l, 2:3, 0:H]
        ln1b = lsmall_ref[l, 3:4, 0:H]
        b1   = lsmall_ref[l, 4:5, 0:INTER]
        b2   = lsmall_ref[l, 5:6, 0:H]
        ln2g = lsmall_ref[l, 6:7, 0:H]
        ln2b = lsmall_ref[l, 7:8, 0:H]

        # fused QKV projection: ONE [BS,H] @ [H,3H] matmul (96-lane output)
        qkv = jnp.dot(x.astype(bf16), wqkv, preferred_element_type=f32) + bqkv   # [BS, 3H]

        q = _split_heads(qkv[:, 0:H])                       # [G, S, HD]
        k = _split_heads(qkv[:, H:2 * H])
        v = _split_heads(qkv[:, 2 * H:3 * H])

        # scaled dot-product attention (softmax math in f32)
        s = jnp.einsum('gqd,gkd->gqk', q.astype(bf16), k.astype(bf16),
                       preferred_element_type=f32) * scale + neg_g      # [G, S, S]
        s = s - jnp.max(s, axis=-1, keepdims=True)
        p = jnp.exp(s)
        p = p * pl.reciprocal(jnp.sum(p, axis=-1, keepdims=True), approx=True)
        ctx = jnp.einsum('gqk,gkd->gqd', p.astype(bf16), v.astype(bf16),
                         preferred_element_type=f32)                    # [G, S, HD]

        # merge heads (lane concat) + single output projection (== concat @ Wo)
        attn = jnp.dot(_merge_heads(ctx).astype(bf16), wo,
                       preferred_element_type=f32) + bo                 # [BS, H]
        h1 = _layernorm(x + attn, ln1g, ln1b)

        # feed-forward (single matmuls on the flat [BS, H] activation)
        ff = _gelu(jnp.dot(h1.astype(bf16), w1, preferred_element_type=f32) + b1)
        ff = jnp.dot(ff.astype(bf16), w2, preferred_element_type=f32) + b2
        x = _layernorm(h1 + ff, ln2g, ln2b)

    # ---- pooler (CLS token) + Dropout(identity at inference) + Linear(H, 1) ----
    wp = wbig_ref[NUM_LAYERS, :, 0:H]                       # [H, H] bf16
    wd = wbig_ref[NUM_LAYERS, :, H:H + 1]                   # [H, 1] bf16
    pb = esmall_ref[_R_PB:_R_PB + 1, :]                     # [1, H] f32
    db = esmall_ref[_R_DB:_R_DB + 1, 0:1]                   # [1, 1] f32

    cls = x.reshape(B, S, H)[:, 0, :]                                         # [B, H]
    pooled = jnp.tanh(jnp.dot(cls.astype(bf16), wp, preferred_element_type=f32) + pb)
    o_ref[...] = jnp.dot(pooled.astype(bf16), wd, preferred_element_type=f32) + db


# -------------------- wrapper: pack parameters (plain JAX, wrapper-side) --------
def _pack_params(params):
    f32, bf16 = jnp.float32, jnp.bfloat16
    H, I = HIDDEN, INTER

    wemb = params["word_emb"].astype(bf16)                                  # [VOCAB, H]

    # big bf16 weight blob: per layer [Wqkv | Wo | W1]; extra slab [pooler_w | dense_w]
    slabs = []
    for lp in params["layers"]:
        wqkv = jnp.concatenate([lp["wq"], lp["wk"], lp["wv"]], axis=1)      # [H, 3H]
        slabs.append(jnp.concatenate([wqkv, lp["wo"], lp["w1"]], axis=1))   # [H, 4H+I]
    head = jnp.zeros((H, 4 * H + I), f32)
    head = head.at[:, 0:H].set(params["pooler_w"]).at[:, H:H + 1].set(params["dense_w"])
    slabs.append(head)
    wbig = jnp.stack(slabs, axis=0).astype(bf16)                            # [L+1, H, 4H+I]

    w2 = jnp.stack([lp["w2"] for lp in params["layers"]], axis=0).astype(bf16)  # [L, I, H]

    # per-layer small f32 params (rows: bqkv, bo, ln1g, ln1b, b1, b2, ln2g, ln2b)
    def row(v):
        r = jnp.zeros((1, 3 * H), f32)
        return r.at[:, :v.shape[-1]].set(v)

    lsmall = jnp.stack([
        jnp.concatenate([
            row(jnp.concatenate([lp["bq"], lp["bk"], lp["bv"]], axis=1)),
            row(lp["bo"]), row(lp["ln1_g"]), row(lp["ln1_b"]),
            row(lp["b1"]), row(lp["b2"]), row(lp["ln2_g"]), row(lp["ln2_b"]),
        ], axis=0)
        for lp in params["layers"]
    ], axis=0)                                                              # [L, 8, 3H]

    # embedding / head small f32 params
    pos_type = params["pos_emb"][:SEQ] + params["type_emb"][0][None, :]     # [S, H]
    dense_b_row = jnp.zeros((1, H), f32).at[:, 0:1].set(params["dense_b"])
    esmall = jnp.concatenate([
        params["emb_ln_g"], params["emb_ln_b"],    # rows 0, 1
        pos_type,                                  # rows 2 .. 2+S-1
        params["pooler_b"], dense_b_row,           # rows _R_PB, _R_DB
    ], axis=0)                                                              # [4+S, H]

    return [wemb, wbig, w2, lsmall, esmall]


def bert_ai_search_forward(ids, mask, params):
    B, S = ids.shape
    ids_col = ids.reshape(B * S, 1).astype(jnp.int32)
    attn_bias = (1.0 - mask.astype(jnp.float32)) * (-1e9)                   # [B, S]

    inputs = [ids_col, attn_bias] + _pack_params(params)

    vmem = pltpu.MemorySpace.VMEM
    return pl.pallas_call(
        fused_bert_kernel,
        out_shape=jax.ShapeDtypeStruct((B, 1), jnp.float32),
        in_specs=[pl.BlockSpec(memory_space=vmem) for _ in inputs],
        out_specs=pl.BlockSpec(memory_space=vmem),
    )(*inputs)


# -------------------- parameter construction (deterministic, synthetic) ----------
def make_params(key):
    ks = iter(jax.random.split(key, 16 + NUM_LAYERS * 16))

    def w(shape, scale=0.02):
        return (scale * jax.random.normal(next(ks), shape)).astype(jnp.float32)

    params = {
        "word_emb": w((VOCAB, HIDDEN)),
        "pos_emb":  w((MAX_POS, HIDDEN)),
        "type_emb": w((2, HIDDEN)),
        "emb_ln_g": jnp.ones((1, HIDDEN), jnp.float32),
        "emb_ln_b": jnp.zeros((1, HIDDEN), jnp.float32),
        "pooler_w": w((HIDDEN, HIDDEN)),
        "pooler_b": jnp.zeros((1, HIDDEN), jnp.float32),
        "dense_w":  w((HIDDEN, 1)),          # nn.Linear(hidden_size, 1)
        "dense_b":  jnp.zeros((1, 1), jnp.float32),
        "layers": [],
    }
    for _ in range(NUM_LAYERS):
        params["layers"].append({
            "wq": w((HIDDEN, HIDDEN)), "bq": jnp.zeros((1, HIDDEN), jnp.float32),
            "wk": w((HIDDEN, HIDDEN)), "bk": jnp.zeros((1, HIDDEN), jnp.float32),
            "wv": w((HIDDEN, HIDDEN)), "bv": jnp.zeros((1, HIDDEN), jnp.float32),
            "wo": w((HIDDEN, HIDDEN)), "bo": jnp.zeros((1, HIDDEN), jnp.float32),
            "ln1_g": jnp.ones((1, HIDDEN), jnp.float32),
            "ln1_b": jnp.zeros((1, HIDDEN), jnp.float32),
            "w1": w((HIDDEN, INTER)), "b1": jnp.zeros((1, INTER), jnp.float32),
            "w2": w((INTER, HIDDEN)), "b2": jnp.zeros((1, HIDDEN), jnp.float32),
            "ln2_g": jnp.ones((1, HIDDEN), jnp.float32),
            "ln2_b": jnp.zeros((1, HIDDEN), jnp.float32),
        })
    return params


if __name__ == "__main__":
    key = jax.random.PRNGKey(0)
    pkey, ikey = jax.random.split(key)
    params = make_params(pkey)

    ids = jax.random.randint(ikey, (BATCH, SEQ), 0, VOCAB, dtype=jnp.int32)
    mask = jnp.ones((BATCH, SEQ), jnp.int32).at[:, SEQ - 2:].set(0)   # pad last 2 tokens

    out = bert_ai_search_forward(ids, mask, params)
    out = jax.block_until_ready(out)
    assert out.shape == (BATCH, 1) and out.dtype == jnp.float32
    assert bool(jnp.all(jnp.isfinite(out)))
    print("KERNEL_OK")
</pallas_src>

<mosaic_0001>
module attributes {stable_mosaic.version = 11 : i64} {
  func.func @fused_bert_kernel(%arg0: memref<16x1xi32, #tpu.memory_space<vmem>>, %arg1: memref<2x8xf32, #tpu.memory_space<vmem>>, %arg2: memref<128x32xbf16, #tpu.memory_space<vmem>>, %arg3: memref<3x32x192xbf16, #tpu.memory_space<vmem>>, %arg4: memref<2x64x32xbf16, #tpu.memory_space<vmem>>, %arg5: memref<2x8x96xf32, #tpu.memory_space<vmem>>, %arg6: memref<12x32xf32, #tpu.memory_space<vmem>>, %arg7: memref<2x1xf32, #tpu.memory_space<vmem>>) attributes {dimension_semantics = [], scalar_prefetch = 0 : i64, scratch_operands = 0 : i64, tpu.core_type = #tpu.core_type<tc>} {
    %0 = tpu.iota {dimensions = array<i32: 1>} : vector<16x128xi32>
    %c0 = arith.constant 0 : index
    %c0_0 = arith.constant 0 : index
    %1 = vector.load %arg0[%c0, %c0_0] : memref<16x1xi32, #tpu.memory_space<vmem>>, vector<16x1xi32>
    %2 = vector.broadcast %1 : vector<16x1xi32> to vector<16x128xi32>
    %3 = arith.cmpi eq, %0, %2 : vector<16x128xi32>
    %4 = arith.extui %3 : vector<16x128xi1> to vector<16x128xi32>
    %5 = arith.sitofp %4 : vector<16x128xi32> to vector<16x128xf32>
    %6 = arith.truncf %5 : vector<16x128xf32> to vector<16x128xbf16>
    %c0_1 = arith.constant 0 : index
    %c0_2 = arith.constant 0 : index
    %7 = vector.load %arg2[%c0_1, %c0_2] : memref<128x32xbf16, #tpu.memory_space<vmem>>, vector<128x32xbf16>
    %cst = arith.constant dense<0.000000e+00> : vector<16x32xf32>
    %8 = tpu.matmul %6, %7, %cst {dimension_numbers = #tpu.dot_dimension_numbers<[1], [0], [0], [1], [0, 0, 1, 1], [], []>} : vector<16x128xbf16>, vector<128x32xbf16>, vector<16x32xf32> -> vector<16x32xf32>
    %c2 = arith.constant 2 : index
    %c0_3 = arith.constant 0 : index
    %9 = vector.load %arg6[%c2, %c0_3] : memref<12x32xf32, #tpu.memory_space<vmem>>, vector<8x32xf32>
    %10 = tpu.concatenate %9, %9 in 0 : vector<8x32xf32>, vector<8x32xf32> -> vector<16x32xf32>
    %11 = arith.addf %8, %10 : vector<16x32xf32>
    %c0_4 = arith.constant 0 : index
    %c0_5 = arith.constant 0 : index
    %12 = vector.load %arg6[%c0_4, %c0_5] : memref<12x32xf32, #tpu.memory_space<vmem>>, vector<1x32xf32>
    %c1 = arith.constant 1 : index
    %c0_6 = arith.constant 0 : index
    %13 = vector.load %arg6[%c1, %c0_6] : memref<12x32xf32, #tpu.memory_space<vmem>>, vector<1x32xf32>
    %cst_7 = arith.constant dense<0.000000e+00> : vector<16xf32>
    %14 = vector.multi_reduction <add>, %11, %cst_7 [1] : vector<16x32xf32> to vector<16xf32>
    %15 = vector.shape_cast %14 : vector<16xf32> to vector<16x1xf32>
    %cst_8 = arith.constant 3.200000e+01 : f32
    %16 = vector.broadcast %cst_8 : f32 to vector<16x1xf32>
    %17 = arith.divf %15, %16 : vector<16x1xf32>
    %18 = vector.broadcast %17 : vector<16x1xf32> to vector<16x32xf32>
    %19 = arith.subf %11, %18 : vector<16x32xf32>
    %20 = arith.mulf %19, %19 : vector<16x32xf32>
    %cst_9 = arith.constant dense<0.000000e+00> : vector<16xf32>
    %21 = vector.multi_reduction <add>, %20, %cst_9 [1] : vector<16x32xf32> to vector<16xf32>
    %22 = vector.shape_cast %21 : vector<16xf32> to vector<16x1xf32>
    %cst_10 = arith.constant 3.200000e+01 : f32
    %23 = vector.broadcast %cst_10 : f32 to vector<16x1xf32>
    %24 = arith.divf %22, %23 : vector<16x1xf32>
    %25 = vector.broadcast %17 : vector<16x1xf32> to vector<16x32xf32>
    %26 = arith.subf %11, %25 : vector<16x32xf32>
    %cst_11 = arith.constant 9.99999996E-13 : f32
    %27 = vector.broadcast %cst_11 : f32 to vector<16x1xf32>
    %28 = arith.addf %24, %27 : vector<16x1xf32>
    %29 = math.rsqrt %28 : vector<16x1xf32>
    %30 = vector.broadcast %29 : vector<16x1xf32> to vector<16x32xf32>
    %31 = arith.mulf %26, %30 : vector<16x32xf32>
    %32 = vector.broadcast %12 : vector<1x32xf32> to vector<16x32xf32>
    %33 = arith.mulf %31, %32 : vector<16x32xf32>
    %34 = vector.broadcast %13 : vector<1x32xf32> to vector<16x32xf32>
    %35 = arith.addf %33, %34 : vector<16x32xf32>
    %c0_12 = arith.constant 0 : index
    %c0_13 = arith.constant 0 : index
    %36 = vector.load %arg1[%c0_12, %c0_13] : memref<2x8xf32, #tpu.memory_space<vmem>>, vector<2x8xf32>
    %37 = vector.shape_cast %36 : vector<2x8xf32> to vector<2x1x1x8xf32>
    %38 = vector.shape_cast %37 : vector<2x1x1x8xf32> to vector<2x1x1x8xf32>
    %39 = vector.broadcast %38 : vector<2x1x1x8xf32> to vector<2x4x1x8xf32>
    %40 = vector.shape_cast %39 : vector<2x4x1x8xf32> to vector<8x1x8xf32>
    %c0_14 = arith.constant 0 : index
    %c0_15 = arith.constant 0 : index
    %c0_16 = arith.constant 0 : index
    %41 = vector.load %arg3[%c0_14, %c0_15, %c0_16] : memref<3x32x192xbf16, #tpu.memory_space<vmem>>, vector<1x32x96xbf16>
    %42 = vector.shape_cast %41 : vector<1x32x96xbf16> to vector<32x96xbf16>
    %c0_17 = arith.constant 0 : index
    %c0_18 = arith.constant 0 : index
    %c96 = arith.constant 96 : index
    %43 = vector.load %arg3[%c0_17, %c0_18, %c96] : memref<3x32x192xbf16, #tpu.memory_space<vmem>>, vector<1x32x32xbf16>
    %44 = vector.shape_cast %43 : vector<1x32x32xbf16> to vector<32x32xbf16>
    %c0_19 = arith.constant 0 : index
    %c0_20 = arith.constant 0 : index
    %c128 = arith.constant 128 : index
    %45 = vector.load %arg3[%c0_19, %c0_20, %c128] : memref<3x32x192xbf16, #tpu.memory_space<vmem>>, vector<1x32x64xbf16>
    %46 = vector.shape_cast %45 : vector<1x32x64xbf16> to vector<32x64xbf16>
    %c0_21 = arith.constant 0 : index
    %c0_22 = arith.constant 0 : index
    %c0_23 = arith.constant 0 : index
    %47 = vector.load %arg4[%c0_21, %c0_22, %c0_23] : memref<2x64x32xbf16, #tpu.memory_space<vmem>>, vector<1x64x32xbf16>
    %48 = vector.shape_cast %47 : vector<1x64x32xbf16> to vector<64x32xbf16>
    %c0_24 = arith.constant 0 : index
    %c0_25 = arith.constant 0 : index
    %c0_26 = arith.constant 0 : index
    %49 = vector.load %arg5[%c0_24, %c0_25, %c0_26] : memref<2x8x96xf32, #tpu.memory_space<vmem>>, vector<1x1x96xf32>
    %50 = vector.shape_cast %49 : vector<1x1x96xf32> to vector<1x96xf32>
    %c0_27 = arith.constant 0 : index
    %c1_28 = arith.constant 1 : index
    %c0_29 = arith.constant 0 : index
    %51 = vector.load %arg5[%c0_27, %c1_28, %c0_29] : memref<2x8x96xf32, #tpu.memory_space<vmem>>, vector<1x1x32xf32>
    %52 = vector.shape_cast %51 : vector<1x1x32xf32> to vector<1x32xf32>
    %c0_30 = arith.constant 0 : index
    %c2_31 = arith.constant 2 : index
    %c0_32 = arith.constant 0 : index
    %53 = vector.load %arg5[%c0_30, %c2_31, %c0_32] : memref<2x8x96xf32, #tpu.memory_space<vmem>>, vector<1x1x32xf32>
    %54 = vector.shape_cast %53 : vector<1x1x32xf32> to vector<1x32xf32>
    %c0_33 = arith.constant 0 : index
    %c3 = arith.constant 3 : index
    %c0_34 = arith.constant 0 : index
    %55 = vector.load %arg5[%c0_33, %c3, %c0_34] : memref<2x8x96xf32, #tpu.memory_space<vmem>>, vector<1x1x32xf32>
    %56 = vector.shape_cast %55 : vector<1x1x32xf32> to vector<1x32xf32>
    %c0_35 = arith.constant 0 : index
    %c4 = arith.constant 4 : index
    %c0_36 = arith.constant 0 : index
    %57 = vector.load %arg5[%c0_35, %c4, %c0_36] : memref<2x8x96xf32, #tpu.memory_space<vmem>>, vector<1x1x64xf32>
    %58 = vector.shape_cast %57 : vector<1x1x64xf32> to vector<1x64xf32>
    %c0_37 = arith.constant 0 : index
    %c5 = arith.constant 5 : index
    %c0_38 = arith.constant 0 : index
    %59 = vector.load %arg5[%c0_37, %c5, %c0_38] : memref<2x8x96xf32, #tpu.memory_space<vmem>>, vector<1x1x32xf32>
    %60 = vector.shape_cast %59 : vector<1x1x32xf32> to vector<1x32xf32>
    %c0_39 = arith.constant 0 : index
    %c6 = arith.constant 6 : index
    %c0_40 = arith.constant 0 : index
    %61 = vector.load %arg5[%c0_39, %c6, %c0_40] : memref<2x8x96xf32, #tpu.memory_space<vmem>>, vector<1x1x32xf32>
    %62 = vector.shape_cast %61 : vector<1x1x32xf32> to vector<1x32xf32>
    %c0_41 = arith.constant 0 : index
    %c7 = arith.constant 7 : index
    %c0_42 = arith.constant 0 : index
    %63 = vector.load %arg5[%c0_41, %c7, %c0_42] : memref<2x8x96xf32, #tpu.memory_space<vmem>>, vector<1x1x32xf32>
    %64 = vector.shape_cast %63 : vector<1x1x32xf32> to vector<1x32xf32>
    %65 = arith.truncf %35 : vector<16x32xf32> to vector<16x32xbf16>
    %cst_43 = arith.constant dense<0.000000e+00> : vector<16x96xf32>
    %66 = tpu.matmul %65, %42, %cst_43 {dimension_numbers = #tpu.dot_dimension_numbers<[1], [0], [0], [1], [0, 0, 1, 1], [], []>} : vector<16x32xbf16>, vector<32x96xbf16>, vector<16x96xf32> -> vector<16x96xf32>
    %67 = vector.broadcast %50 : vector<1x96xf32> to vector<16x96xf32>
    %68 = arith.addf %66, %67 : vector<16x96xf32>
    %69 = vector.extract_strided_slice %68 {offsets = [0, 0], sizes = [16, 32], strides = [1, 1]} : vector<16x96xf32> to vector<16x32xf32>
    %70 = vector.extract_strided_slice %69 {offsets = [0, 0], sizes = [16, 8], strides = [1, 1]} : vector<16x32xf32> to vector<16x8xf32>
    %71 = vector.shape_cast %70 : vector<16x8xf32> to vector<2x8x8xf32>
    %72 = vector.extract_strided_slice %69 {offsets = [0, 8], sizes = [16, 8], strides = [1, 1]} : vector<16x32xf32> to vector<16x8xf32>
    %73 = vector.shape_cast %72 : vector<16x8xf32> to vector<2x8x8xf32>
    %74 = vector.extract_strided_slice %69 {offsets = [0, 16], sizes = [16, 8], strides = [1, 1]} : vector<16x32xf32> to vector<16x8xf32>
    %75 = vector.shape_cast %74 : vector<16x8xf32> to vector<2x8x8xf32>
    %76 = vector.extract_strided_slice %69 {offsets = [0, 24], sizes = [16, 8], strides = [1, 1]} : vector<16x32xf32> to vector<16x8xf32>
    %77 = vector.shape_cast %76 : vector<16x8xf32> to vector<2x8x8xf32>
    %78 = vector.shape_cast %71 : vector<2x8x8xf32> to vector<2x1x8x8xf32>
    %79 = vector.shape_cast %73 : vector<2x8x8xf32> to vector<2x1x8x8xf32>
    %80 = vector.shape_cast %75 : vector<2x8x8xf32> to vector<2x1x8x8xf32>
    %81 = vector.shape_cast %77 : vector<2x8x8xf32> to vector<2x1x8x8xf32>
    %82 = tpu.concatenate %78, %79, %80, %81 in 1 : vector<2x1x8x8xf32>, vector<2x1x8x8xf32>, vector<2x1x8x8xf32>, vector<2x1x8x8xf32> -> vector<2x4x8x8xf32>
    %83 = vector.shape_cast %82 : vector<2x4x8x8xf32> to vector<8x8x8xf32>
    %84 = vector.extract_strided_slice %68 {offsets = [0, 32], sizes = [16, 32], strides = [1, 1]} : vector<16x96xf32> to vector<16x32xf32>
    %85 = vector.extract_strided_slice %84 {offsets = [0, 0], sizes = [16, 8], strides = [1, 1]} : vector<16x32xf32> to vector<16x8xf32>
    %86 = vector.shape_cast %85 : vector<16x8xf32> to vector<2x8x8xf32>
    %87 = vector.extract_strided_slice %84 {offsets = [0, 8], sizes = [16, 8], strides = [1, 1]} : vector<16x32xf32> to vector<16x8xf32>
    %88 = vector.shape_cast %87 : vector<16x8xf32> to vector<2x8x8xf32>
    %89 = vector.extract_strided_slice %84 {offsets = [0, 16], sizes = [16, 8], strides = [1, 1]} : vector<16x32xf32> to vector<16x8xf32>
    %90 = vector.shape_cast %89 : vector<16x8xf32> to vector<2x8x8xf32>
    %91 = vector.extract_strided_slice %84 {offsets = [0, 24], sizes = [16, 8], strides = [1, 1]} : vector<16x32xf32> to vector<16x8xf32>
    %92 = vector.shape_cast %91 : vector<16x8xf32> to vector<2x8x8xf32>
    %93 = vector.shape_cast %86 : vector<2x8x8xf32> to vector<2x1x8x8xf32>
    %94 = vector.shape_cast %88 : vector<2x8x8xf32> to vector<2x1x8x8xf32>
    %95 = vector.shape_cast %90 : vector<2x8x8xf32> to vector<2x1x8x8xf32>
    %96 = vector.shape_cast %92 : vector<2x8x8xf32> to vector<2x1x8x8xf32>
    %97 = tpu.concatenate %93, %94, %95, %96 in 1 : vector<2x1x8x8xf32>, vector<2x1x8x8xf32>, vector<2x1x8x8xf32>, vector<2x1x8x8xf32> -> vector<2x4x8x8xf32>
    %98 = vector.shape_cast %97 : vector<2x4x8x8xf32> to vector<8x8x8xf32>
    %99 = vector.extract_strided_slice %68 {offsets = [0, 64], sizes = [16, 32], strides = [1, 1]} : vector<16x96xf32> to vector<16x32xf32>
    %100 = vector.extract_strided_slice %99 {offsets = [0, 0], sizes = [16, 8], strides = [1, 1]} : vector<16x32xf32> to vector<16x8xf32>
    %101 = vector.shape_cast %100 : vector<16x8xf32> to vector<2x8x8xf32>
    %102 = vector.extract_strided_slice %99 {offsets = [0, 8], sizes = [16, 8], strides = [1, 1]} : vector<16x32xf32> to vector<16x8xf32>
    %103 = vector.shape_cast %102 : vector<16x8xf32> to vector<2x8x8xf32>
    %104 = vector.extract_strided_slice %99 {offsets = [0, 16], sizes = [16, 8], strides = [1, 1]} : vector<16x32xf32> to vector<16x8xf32>
    %105 = vector.shape_cast %104 : vector<16x8xf32> to vector<2x8x8xf32>
    %106 = vector.extract_strided_slice %99 {offsets = [0, 24], sizes = [16, 8], strides = [1, 1]} : vector<16x32xf32> to vector<16x8xf32>
    %107 = vector.shape_cast %106 : vector<16x8xf32> to vector<2x8x8xf32>
    %108 = vector.shape_cast %101 : vector<2x8x8xf32> to vector<2x1x8x8xf32>
    %109 = vector.shape_cast %103 : vector<2x8x8xf32> to vector<2x1x8x8xf32>
    %110 = vector.shape_cast %105 : vector<2x8x8xf32> to vector<2x1x8x8xf32>
    %111 = vector.shape_cast %107 : vector<2x8x8xf32> to vector<2x1x8x8xf32>
    %112 = tpu.concatenate %108, %109, %110, %111 in 1 : vector<2x1x8x8xf32>, vector<2x1x8x8xf32>, vector<2x1x8x8xf32>, vector<2x1x8x8xf32> -> vector<2x4x8x8xf32>
    %113 = vector.shape_cast %112 : vector<2x4x8x8xf32> to vector<8x8x8xf32>
    %114 = arith.truncf %83 : vector<8x8x8xf32> to vector<8x8x8xbf16>
    %115 = arith.truncf %98 : vector<8x8x8xf32> to vector<8x8x8xbf16>
    "tpu.trace_start"() <{level = 10 : i32, message = "gqd,gkd->gqk"}> : () -> ()
    %cst_44 = arith.constant dense<0.000000e+00> : vector<8x8x8xf32>
    %116 = tpu.matmul %114, %115, %cst_44 {dimension_numbers = #tpu.dot_dimension_numbers<[2], [2], [1], [1], [0, 0, 0, 1, 1, 1], [0], [0]>} : vector<8x8x8xbf16>, vector<8x8x8xbf16>, vector<8x8x8xf32> -> vector<8x8x8xf32>
    "tpu.trace_stop"() : () -> ()
    %cst_45 = arith.constant 0.353553385 : f32
    %117 = vector.broadcast %cst_45 : f32 to vector<8x8x8xf32>
    %118 = arith.mulf %116, %117 : vector<8x8x8xf32>
    %119 = vector.broadcast %40 : vector<8x1x8xf32> to vector<8x8x8xf32>
    %120 = arith.addf %118, %119 : vector<8x8x8xf32>
    %cst_46 = arith.constant dense<0xFF800000> : vector<8x8xf32>
    %121 = vector.multi_reduction <maximumf>, %120, %cst_46 [2] : vector<8x8x8xf32> to vector<8x8xf32>
    %122 = vector.shape_cast %121 : vector<8x8xf32> to vector<8x8x1xf32>
    %123 = vector.broadcast %122 : vector<8x8x1xf32> to vector<8x8x8xf32>
    %124 = arith.subf %120, %123 : vector<8x8x8xf32>
    %125 = math.exp %124 : vector<8x8x8xf32>
    %cst_47 = arith.constant dense<0.000000e+00> : vector<8x8xf32>
    %126 = vector.multi_reduction <add>, %125, %cst_47 [2] : vector<8x8x8xf32> to vector<8x8xf32>
    %127 = vector.shape_cast %126 : vector<8x8xf32> to vector<8x8x1xf32>
    %128 = tpu.reciprocal %127 {approx = true} : vector<8x8x1xf32> -> vector<8x8x1xf32>
    %129 = vector.broadcast %128 : vector<8x8x1xf32> to vector<8x8x8xf32>
    %130 = arith.mulf %125, %129 : vector<8x8x8xf32>
    %131 = arith.truncf %130 : vector<8x8x8xf32> to vector<8x8x8xbf16>
    %132 = arith.truncf %113 : vector<8x8x8xf32> to vector<8x8x8xbf16>
    "tpu.trace_start"() <{level = 10 : i32, message = "gqk,gkd->gqd"}> : () -> ()
    %cst_48 = arith.constant dense<0.000000e+00> : vector<8x8x8xf32>
    %133 = tpu.matmul %131, %132, %cst_48 {dimension_numbers = #tpu.dot_dimension_numbers<[2], [1], [1], [2], [0, 0, 0, 1, 1, 2], [0], [0]>} : vector<8x8x8xbf16>, vector<8x8x8xbf16>, vector<8x8x8xf32> -> vector<8x8x8xf32>
    "tpu.trace_stop"() : () -> ()
    %134 = vector.shape_cast %133 : vector<8x8x8xf32> to vector<2x4x8x8xf32>
    %135 = vector.extract_strided_slice %134 {offsets = [0, 0, 0, 0], sizes = [2, 1, 8, 8], strides = [1, 1, 1, 1]} : vector<2x4x8x8xf32> to vector<2x1x8x8xf32>
    %136 = vector.shape_cast %135 : vector<2x1x8x8xf32> to vector<2x8x8xf32>
    %137 = vector.extract_strided_slice %134 {offsets = [0, 1, 0, 0], sizes = [2, 1, 8, 8], strides = [1, 1, 1, 1]} : vector<2x4x8x8xf32> to vector<2x1x8x8xf32>
    %138 = vector.shape_cast %137 : vector<2x1x8x8xf32> to vector<2x8x8xf32>
    %139 = vector.extract_strided_slice %134 {offsets = [0, 2, 0, 0], sizes = [2, 1, 8, 8], strides = [1, 1, 1, 1]} : vector<2x4x8x8xf32> to vector<2x1x8x8xf32>
    %140 = vector.shape_cast %139 : vector<2x1x8x8xf32> to vector<2x8x8xf32>
    %141 = vector.extract_strided_slice %134 {offsets = [0, 3, 0, 0], sizes = [2, 1, 8, 8], strides = [1, 1, 1, 1]} : vector<2x4x8x8xf32> to vector<2x1x8x8xf32>
    %142 = vector.shape_cast %141 : vector<2x1x8x8xf32> to vector<2x8x8xf32>
    %143 = tpu.concatenate %136, %138, %140, %142 in 2 : vector<2x8x8xf32>, vector<2x8x8xf32>, vector<2x8x8xf32>, vector<2x8x8xf32> -> vector<2x8x32xf32>
    %144 = vector.shape_cast %143 : vector<2x8x32xf32> to vector<16x32xf32>
    %145 = arith.truncf %144 : vector<16x32xf32> to vector<16x32xbf16>
    %cst_49 = arith.constant dense<0.000000e+00> : vector<16x32xf32>
    %146 = tpu.matmul %145, %44, %cst_49 {dimension_numbers = #tpu.dot_dimension_numbers<[1], [0], [0], [1], [0, 0, 1, 1], [], []>} : vector<16x32xbf16>, vector<32x32xbf16>, vector<16x32xf32> -> vector<16x32xf32>
    %147 = vector.broadcast %52 : vector<1x32xf32> to vector<16x32xf32>
    %148 = arith.addf %146, %147 : vector<16x32xf32>
    %149 = arith.addf %35, %148 : vector<16x32xf32>
    %cst_50 = arith.constant dense<0.000000e+00> : vector<16xf32>
    %150 = vector.multi_reduction <add>, %149, %cst_50 [1] : vector<16x32xf32> to vector<16xf32>
    %151 = vector.shape_cast %150 : vector<16xf32> to vector<16x1xf32>
    %cst_51 = arith.constant 3.200000e+01 : f32
    %152 = vector.broadcast %cst_51 : f32 to vector<16x1xf32>
    %153 = arith.divf %151, %152 : vector<16x1xf32>
    %154 = vector.broadcast %153 : vector<16x1xf32> to vector<16x32xf32>
    %155 = arith.subf %149, %154 : vector<16x32xf32>
    %156 = arith.mulf %155, %155 : vector<16x32xf32>
    %cst_52 = arith.constant dense<0.000000e+00> : vector<16xf32>
    %157 = vector.multi_reduction <add>, %156, %cst_52 [1] : vector<16x32xf32> to vector<16xf32>
    %158 = vector.shape_cast %157 : vector<16xf32> to vector<16x1xf32>
    %cst_53 = arith.constant 3.200000e+01 : f32
    %159 = vector.broadcast %cst_53 : f32 to vector<16x1xf32>
    %160 = arith.divf %158, %159 : vector<16x1xf32>
    %161 = vector.broadcast %153 : vector<16x1xf32> to vector<16x32xf32>
    %162 = arith.subf %149, %161 : vector<16x32xf32>
    %cst_54 = arith.constant 9.99999996E-13 : f32
    %163 = vector.broadcast %cst_54 : f32 to vector<16x1xf32>
    %164 = arith.addf %160, %163 : vector<16x1xf32>
    %165 = math.rsqrt %164 : vector<16x1xf32>
    %166 = vector.broadcast %165 : vector<16x1xf32> to vector<16x32xf32>
    %167 = arith.mulf %162, %166 : vector<16x32xf32>
    %168 = vector.broadcast %54 : vector<1x32xf32> to vector<16x32xf32>
    %169 = arith.mulf %167, %168 : vector<16x32xf32>
    %170 = vector.broadcast %56 : vector<1x32xf32> to vector<16x32xf32>
    %171 = arith.addf %169, %170 : vector<16x32xf32>
    %172 = arith.truncf %171 : vector<16x32xf32> to vector<16x32xbf16>
    %cst_55 = arith.constant dense<0.000000e+00> : vector<16x64xf32>
    %173 = tpu.matmul %172, %46, %cst_55 {dimension_numbers = #tpu.dot_dimension_numbers<[1], [0], [0], [1], [0, 0, 1, 1], [], []>} : vector<16x32xbf16>, vector<32x64xbf16>, vector<16x64xf32> -> vector<16x64xf32>
    %174 = vector.broadcast %58 : vector<1x64xf32> to vector<16x64xf32>
    %175 = arith.addf %173, %174 : vector<16x64xf32>
    %cst_56 = arith.constant 5.000000e-01 : f32
    %176 = vector.broadcast %cst_56 : f32 to vector<16x64xf32>
    %177 = arith.mulf %176, %175 : vector<16x64xf32>
    %cst_57 = arith.constant 4.471500e-02 : f32
    %178 = vector.broadcast %cst_57 : f32 to vector<16x64xf32>
    %179 = arith.mulf %178, %175 : vector<16x64xf32>
    %180 = arith.mulf %179, %175 : vector<16x64xf32>
    %181 = arith.mulf %180, %175 : vector<16x64xf32>
    %182 = arith.addf %175, %181 : vector<16x64xf32>
    %cst_58 = arith.constant 0.797884583 : f32
    %183 = vector.broadcast %cst_58 : f32 to vector<16x64xf32>
    %184 = arith.mulf %183, %182 : vector<16x64xf32>
    %185 = math.tanh %184 : vector<16x64xf32>
    %cst_59 = arith.constant 1.000000e+00 : f32
    %186 = vector.broadcast %cst_59 : f32 to vector<16x64xf32>
    %187 = arith.addf %186, %185 : vector<16x64xf32>
    %188 = arith.mulf %177, %187 : vector<16x64xf32>
    %189 = arith.truncf %188 : vector<16x64xf32> to vector<16x64xbf16>
    %cst_60 = arith.constant dense<0.000000e+00> : vector<16x32xf32>
    %190 = tpu.matmul %189, %48, %cst_60 {dimension_numbers = #tpu.dot_dimension_numbers<[1], [0], [0], [1], [0, 0, 1, 1], [], []>} : vector<16x64xbf16>, vector<64x32xbf16>, vector<16x32xf32> -> vector<16x32xf32>
    %191 = vector.broadcast %60 : vector<1x32xf32> to vector<16x32xf32>
    %192 = arith.addf %190, %191 : vector<16x32xf32>
    %193 = arith.addf %171, %192 : vector<16x32xf32>
    %cst_61 = arith.constant dense<0.000000e+00> : vector<16xf32>
    %194 = vector.multi_reduction <add>, %193, %cst_61 [1] : vector<16x32xf32> to vector<16xf32>
    %195 = vector.shape_cast %194 : vector<16xf32> to vector<16x1xf32>
    %cst_62 = arith.constant 3.200000e+01 : f32
    %196 = vector.broadcast %cst_62 : f32 to vector<16x1xf32>
    %197 = arith.divf %195, %196 : vector<16x1xf32>
    %198 = vector.broadcast %197 : vector<16x1xf32> to vector<16x32xf32>
    %199 = arith.subf %193, %198 : vector<16x32xf32>
    %200 = arith.mulf %199, %199 : vector<16x32xf32>
    %cst_63 = arith.constant dense<0.000000e+00> : vector<16xf32>
    %201 = vector.multi_reduction <add>, %200, %cst_63 [1] : vector<16x32xf32> to vector<16xf32>
    %202 = vector.shape_cast %201 : vector<16xf32> to vector<16x1xf32>
    %cst_64 = arith.constant 3.200000e+01 : f32
    %203 = vector.broadcast %cst_64 : f32 to vector<16x1xf32>
    %204 = arith.divf %202, %203 : vector<16x1xf32>
    %205 = vector.broadcast %197 : vector<16x1xf32> to vector<16x32xf32>
    %206 = arith.subf %193, %205 : vector<16x32xf32>
    %cst_65 = arith.constant 9.99999996E-13 : f32
    %207 = vector.broadcast %cst_65 : f32 to vector<16x1xf32>
    %208 = arith.addf %204, %207 : vector<16x1xf32>
    %209 = math.rsqrt %208 : vector<16x1xf32>
    %210 = vector.broadcast %209 : vector<16x1xf32> to vector<16x32xf32>
    %211 = arith.mulf %206, %210 : vector<16x32xf32>
    %212 = vector.broadcast %62 : vector<1x32xf32> to vector<16x32xf32>
    %213 = arith.mulf %211, %212 : vector<16x32xf32>
    %214 = vector.broadcast %64 : vector<1x32xf32> to vector<16x32xf32>
    %215 = arith.addf %213, %214 : vector<16x32xf32>
    %c1_66 = arith.constant 1 : index
    %c0_67 = arith.constant 0 : index
    %c0_68 = arith.constant 0 : index
    %216 = vector.load %arg3[%c1_66, %c0_67, %c0_68] : memref<3x32x192xbf16, #tpu.memory_space<vmem>>, vector<1x32x96xbf16>
    %217 = vector.shape_cast %216 : vector<1x32x96xbf16> to vector<32x96xbf16>
    %c1_69 = arith.constant 1 : index
    %c0_70 = arith.constant 0 : index
    %c96_71 = arith.constant 96 : index
    %218 = vector.load %arg3[%c1_69, %c0_70, %c96_71] : memref<3x32x192xbf16, #tpu.memory_space<vmem>>, vector<1x32x32xbf16>
    %219 = vector.shape_cast %218 : vector<1x32x32xbf16> to vector<32x32xbf16>
    %c1_72 = arith.constant 1 : index
    %c0_73 = arith.constant 0 : index
    %c128_74 = arith.constant 128 : index
    %220 = vector.load %arg3[%c1_72, %c0_73, %c128_74] : memref<3x32x192xbf16, #tpu.memory_space<vmem>>, vector<1x32x64xbf16>
    %221 = vector.shape_cast %220 : vector<1x32x64xbf16> to vector<32x64xbf16>
    %c1_75 = arith.constant 1 : index
    %c0_76 = arith.constant 0 : index
    %c0_77 = arith.constant 0 : index
    %222 = vector.load %arg4[%c1_75, %c0_76, %c0_77] : memref<2x64x32xbf16, #tpu.memory_space<vmem>>, vector<1x64x32xbf16>
    %223 = vector.shape_cast %222 : vector<1x64x32xbf16> to vector<64x32xbf16>
    %c1_78 = arith.constant 1 : index
    %c0_79 = arith.constant 0 : index
    %c0_80 = arith.constant 0 : index
    %224 = vector.load %arg5[%c1_78, %c0_79, %c0_80] : memref<2x8x96xf32, #tpu.memory_space<vmem>>, vector<1x1x96xf32>
    %225 = vector.shape_cast %224 : vector<1x1x96xf32> to vector<1x96xf32>
    %c1_81 = arith.constant 1 : index
    %c1_82 = arith.constant 1 : index
    %c0_83 = arith.constant 0 : index
    %226 = vector.load %arg5[%c1_81, %c1_82, %c0_83] : memref<2x8x96xf32, #tpu.memory_space<vmem>>, vector<1x1x32xf32>
    %227 = vector.shape_cast %226 : vector<1x1x32xf32> to vector<1x32xf32>
    %c1_84 = arith.constant 1 : index
    %c2_85 = arith.constant 2 : index
    %c0_86 = arith.constant 0 : index
    %228 = vector.load %arg5[%c1_84, %c2_85, %c0_86] : memref<2x8x96xf32, #tpu.memory_space<vmem>>, vector<1x1x32xf32>
    %229 = vector.shape_cast %228 : vector<1x1x32xf32> to vector<1x32xf32>
    %c1_87 = arith.constant 1 : index
    %c3_88 = arith.constant 3 : index
    %c0_89 = arith.constant 0 : index
    %230 = vector.load %arg5[%c1_87, %c3_88, %c0_89] : memref<2x8x96xf32, #tpu.memory_space<vmem>>, vector<1x1x32xf32>
    %231 = vector.shape_cast %230 : vector<1x1x32xf32> to vector<1x32xf32>
    %c1_90 = arith.constant 1 : index
    %c4_91 = arith.constant 4 : index
    %c0_92 = arith.constant 0 : index
    %232 = vector.load %arg5[%c1_90, %c4_91, %c0_92] : memref<2x8x96xf32, #tpu.memory_space<vmem>>, vector<1x1x64xf32>
    %233 = vector.shape_cast %232 : vector<1x1x64xf32> to vector<1x64xf32>
    %c1_93 = arith.constant 1 : index
    %c5_94 = arith.constant 5 : index
    %c0_95 = arith.constant 0 : index
    %234 = vector.load %arg5[%c1_93, %c5_94, %c0_95] : memref<2x8x96xf32, #tpu.memory_space<vmem>>, vector<1x1x32xf32>
    %235 = vector.shape_cast %234 : vector<1x1x32xf32> to vector<1x32xf32>
    %c1_96 = arith.constant 1 : index
    %c6_97 = arith.constant 6 : index
    %c0_98 = arith.constant 0 : index
    %236 = vector.load %arg5[%c1_96, %c6_97, %c0_98] : memref<2x8x96xf32, #tpu.memory_space<vmem>>, vector<1x1x32xf32>
    %237 = vector.shape_cast %236 : vector<1x1x32xf32> to vector<1x32xf32>
    %c1_99 = arith.constant 1 : index
    %c7_100 = arith.constant 7 : index
    %c0_101 = arith.constant 0 : index
    %238 = vector.load %arg5[%c1_99, %c7_100, %c0_101] : memref<2x8x96xf32, #tpu.memory_space<vmem>>, vector<1x1x32xf32>
    %239 = vector.shape_cast %238 : vector<1x1x32xf32> to vector<1x32xf32>
    %240 = arith.truncf %215 : vector<16x32xf32> to vector<16x32xbf16>
    %cst_102 = arith.constant dense<0.000000e+00> : vector<16x96xf32>
    %241 = tpu.matmul %240, %217, %cst_102 {dimension_numbers = #tpu.dot_dimension_numbers<[1], [0], [0], [1], [0, 0, 1, 1], [], []>} : vector<16x32xbf16>, vector<32x96xbf16>, vector<16x96xf32> -> vector<16x96xf32>
    %242 = vector.broadcast %225 : vector<1x96xf32> to vector<16x96xf32>
    %243 = arith.addf %241, %242 : vector<16x96xf32>
    %244 = vector.extract_strided_slice %243 {offsets = [0, 0], sizes = [16, 32], strides = [1, 1]} : vector<16x96xf32> to vector<16x32xf32>
    %245 = vector.extract_strided_slice %244 {offsets = [0, 0], sizes = [16, 8], strides = [1, 1]} : vector<16x32xf32> to vector<16x8xf32>
    %246 = vector.shape_cast %245 : vector<16x8xf32> to vector<2x8x8xf32>
    %247 = vector.extract_strided_slice %244 {offsets = [0, 8], sizes = [16, 8], strides = [1, 1]} : vector<16x32xf32> to vector<16x8xf32>
    %248 = vector.shape_cast %247 : vector<16x8xf32> to vector<2x8x8xf32>
    %249 = vector.extract_strided_slice %244 {offsets = [0, 16], sizes = [16, 8], strides = [1, 1]} : vector<16x32xf32> to vector<16x8xf32>
    %250 = vector.shape_cast %249 : vector<16x8xf32> to vector<2x8x8xf32>
    %251 = vector.extract_strided_slice %244 {offsets = [0, 24], sizes = [16, 8], strides = [1, 1]} : vector<16x32xf32> to vector<16x8xf32>
    %252 = vector.shape_cast %251 : vector<16x8xf32> to vector<2x8x8xf32>
    %253 = vector.shape_cast %246 : vector<2x8x8xf32> to vector<2x1x8x8xf32>
    %254 = vector.shape_cast %248 : vector<2x8x8xf32> to vector<2x1x8x8xf32>
    %255 = vector.shape_cast %250 : vector<2x8x8xf32> to vector<2x1x8x8xf32>
    %256 = vector.shape_cast %252 : vector<2x8x8xf32> to vector<2x1x8x8xf32>
    %257 = tpu.concatenate %253, %254, %255, %256 in 1 : vector<2x1x8x8xf32>, vector<2x1x8x8xf32>, vector<2x1x8x8xf32>, vector<2x1x8x8xf32> -> vector<2x4x8x8xf32>
    %258 = vector.shape_cast %257 : vector<2x4x8x8xf32> to vector<8x8x8xf32>
    %259 = vector.extract_strided_slice %243 {offsets = [0, 32], sizes = [16, 32], strides = [1, 1]} : vector<16x96xf32> to vector<16x32xf32>
    %260 = vector.extract_strided_slice %259 {offsets = [0, 0], sizes = [16, 8], strides = [1, 1]} : vector<16x32xf32> to vector<16x8xf32>
    %261 = vector.shape_cast %260 : vector<16x8xf32> to vector<2x8x8xf32>
    %262 = vector.extract_strided_slice %259 {offsets = [0, 8], sizes = [16, 8], strides = [1, 1]} : vector<16x32xf32> to vector<16x8xf32>
    %263 = vector.shape_cast %262 : vector<16x8xf32> to vector<2x8x8xf32>
    %264 = vector.extract_strided_slice %259 {offsets = [0, 16], sizes = [16, 8], strides = [1, 1]} : vector<16x32xf32> to vector<16x8xf32>
    %265 = vector.shape_cast %264 : vector<16x8xf32> to vector<2x8x8xf32>
    %266 = vector.extract_strided_slice %259 {offsets = [0, 24], sizes = [16, 8], strides = [1, 1]} : vector<16x32xf32> to vector<16x8xf32>
    %267 = vector.shape_cast %266 : vector<16x8xf32> to vector<2x8x8xf32>
    %268 = vector.shape_cast %261 : vector<2x8x8xf32> to vector<2x1x8x8xf32>
    %269 = vector.shape_cast %263 : vector<2x8x8xf32> to vector<2x1x8x8xf32>
    %270 = vector.shape_cast %265 : vector<2x8x8xf32> to vector<2x1x8x8xf32>
    %271 = vector.shape_cast %267 : vector<2x8x8xf32> to vector<2x1x8x8xf32>
    %272 = tpu.concatenate %268, %269, %270, %271 in 1 : vector<2x1x8x8xf32>, vector<2x1x8x8xf32>, vector<2x1x8x8xf32>, vector<2x1x8x8xf32> -> vector<2x4x8x8xf32>
    %273 = vector.shape_cast %272 : vector<2x4x8x8xf32> to vector<8x8x8xf32>
    %274 = vector.extract_strided_slice %243 {offsets = [0, 64], sizes = [16, 32], strides = [1, 1]} : vector<16x96xf32> to vector<16x32xf32>
    %275 = vector.extract_strided_slice %274 {offsets = [0, 0], sizes = [16, 8], strides = [1, 1]} : vector<16x32xf32> to vector<16x8xf32>
    %276 = vector.shape_cast %275 : vector<16x8xf32> to vector<2x8x8xf32>
    %277 = vector.extract_strided_slice %274 {offsets = [0, 8], sizes = [16, 8], strides = [1, 1]} : vector<16x32xf32> to vector<16x8xf32>
    %278 = vector.shape_cast %277 : vector<16x8xf32> to vector<2x8x8xf32>
    %279 = vector.extract_strided_slice %274 {offsets = [0, 16], sizes = [16, 8], strides = [1, 1]} : vector<16x32xf32> to vector<16x8xf32>
    %280 = vector.shape_cast %279 : vector<16x8xf32> to vector<2x8x8xf32>
    %281 = vector.extract_strided_slice %274 {offsets = [0, 24], sizes = [16, 8], strides = [1, 1]} : vector<16x32xf32> to vector<16x8xf32>
    %282 = vector.shape_cast %281 : vector<16x8xf32> to vector<2x8x8xf32>
    %283 = vector.shape_cast %276 : vector<2x8x8xf32> to vector<2x1x8x8xf32>
    %284 = vector.shape_cast %278 : vector<2x8x8xf32> to vector<2x1x8x8xf32>
    %285 = vector.shape_cast %280 : vector<2x8x8xf32> to vector<2x1x8x8xf32>
    %286 = vector.shape_cast %282 : vector<2x8x8xf32> to vector<2x1x8x8xf32>
    %287 = tpu.concatenate %283, %284, %285, %286 in 1 : vector<2x1x8x8xf32>, vector<2x1x8x8xf32>, vector<2x1x8x8xf32>, vector<2x1x8x8xf32> -> vector<2x4x8x8xf32>
    %288 = vector.shape_cast %287 : vector<2x4x8x8xf32> to vector<8x8x8xf32>
    %289 = arith.truncf %258 : vector<8x8x8xf32> to vector<8x8x8xbf16>
    %290 = arith.truncf %273 : vector<8x8x8xf32> to vector<8x8x8xbf16>
    "tpu.trace_start"() <{level = 10 : i32, message = "gqd,gkd->gqk"}> : () -> ()
    %cst_103 = arith.constant dense<0.000000e+00> : vector<8x8x8xf32>
    %291 = tpu.matmul %289, %290, %cst_103 {dimension_numbers = #tpu.dot_dimension_numbers<[2], [2], [1], [1], [0, 0, 0, 1, 1, 1], [0], [0]>} : vector<8x8x8xbf16>, vector<8x8x8xbf16>, vector<8x8x8xf32> -> vector<8x8x8xf32>
    "tpu.trace_stop"() : () -> ()
    %cst_104 = arith.constant 0.353553385 : f32
    %292 = vector.broadcast %cst_104 : f32 to vector<8x8x8xf32>
    %293 = arith.mulf %291, %292 : vector<8x8x8xf32>
    %294 = vector.broadcast %40 : vector<8x1x8xf32> to vector<8x8x8xf32>
    %295 = arith.addf %293, %294 : vector<8x8x8xf32>
    %cst_105 = arith.constant dense<0xFF800000> : vector<8x8xf32>
    %296 = vector.multi_reduction <maximumf>, %295, %cst_105 [2] : vector<8x8x8xf32> to vector<8x8xf32>
    %297 = vector.shape_cast %296 : vector<8x8xf32> to vector<8x8x1xf32>
    %298 = vector.broadcast %297 : vector<8x8x1xf32> to vector<8x8x8xf32>
    %299 = arith.subf %295, %298 : vector<8x8x8xf32>
    %300 = math.exp %299 : vector<8x8x8xf32>
    %cst_106 = arith.constant dense<0.000000e+00> : vector<8x8xf32>
    %301 = vector.multi_reduction <add>, %300, %cst_106 [2] : vector<8x8x8xf32> to vector<8x8xf32>
    %302 = vector.shape_cast %301 : vector<8x8xf32> to vector<8x8x1xf32>
    %303 = tpu.reciprocal %302 {approx = true} : vector<8x8x1xf32> -> vector<8x8x1xf32>
    %304 = vector.broadcast %303 : vector<8x8x1xf32> to vector<8x8x8xf32>
    %305 = arith.mulf %300, %304 : vector<8x8x8xf32>
    %306 = arith.truncf %305 : vector<8x8x8xf32> to vector<8x8x8xbf16>
    %307 = arith.truncf %288 : vector<8x8x8xf32> to vector<8x8x8xbf16>
    "tpu.trace_start"() <{level = 10 : i32, message = "gqk,gkd->gqd"}> : () -> ()
    %cst_107 = arith.constant dense<0.000000e+00> : vector<8x8x8xf32>
    %308 = tpu.matmul %306, %307, %cst_107 {dimension_numbers = #tpu.dot_dimension_numbers<[2], [1], [1], [2], [0, 0, 0, 1, 1, 2], [0], [0]>} : vector<8x8x8xbf16>, vector<8x8x8xbf16>, vector<8x8x8xf32> -> vector<8x8x8xf32>
    "tpu.trace_stop"() : () -> ()
    %309 = vector.shape_cast %308 : vector<8x8x8xf32> to vector<2x4x8x8xf32>
    %310 = vector.extract_strided_slice %309 {offsets = [0, 0, 0, 0], sizes = [2, 1, 8, 8], strides = [1, 1, 1, 1]} : vector<2x4x8x8xf32> to vector<2x1x8x8xf32>
    %311 = vector.shape_cast %310 : vector<2x1x8x8xf32> to vector<2x8x8xf32>
    %312 = vector.extract_strided_slice %309 {offsets = [0, 1, 0, 0], sizes = [2, 1, 8, 8], strides = [1, 1, 1, 1]} : vector<2x4x8x8xf32> to vector<2x1x8x8xf32>
    %313 = vector.shape_cast %312 : vector<2x1x8x8xf32> to vector<2x8x8xf32>
    %314 = vector.extract_strided_slice %309 {offsets = [0, 2, 0, 0], sizes = [2, 1, 8, 8], strides = [1, 1, 1, 1]} : vector<2x4x8x8xf32> to vector<2x1x8x8xf32>
    %315 = vector.shape_cast %314 : vector<2x1x8x8xf32> to vector<2x8x8xf32>
    %316 = vector.extract_strided_slice %309 {offsets = [0, 3, 0, 0], sizes = [2, 1, 8, 8], strides = [1, 1, 1, 1]} : vector<2x4x8x8xf32> to vector<2x1x8x8xf32>
    %317 = vector.shape_cast %316 : vector<2x1x8x8xf32> to vector<2x8x8xf32>
    %318 = tpu.concatenate %311, %313, %315, %317 in 2 : vector<2x8x8xf32>, vector<2x8x8xf32>, vector<2x8x8xf32>, vector<2x8x8xf32> -> vector<2x8x32xf32>
    %319 = vector.shape_cast %318 : vector<2x8x32xf32> to vector<16x32xf32>
    %320 = arith.truncf %319 : vector<16x32xf32> to vector<16x32xbf16>
    %cst_108 = arith.constant dense<0.000000e+00> : vector<16x32xf32>
    %321 = tpu.matmul %320, %219, %cst_108 {dimension_numbers = #tpu.dot_dimension_numbers<[1], [0], [0], [1], [0, 0, 1, 1], [], []>} : vector<16x32xbf16>, vector<32x32xbf16>, vector<16x32xf32> -> vector<16x32xf32>
    %322 = vector.broadcast %227 : vector<1x32xf32> to vector<16x32xf32>
    %323 = arith.addf %321, %322 : vector<16x32xf32>
    %324 = arith.addf %215, %323 : vector<16x32xf32>
    %cst_109 = arith.constant dense<0.000000e+00> : vector<16xf32>
    %325 = vector.multi_reduction <add>, %324, %cst_109 [1] : vector<16x32xf32> to vector<16xf32>
    %326 = vector.shape_cast %325 : vector<16xf32> to vector<16x1xf32>
    %cst_110 = arith.constant 3.200000e+01 : f32
    %327 = vector.broadcast %cst_110 : f32 to vector<16x1xf32>
    %328 = arith.divf %326, %327 : vector<16x1xf32>
    %329 = vector.broadcast %328 : vector<16x1xf32> to vector<16x32xf32>
    %330 = arith.subf %324, %329 : vector<16x32xf32>
    %331 = arith.mulf %330, %330 : vector<16x32xf32>
    %cst_111 = arith.constant dense<0.000000e+00> : vector<16xf32>
    %332 = vector.multi_reduction <add>, %331, %cst_111 [1] : vector<16x32xf32> to vector<16xf32>
    %333 = vector.shape_cast %332 : vector<16xf32> to vector<16x1xf32>
    %cst_112 = arith.constant 3.200000e+01 : f32
    %334 = vector.broadcast %cst_112 : f32 to vector<16x1xf32>
    %335 = arith.divf %333, %334 : vector<16x1xf32>
    %336 = vector.broadcast %328 : vector<16x1xf32> to vector<16x32xf32>
    %337 = arith.subf %324, %336 : vector<16x32xf32>
    %cst_113 = arith.constant 9.99999996E-13 : f32
    %338 = vector.broadcast %cst_113 : f32 to vector<16x1xf32>
    %339 = arith.addf %335, %338 : vector<16x1xf32>
    %340 = math.rsqrt %339 : vector<16x1xf32>
    %341 = vector.broadcast %340 : vector<16x1xf32> to vector<16x32xf32>
    %342 = arith.mulf %337, %341 : vector<16x32xf32>
    %343 = vector.broadcast %229 : vector<1x32xf32> to vector<16x32xf32>
    %344 = arith.mulf %342, %343 : vector<16x32xf32>
    %345 = vector.broadcast %231 : vector<1x32xf32> to vector<16x32xf32>
    %346 = arith.addf %344, %345 : vector<16x32xf32>
    %347 = arith.truncf %346 : vector<16x32xf32> to vector<16x32xbf16>
    %cst_114 = arith.constant dense<0.000000e+00> : vector<16x64xf32>
    %348 = tpu.matmul %347, %221, %cst_114 {dimension_numbers = #tpu.dot_dimension_numbers<[1], [0], [0], [1], [0, 0, 1, 1], [], []>} : vector<16x32xbf16>, vector<32x64xbf16>, vector<16x64xf32> -> vector<16x64xf32>
    %349 = vector.broadcast %233 : vector<1x64xf32> to vector<16x64xf32>
    %350 = arith.addf %348, %349 : vector<16x64xf32>
    %cst_115 = arith.constant 5.000000e-01 : f32
    %351 = vector.broadcast %cst_115 : f32 to vector<16x64xf32>
    %352 = arith.mulf %351, %350 : vector<16x64xf32>
    %cst_116 = arith.constant 4.471500e-02 : f32
    %353 = vector.broadcast %cst_116 : f32 to vector<16x64xf32>
    %354 = arith.mulf %353, %350 : vector<16x64xf32>
    %355 = arith.mulf %354, %350 : vector<16x64xf32>
    %356 = arith.mulf %355, %350 : vector<16x64xf32>
    %357 = arith.addf %350, %356 : vector<16x64xf32>
    %cst_117 = arith.constant 0.797884583 : f32
    %358 = vector.broadcast %cst_117 : f32 to vector<16x64xf32>
    %359 = arith.mulf %358, %357 : vector<16x64xf32>
    %360 = math.tanh %359 : vector<16x64xf32>
    %cst_118 = arith.constant 1.000000e+00 : f32
    %361 = vector.broadcast %cst_118 : f32 to vector<16x64xf32>
    %362 = arith.addf %361, %360 : vector<16x64xf32>
    %363 = arith.mulf %352, %362 : vector<16x64xf32>
    %364 = arith.truncf %363 : vector<16x64xf32> to vector<16x64xbf16>
    %cst_119 = arith.constant dense<0.000000e+00> : vector<16x32xf32>
    %365 = tpu.matmul %364, %223, %cst_119 {dimension_numbers = #tpu.dot_dimension_numbers<[1], [0], [0], [1], [0, 0, 1, 1], [], []>} : vector<16x64xbf16>, vector<64x32xbf16>, vector<16x32xf32> -> vector<16x32xf32>
    %366 = vector.broadcast %235 : vector<1x32xf32> to vector<16x32xf32>
    %367 = arith.addf %365, %366 : vector<16x32xf32>
    %368 = arith.addf %346, %367 : vector<16x32xf32>
    %cst_120 = arith.constant dense<0.000000e+00> : vector<16xf32>
    %369 = vector.multi_reduction <add>, %368, %cst_120 [1] : vector<16x32xf32> to vector<16xf32>
    %370 = vector.shape_cast %369 : vector<16xf32> to vector<16x1xf32>
    %cst_121 = arith.constant 3.200000e+01 : f32
    %371 = vector.broadcast %cst_121 : f32 to vector<16x1xf32>
    %372 = arith.divf %370, %371 : vector<16x1xf32>
    %373 = vector.broadcast %372 : vector<16x1xf32> to vector<16x32xf32>
    %374 = arith.subf %368, %373 : vector<16x32xf32>
    %375 = arith.mulf %374, %374 : vector<16x32xf32>
    %cst_122 = arith.constant dense<0.000000e+00> : vector<16xf32>
    %376 = vector.multi_reduction <add>, %375, %cst_122 [1] : vector<16x32xf32> to vector<16xf32>
    %377 = vector.shape_cast %376 : vector<16xf32> to vector<16x1xf32>
    %cst_123 = arith.constant 3.200000e+01 : f32
    %378 = vector.broadcast %cst_123 : f32 to vector<16x1xf32>
    %379 = arith.divf %377, %378 : vector<16x1xf32>
    %380 = vector.broadcast %372 : vector<16x1xf32> to vector<16x32xf32>
    %381 = arith.subf %368, %380 : vector<16x32xf32>
    %cst_124 = arith.constant 9.99999996E-13 : f32
    %382 = vector.broadcast %cst_124 : f32 to vector<16x1xf32>
    %383 = arith.addf %379, %382 : vector<16x1xf32>
    %384 = math.rsqrt %383 : vector<16x1xf32>
    %385 = vector.broadcast %384 : vector<16x1xf32> to vector<16x32xf32>
    %386 = arith.mulf %381, %385 : vector<16x32xf32>
    %387 = vector.broadcast %237 : vector<1x32xf32> to vector<16x32xf32>
    %388 = arith.mulf %386, %387 : vector<16x32xf32>
    %389 = vector.broadcast %239 : vector<1x32xf32> to vector<16x32xf32>
    %390 = arith.addf %388, %389 : vector<16x32xf32>
    %c2_125 = arith.constant 2 : index
    %c0_126 = arith.constant 0 : index
    %c0_127 = arith.constant 0 : index
    %391 = vector.load %arg3[%c2_125, %c0_126, %c0_127] : memref<3x32x192xbf16, #tpu.memory_space<vmem>>, vector<1x32x32xbf16>
    %392 = vector.shape_cast %391 : vector<1x32x32xbf16> to vector<32x32xbf16>
    %c2_128 = arith.constant 2 : index
    %c0_129 = arith.constant 0 : index
    %c32 = arith.constant 32 : index
    %393 = vector.load %arg3[%c2_128, %c0_129, %c32] : memref<3x32x192xbf16, #tpu.memory_space<vmem>>, vector<1x32x1xbf16>
    %394 = vector.shape_cast %393 : vector<1x32x1xbf16> to vector<32x1xbf16>
    %c10 = arith.constant 10 : index
    %c0_130 = arith.constant 0 : index
    %395 = vector.load %arg6[%c10, %c0_130] : memref<12x32xf32, #tpu.memory_space<vmem>>, vector<1x32xf32>
    %c11 = arith.constant 11 : index
    %c0_131 = arith.constant 0 : index
    %396 = vector.load %arg6[%c11, %c0_131] : memref<12x32xf32, #tpu.memory_space<vmem>>, vector<1x1xf32>
    %397 = vector.shape_cast %390 : vector<16x32xf32> to vector<2x8x32xf32>
    %398 = vector.extract_strided_slice %397 {offsets = [0, 0, 0], sizes = [2, 1, 32], strides = [1, 1, 1]} : vector<2x8x32xf32> to vector<2x1x32xf32>
    %399 = vector.shape_cast %398 : vector<2x1x32xf32> to vector<2x32xf32>
    %400 = arith.truncf %399 : vector<2x32xf32> to vector<2x32xbf16>
    %cst_132 = arith.constant dense<0.000000e+00> : vector<2x32xf32>
    %401 = tpu.matmul %400, %392, %cst_132 {dimension_numbers = #tpu.dot_dimension_numbers<[1], [0], [0], [1], [0, 0, 1, 1], [], []>} : vector<2x32xbf16>, vector<32x32xbf16>, vector<2x32xf32> -> vector<2x32xf32>
    %402 = vector.broadcast %395 : vector<1x32xf32> to vector<2x32xf32>
    %403 = arith.addf %401, %402 : vector<2x32xf32>
    %404 = math.tanh %403 : vector<2x32xf32>
    %405 = arith.truncf %404 : vector<2x32xf32> to vector<2x32xbf16>
    %cst_133 = arith.constant dense<0.000000e+00> : vector<2x1xf32>
    %406 = tpu.matmul %405, %394, %cst_133 {dimension_numbers = #tpu.dot_dimension_numbers<[1], [0], [0], [1], [0, 0, 1, 1], [], []>} : vector<2x32xbf16>, vector<32x1xbf16>, vector<2x1xf32> -> vector<2x1xf32>
    %407 = vector.broadcast %396 : vector<1x1xf32> to vector<2x1xf32>
    %408 = arith.addf %406, %407 : vector<2x1xf32>
    %c0_134 = arith.constant 0 : index
    %c0_135 = arith.constant 0 : index
    %409 = vector.load %arg7[%c0_134, %c0_135] : memref<2x1xf32, #tpu.memory_space<vmem>>, vector<2x1xf32>
    tpu.vector_store %arg7[%c0_134, %c0_135], %408 {strides = array<i32>} : memref<2x1xf32, #tpu.memory_space<vmem>>, vector<2x1xf32>,
    return
  }
}

</mosaic_0001>

<llo_original>
// kernel: tpu_custom_call.1
$region0: #{tpu_custom_call.1}
  #allocation0 [shape = 'u32[]', space=smem, size = 0x4, offset = 0x4, fixed_abs, tag = 'smem constant byte address 0x4 - core index']
  #allocation1 [shape = 'u32[144,128]{1,0:T(1,128)}', space=vmem, size = 0x12000, scoped, tag = 'internal scratch']
  %s0 = inlined_call_operand.vmem [shape: s32[16,1], index: 0, kind: input, shape index: {}]
  %s1 = inlined_call_operand.vmem [shape: f32[2,8], index: 1, kind: input, shape index: {}]
  %s2 = inlined_call_operand.vmem [shape: bf16[128,32], index: 2, kind: input, shape index: {}]
  %s3 = inlined_call_operand.vmem [shape: bf16[3,32,192], index: 3, kind: input, shape index: {}]
  %s4 = inlined_call_operand.vmem [shape: bf16[2,64,32], index: 4, kind: input, shape index: {}]
  %s5 = inlined_call_operand.vmem [shape: f32[2,8,96], index: 5, kind: input, shape index: {}]
  %s6 = inlined_call_operand.vmem [shape: f32[12,32], index: 6, kind: input, shape index: {}]
  %s7 = inlined_call_operand.vmem [shape: f32[2,1], index: 7, kind: output, shape index: {}]
  %s8 = sld [smem:[#allocation0]]
  $region38: #{tpu_custom_call.1} parent=0
    _
  %s10 = ssub.s32 1, %s8
  %s11 = scalar_select 0, %s10, %s8
  // Predicated region
  $region2: #{tpu_custom_call.1} parent=0 // pred_check
    _
  $region3: #{tpu_custom_call.1} parent=0 // pred_check_branch
    %13 = sbr.rel (0) target = $region5
  $region4: #{tpu_custom_call.1} parent=0 // pred_region
    _
  $region5: #{tpu_custom_call.1} parent=0 // pred_fallthru
    _
  // Predicated region
  $region6: #{tpu_custom_call.1} parent=0 // pred_check
    _
  $region7: #{tpu_custom_call.1} parent=0 // pred_check_branch
    %15 = sbr.rel (0) target = $region9
  $region8: #{tpu_custom_call.1} parent=0 // pred_region
    _
  $region9: #{tpu_custom_call.1} parent=0 // pred_fallthru
    _
  // Predicated region
  $region10: #{tpu_custom_call.1} parent=0 // pred_check
    _
  $region11: #{tpu_custom_call.1} parent=0 // pred_check_branch
    %17 = sbr.rel (0) target = $region13
  $region12: #{tpu_custom_call.1} parent=0 // pred_region
    _
  $region13: #{tpu_custom_call.1} parent=0 // pred_fallthru
    _
  // Predicated region
  $region14: #{tpu_custom_call.1} parent=0 // pred_check
    _
  $region15: #{tpu_custom_call.1} parent=0 // pred_check_branch
    %19 = sbr.rel (0) target = $region17
  $region16: #{tpu_custom_call.1} parent=0 // pred_region
    _
  $region17: #{tpu_custom_call.1} parent=0 // pred_fallthru
    _
  // Predicated region
  $region18: #{tpu_custom_call.1} parent=0 // pred_check
    _
  $region19: #{tpu_custom_call.1} parent=0 // pred_check_branch
    %21 = sbr.rel (0) target = $region21
  $region20: #{tpu_custom_call.1} parent=0 // pred_region
    _
  $region21: #{tpu_custom_call.1} parent=0 // pred_fallthru
    _
  // Predicated region
  $region22: #{tpu_custom_call.1} parent=0 // pred_check
    _
  $region23: #{tpu_custom_call.1} parent=0 // pred_check_branch
    %23 = sbr.rel (0) target = $region25
  $region24: #{tpu_custom_call.1} parent=0 // pred_region
    _
  $region25: #{tpu_custom_call.1} parent=0 // pred_fallthru
    _
  // Predicated region
  $region26: #{tpu_custom_call.1} parent=0 // pred_check
    _
  $region27: #{tpu_custom_call.1} parent=0 // pred_check_branch
    %25 = sbr.rel (0) target = $region29
  $region28: #{tpu_custom_call.1} parent=0 // pred_region
    _
  $region29: #{tpu_custom_call.1} parent=0 // pred_fallthru
    _
  %v27 = vlaneseq
  %v28 = vand.u32 %v27, 127
  %v29 = vld [vmem:[%s0] sm:$0xff]
  %v30 = vld [vmem:[%s0 + $0x8] sm:$0xff]
  %31 = vset.pattern.permute.xlu0 0
  %32 = vperm.xlu0 %31, %v29
  %v33 = vpop.permute.xlu0 %32
  %34 = vset.pattern.permute.xlu0 0
  %35 = vperm.xlu0 %34, %v30
  %v36 = vpop.permute.xlu0 %35
  %vm37 = vcmp.eq.s32.totalorder %v28, %v33
  %vm38 = vcmp.eq.s32.totalorder %v28, %v36
  %v39 = vsel %vm37, 1, 0
  %v40 = vsel %vm38, 1, 0
  %v41 = vcvt.s32.f32 %v39
  %v42 = vcvt.s32.f32 %v40
  %v43 = vpack.c.bf16 %v42, %v41
  %v44 = vld [vmem:[%s2] sm:$0xf]
  %v45 = vld [vmem:[%s2 + $0x4] sm:$0xf]
  %v46 = vld [vmem:[%s2 + $0x8] sm:$0xf]
  %v47 = vld [vmem:[%s2 + $0xc] sm:$0xf]
  %v48 = vld [vmem:[%s2 + $0x10] sm:$0xf]
  %v49 = vld [vmem:[%s2 + $0x14] sm:$0xf]
  %v50 = vld [vmem:[%s2 + $0x18] sm:$0xf]
  %v51 = vld [vmem:[%s2 + $0x1c] sm:$0xf]
  %v52 = vld [vmem:[%s2 + $0x20] sm:$0xf]
  %v53 = vld [vmem:[%s2 + $0x24] sm:$0xf]
  %v54 = vld [vmem:[%s2 + $0x28] sm:$0xf]
  %v55 = vld [vmem:[%s2 + $0x2c] sm:$0xf]
  %v56 = vld [vmem:[%s2 + $0x30] sm:$0xf]
  %v57 = vld [vmem:[%s2 + $0x34] sm:$0xf]
  %v58 = vld [vmem:[%s2 + $0x38] sm:$0xf]
  %v59 = vld [vmem:[%s2 + $0x3c] sm:$0xf]
  %v60 = vld [vmem:[%s6 + $0x2] sm:$0xff]
  %v77 = vunpack.c.l.b16 %v44
  %v78 = vunpack.c.l.b16 %v45
  %v79 = vunpack.c.l.b16 %v46
  %v80 = vunpack.c.l.b16 %v47
  %v81 = vunpack.c.l.b16 %v48
  %v82 = vunpack.c.l.b16 %v49
  %v83 = vunpack.c.l.b16 %v50
  %v84 = vunpack.c.l.b16 %v51
  %v85 = vunpack.c.l.b16 %v52
  %v86 = vunpack.c.l.b16 %v53
  %v87 = vunpack.c.l.b16 %v54
  %v88 = vunpack.c.l.b16 %v55
  %v89 = vunpack.c.l.b16 %v56
  %v90 = vunpack.c.l.b16 %v57
  %v91 = vunpack.c.l.b16 %v58
  %v92 = vunpack.c.l.b16 %v59
  %v93 = vpack.c.b16 %v78, %v77
  %v94 = vpack.c.b16 %v80, %v79
  %v95 = vpack.c.b16 %v82, %v81
  %v96 = vpack.c.b16 %v84, %v83
  %v97 = vpack.c.b16 %v86, %v85
  %v98 = vpack.c.b16 %v88, %v87
  %v99 = vpack.c.b16 %v90, %v89
  %v100 = vpack.c.b16 %v92, %v91
  %109 = vmatprep.subr.bf16.mxu0 0
  %110 = vmatpush1.bf16.msra.mxu0 %v93
  %111 = vmatprep.subr.bf16.mxu0 0
  %112 = vmatpush1.bf16.msra.mxu0 %v94
  %113 = vmatprep.subr.bf16.mxu0 0
  %114 = vmatpush1.bf16.msra.mxu0 %v95
  %115 = vmatprep.subr.bf16.mxu0 0
  %116 = vmatpush1.bf16.msra.mxu0 %v96
  %117 = vmatprep.subr.bf16.mxu0 0
  %118 = vmatpush1.bf16.msra.mxu0 %v97
  %119 = vmatprep.subr.bf16.mxu0 0
  %120 = vmatpush1.bf16.msra.mxu0 %v98
  %121 = vmatprep.subr.bf16.mxu0 0
  %122 = vmatpush1.bf16.msra.mxu0 %v99
  %123 = vmatprep.subr.bf16.mxu0 0
  %124 = vmatpush1.bf16.msra.mxu0 %v100
  %125 = vmatprep.subr.bf16.mxu0 0
  %126 = vmatpush1.bf16.msra.mxu0 0
  %127 = vmatprep.subr.bf16.mxu0 0
  %128 = vmatpush1.bf16.msra.mxu0 0
  %129 = vmatprep.subr.bf16.mxu0 0
  %130 = vmatpush1.bf16.msra.mxu0 0
  %131 = vmatprep.subr.bf16.mxu0 0
  %132 = vmatpush1.bf16.msra.mxu0 0
  %133 = vmatprep.subr.bf16.mxu0 0
  %134 = vmatpush1.bf16.msra.mxu0 0
  %135 = vmatprep.subr.bf16.mxu0 0
  %136 = vmatpush1.bf16.msra.mxu0 0
  %137 = vmatprep.subr.bf16.mxu0 0
  %138 = vmatpush1.bf16.msra.mxu0 0
  %139 = vmatprep.subr.bf16.mxu0 0
  %140 = vmatpush1.bf16.msra.mxu0 0
  %141 = vmatprep.mubr.bf16.mxu0 0
  %142 = vmatmul.mubr.bf16.gmra.mrb[0].mxu0 %v43
  %v143 = vpop.f32.mrb[0].mxu0
  %v144 = vadd.f32 %v60, %v143
  %v145 = vpop.f32.mrb[0].mxu0
  %v146 = vpop.f32.mrb[0].mxu0
  %v147 = vadd.f32 %v60, %v146
  %v148 = vpop.f32.mrb[0].mxu0
  %149 = vdwg.mxu0
  %v150 = vld [vmem:[%s6] sm:$0x1]
  %v151 = vld [vmem:[%s6 + $0x1] sm:$0x1]
  %vm152 = vcmask 261120
  %v153 = vsel %vm152, %v144, 0.0
  %154 = vadd.xlane.f32.xlu0 %v153
  %v155 = vpop.xlane.xlu0 %154
  %v156 = vsel %vm152, %v147, 0.0
  %157 = vadd.xlane.f32.xlu0 %v156
  %v158 = vpop.xlane.xlu0 %157
  %v159 = vrcp.pop 32.0
  %v160 = vmul.f32 %v155, %v159
  %v161 = vmul.f32 %v158, %v159
  %v162 = vsub.f32 %v144, %v160
  %v163 = vsub.f32 %v147, %v161
  %v164 = vmul.f32 %v162, %v162
  %v165 = vmul.f32 %v163, %v163
  %v166 = vsel %vm152, %v164, 0.0
  %167 = vadd.xlane.f32.xlu0 %v166
  %v168 = vpop.xlane.xlu0 %167
  %v169 = vsel %vm152, %v165, 0.0
  %170 = vadd.xlane.f32.xlu0 %v169
  %v171 = vpop.xlane.xlu0 %170
  %v172 = vmul.f32 %v168, %v159
  %v173 = vmul.f32 %v171, %v159
  %v174 = vadd.f32 %v172, 1e-12
  %v175 = vadd.f32 %v173, 1e-12
  %v176 = vrsqrt.pop %v174
  %v177 = vrsqrt.pop %v175
  %v178 = vmul.f32 %v162, %v176
  %v179 = vmul.f32 %v163, %v177
  %v180 = vlaneseq
  %v181 = vshrl.u32 %v180, 7
  %v182 = vsub.s32 0, %v181
  %v183 = vrot.slane %v150, %v182
  %v184 = vmul.f32 %v178, %v183
  %v185 = vmul.f32 %v179, %v183
  %v186 = vlaneseq
  %v187 = vshrl.u32 %v186, 7
  %v188 = vsub.s32 0, %v187
  %v189 = vrot.slane %v151, %v188
  %v190 = vadd.f32 %v184, %v189
  %v191 = vadd.f32 %v185, %v189
  %v192 = vld [vmem:[%s1] sm:$0x3]
  %v195 = vunpack.c.l.s4 1966171168
  %v196 = vunpack.c.0.s8 %v195
  %v197 = vlaneseq
  %v198 = vshrl.u32 %v197, 7
  %v199 = vsub.s32 %v196, %v198
  %v200 = vrot.slane %v192, %v199
  %v201 = vcombine.high %v200, %v200
  %v203 = vunpack.c.l.s4 1966171168
  %v204 = vunpack.c.0.s8 %v203
  %v205 = vlaneseq
  %v206 = vshrl.u32 %v205, 7
  %v207 = vsub.s32 %v204, %v206
  %v208 = vrot.slane %v200, %v207
  %v210 = vunpack.c.l.s4 1966171168
  %v211 = vunpack.c.0.s8 %v210
  %v212 = vlaneseq
  %v213 = vshrl.u32 %v212, 7
  %v214 = vsub.s32 %v211, %v213
  %v215 = vrot.slane %v201, %v214
  %v216 = vld [vmem:[%s3] sm:$0xf]
  %v217 = vld [vmem:[%s3 + $0x8] sm:$0xf]
  %v218 = vld [vmem:[%s3 + $0x10] sm:$0xf]
  %v219 = vld [vmem:[%s3 + $0x18] sm:$0xf]
  %v220 = vld [vmem:[%s3 + $0x4] sm:$0xf]
  %v221 = vld [vmem:[%s3 + $0xc] sm:$0xf]
  %v222 = vld [vmem:[%s3 + $0x14] sm:$0xf]
  %v223 = vld [vmem:[%s3 + $0x1c] sm:$0xf]
  %v224 = vld [vmem:[%s4] sm:$0xf]
  %v225 = vld [vmem:[%s4 + $0x4] sm:$0xf]
  %v226 = vld [vmem:[%s4 + $0x8] sm:$0xf]
  %v227 = vld [vmem:[%s4 + $0xc] sm:$0xf]
  %v228 = vld [vmem:[%s4 + $0x10] sm:$0xf]
  %v229 = vld [vmem:[%s4 + $0x14] sm:$0xf]
  %v230 = vld [vmem:[%s4 + $0x18] sm:$0xf]
  %v231 = vld [vmem:[%s4 + $0x1c] sm:$0xf]
  %v232 = vld [vmem:[%s5] sm:$0x1]
  %v233 = vld [vmem:[%s5 + $0x1] sm:$0x1]
  %v234 = vld [vmem:[%s5 + $0x2] sm:$0x1]
  %v235 = vld [vmem:[%s5 + $0x3] sm:$0x1]
  %v236 = vld [vmem:[%s5 + $0x4] sm:$0x1]
  %v237 = vld [vmem:[%s5 + $0x5] sm:$0x1]
  %v238 = vld [vmem:[%s5 + $0x6] sm:$0x1]
  %v239 = vld [vmem:[%s5 + $0x7] sm:$0x1]
  %v240 = vpack.c.bf16 %v191, %v190
  %v241 = vlaneseq
  %v242 = vshrl.u32 %v241, 7
  %v243 = vsub.s32 0, %v242
  %v244 = vrot.slane %v232, %v243
  %v249 = vunpack.c.l.b16 %v216
  %v250 = vunpack.c.l.b16 %v217
  %v251 = vunpack.c.l.b16 %v218
  %v252 = vunpack.c.l.b16 %v219
  %v253 = vpack.c.b16 %v250, %v249
  %v254 = vpack.c.b16 %v252, %v251
  %v258 = vsel %vm152, %v240, 0
  %260 = vmatprep.subr.bf16.mxu0 0
  %261 = vmatpush1.bf16.msra.mxu0 %v253
  %262 = vmatprep.subr.bf16.mxu0 0
  %263 = vmatpush1.bf16.msra.mxu0 %v254
  %264 = vmatprep.subr.bf16.mxu0 0
  %265 = vmatpush1.bf16.msra.mxu0 0
  %266 = vmatprep.subr.bf16.mxu0 0
  %267 = vmatpush1.bf16.msra.mxu0 0
  %268 = vmatprep.subr.bf16.mxu0 0
  %269 = vmatpush1.bf16.msra.mxu0 0
  %270 = vmatprep.subr.bf16.mxu0 0
  %271 = vmatpush1.bf16.msra.mxu0 0
  %272 = vmatprep.subr.bf16.mxu0 0
  %273 = vmatpush1.bf16.msra.mxu0 0
  %274 = vmatprep.subr.bf16.mxu0 0
  %275 = vmatpush1.bf16.msra.mxu0 0
  %276 = vmatprep.subr.bf16.mxu0 0
  %277 = vmatpush1.bf16.msra.mxu0 0
  %278 = vmatprep.subr.bf16.mxu0 0
  %279 = vmatpush1.bf16.msra.mxu0 0
  %280 = vmatprep.subr.bf16.mxu0 0
  %281 = vmatpush1.bf16.msra.mxu0 0
  %282 = vmatprep.subr.bf16.mxu0 0
  %283 = vmatpush1.bf16.msra.mxu0 0
  %284 = vmatprep.subr.bf16.mxu0 0
  %285 = vmatpush1.bf16.msra.mxu0 0
  %286 = vmatprep.subr.bf16.mxu0 0
  %287 = vmatpush1.bf16.msra.mxu0 0
  %288 = vmatprep.subr.bf16.mxu0 0
  %289 = vmatpush1.bf16.msra.mxu0 0
  %290 = vmatprep.subr.bf16.mxu0 0
  %291 = vmatpush1.bf16.msra.mxu0 0
  %292 = vmatprep.mubr.bf16.mxu0 0
  %293 = vmatmul.mubr.bf16.gmra.mrb[0].mxu0 %v258
  %v294 = vpop.f32.mrb[0].mxu0
  %v295 = vadd.f32 %v244, %v294
  %v296 = vpop.f32.mrb[0].mxu0
  %v297 = vpop.f32.mrb[0].mxu0
  %v298 = vadd.f32 %v244, %v297
  %v299 = vpop.f32.mrb[0].mxu0
  %300 = vdwg.mxu0
  %303 = vrot.lane.b32.xlu0 %v295, 120
  %v304 = vpop.permute.xlu0 %303
  %305 = vrot.lane.b32.xlu0 %v298, 120
  %v306 = vpop.permute.xlu0 %305
  %309 = vrot.lane.b32.xlu0 %v295, 112
  %v310 = vpop.permute.xlu0 %309
  %311 = vrot.lane.b32.xlu0 %v298, 112
  %v312 = vpop.permute.xlu0 %311
  %315 = vrot.lane.b32.xlu0 %v295, 104
  %v316 = vpop.permute.xlu0 %315
  %317 = vrot.lane.b32.xlu0 %v298, 104
  %v318 = vpop.permute.xlu0 %317
  %v321 = vpack.c.bf16 %v295, %v295
  %v322 = vpack.c.bf16 %v304, %v304
  %v323 = vpack.c.bf16 %v310, %v310
  %v324 = vpack.c.bf16 %v316, %v316
  %v325 = vpack.c.bf16 %v298, %v298
  %v326 = vpack.c.bf16 %v306, %v306
  %v327 = vpack.c.bf16 %v312, %v312
  %v328 = vpack.c.bf16 %v318, %v318
  %330 = vrot.lane.b32.xlu0 %v321, 96
  %v331 = vpop.permute.xlu0 %330
  %vm332 = vcmask 64512
  %v334 = vsel %vm332, %v321, 0
  %v337 = vsel %vm332, %v331, 0
  %339 = vmatprep.subr.bf16.mxu0 0
  %340 = vmatpush1.bf16.xpose.msra.mxu0 %v337
  %341 = vmatprep.subr.bf16.mxu0 0
  %342 = vmatpush1.bf16.xpose.msra.mxu0 0
  %343 = vmatprep.subr.bf16.mxu0 0
  %344 = vmatpush1.bf16.xpose.msra.mxu0 0
  %345 = vmatprep.subr.bf16.mxu0 0
  %346 = vmatpush1.bf16.xpose.msra.mxu0 0
  %347 = vmatprep.subr.bf16.mxu0 0
  %348 = vmatpush1.bf16.xpose.msra.mxu0 0
  %349 = vmatprep.subr.bf16.mxu0 0
  %350 = vmatpush1.bf16.xpose.msra.mxu0 0
  %351 = vmatprep.subr.bf16.mxu0 0
  %352 = vmatpush1.bf16.xpose.msra.mxu0 0
  %353 = vmatprep.subr.bf16.mxu0 0
  %354 = vmatpush1.bf16.xpose.msra.mxu0 0
  %355 = vmatprep.subr.bf16.mxu0 0
  %356 = vmatpush1.bf16.xpose.msra.mxu0 0
  %357 = vmatprep.subr.bf16.mxu0 0
  %358 = vmatpush1.bf16.xpose.msra.mxu0 0
  %359 = vmatprep.subr.bf16.mxu0 0
  %360 = vmatpush1.bf16.xpose.msra.mxu0 0
  %361 = vmatprep.subr.bf16.mxu0 0
  %362 = vmatpush1.bf16.xpose.msra.mxu0 0
  %363 = vmatprep.subr.bf16.mxu0 0
  %364 = vmatpush1.bf16.xpose.msra.mxu0 0
  %365 = vmatprep.subr.bf16.mxu0 0
  %366 = vmatpush1.bf16.xpose.msra.mxu0 0
  %367 = vmatprep.subr.bf16.mxu0 0
  %368 = vmatpush1.bf16.xpose.msra.mxu0 0
  %369 = vmatprep.subr.bf16.mxu0 0
  %370 = vmatpush1.bf16.xpose.msra.mxu0 0
  %371 = vmatprep.mubr.bf16.mxu0 0
  %372 = vmatmul.mubr.bf16.gmra.mrb[0].mxu0 %v334
  %v373 = vpop.f32.mrb[0].mxu0
  %v374 = vadd.f32 0.0, %v373
  %v375 = vpop.f32.mrb[0].mxu0
  %v376 = vpop.f32.mrb[0].mxu0
  %v377 = vpop.f32.mrb[0].mxu0
  %378 = vdwg.mxu0
  %380 = vrot.lane.b32.xlu0 %v322, 96
  %v381 = vpop.permute.xlu0 %380
  %v383 = vsel %vm332, %v322, 0
  %v386 = vsel %vm332, %v381, 0
  %388 = vmatprep.subr.bf16.mxu0 0
  %389 = vmatpush1.bf16.xpose.msra.mxu0 %v386
  %390 = vmatprep.subr.bf16.mxu0 0
  %391 = vmatpush1.bf16.xpose.msra.mxu0 0
  %392 = vmatprep.subr.bf16.mxu0 0
  %393 = vmatpush1.bf16.xpose.msra.mxu0 0
  %394 = vmatprep.subr.bf16.mxu0 0
  %395 = vmatpush1.bf16.xpose.msra.mxu0 0
  %396 = vmatprep.subr.bf16.mxu0 0
  %397 = vmatpush1.bf16.xpose.msra.mxu0 0
  %398 = vmatprep.subr.bf16.mxu0 0
  %399 = vmatpush1.bf16.xpose.msra.mxu0 0
  %400 = vmatprep.subr.bf16.mxu0 0
  %401 = vmatpush1.bf16.xpose.msra.mxu0 0
  %402 = vmatprep.subr.bf16.mxu0 0
  %403 = vmatpush1.bf16.xpose.msra.mxu0 0
  %404 = vmatprep.subr.bf16.mxu0 0
  %405 = vmatpush1.bf16.xpose.msra.mxu0 0
  %406 = vmatprep.subr.bf16.mxu0 0
  %407 = vmatpush1.bf16.xpose.msra.mxu0 0
  %408 = vmatprep.subr.bf16.mxu0 0
  %409 = vmatpush1.bf16.xpose.msra.mxu0 0
  %410 = vmatprep.subr.bf16.mxu0 0
  %411 = vmatpush1.bf16.xpose.msra.mxu0 0
  %412 = vmatprep.subr.bf16.mxu0 0
  %413 = vmatpush1.bf16.xpose.msra.mxu0 0
  %414 = vmatprep.subr.bf16.mxu0 0
  %415 = vmatpush1.bf16.xpose.msra.mxu0 0
  %416 = vmatprep.subr.bf16.mxu0 0
  %417 = vmatpush1.bf16.xpose.msra.mxu0 0
  %418 = vmatprep.subr.bf16.mxu0 0
  %419 = vmatpush1.bf16.xpose.msra.mxu0 0
  %420 = vmatprep.mubr.bf16.mxu0 0
  %421 = vmatmul.mubr.bf16.gmra.mrb[0].mxu0 %v383
  %v422 = vpop.f32.mrb[0].mxu0
  %v423 = vadd.f32 0.0, %v422
  %v424 = vpop.f32.mrb[0].mxu0
  %v425 = vpop.f32.mrb[0].mxu0
  %v426 = vpop.f32.mrb[0].mxu0
  %427 = vdwg.mxu0
  %429 = vrot.lane.b32.xlu0 %v323, 96
  %v430 = vpop.permute.xlu0 %429
  %v432 = vsel %vm332, %v323, 0
  %v435 = vsel %vm332, %v430, 0
  %437 = vmatprep.subr.bf16.mxu0 0
  %438 = vmatpush1.bf16.xpose.msra.mxu0 %v435
  %439 = vmatprep.subr.bf16.mxu0 0
  %440 = vmatpush1.bf16.xpose.msra.mxu0 0
  %441 = vmatprep.subr.bf16.mxu0 0
  %442 = vmatpush1.bf16.xpose.msra.mxu0 0
  %443 = vmatprep.subr.bf16.mxu0 0
  %444 = vmatpush1.bf16.xpose.msra.mxu0 0
  %445 = vmatprep.subr.bf16.mxu0 0
  %446 = vmatpush1.bf16.xpose.msra.mxu0 0
  %447 = vmatprep.subr.bf16.mxu0 0
  %448 = vmatpush1.bf16.xpose.msra.mxu0 0
  %449 = vmatprep.subr.bf16.mxu0 0
  %450 = vmatpush1.bf16.xpose.msra.mxu0 0
  %451 = vmatprep.subr.bf16.mxu0 0
  %452 = vmatpush1.bf16.xpose.msra.mxu0 0
  %453 = vmatprep.subr.bf16.mxu0 0
  %454 = vmatpush1.bf16.xpose.msra.mxu0 0
  %455 = vmatprep.subr.bf16.mxu0 0
  %456 = vmatpush1.bf16.xpose.msra.mxu0 0
  %457 = vmatprep.subr.bf16.mxu0 0
  %458 = vmatpush1.bf16.xpose.msra.mxu0 0
  %459 = vmatprep.subr.bf16.mxu0 0
  %460 = vmatpush1.bf16.xpose.msra.mxu0 0
  %461 = vmatprep.subr.bf16.mxu0 0
  %462 = vmatpush1.bf16.xpose.msra.mxu0 0
  %463 = vmatprep.subr.bf16.mxu0 0
  %464 = vmatpush1.bf16.xpose.msra.mxu0 0
  %465 = vmatprep.subr.bf16.mxu0 0
  %466 = vmatpush1.bf16.xpose.msra.mxu0 0
  %467 = vmatprep.subr.bf16.mxu0 0
  %468 = vmatpush1.bf16.xpose.msra.mxu0 0
  %469 = vmatprep.mubr.bf16.mxu0 0
  %470 = vmatmul.mubr.bf16.gmra.mrb[0].mxu0 %v432
  %v471 = vpop.f32.mrb[0].mxu0
  %v472 = vadd.f32 0.0, %v471
  %v473 = vpop.f32.mrb[0].mxu0
  %v474 = vpop.f32.mrb[0].mxu0
  %v475 = vpop.f32.mrb[0].mxu0
  %476 = vdwg.mxu0
  %478 = vrot.lane.b32.xlu0 %v324, 96
  %v479 = vpop.permute.xlu0 %478
  %v481 = vsel %vm332, %v324, 0
  %v484 = vsel %vm332, %v479, 0
  %486 = vmatprep.subr.bf16.mxu0 0
  %487 = vmatpush1.bf16.xpose.msra.mxu0 %v484
  %488 = vmatprep.subr.bf16.mxu0 0
  %489 = vmatpush1.bf16.xpose.msra.mxu0 0
  %490 = vmatprep.subr.bf16.mxu0 0
  %491 = vmatpush1.bf16.xpose.msra.mxu0 0
  %492 = vmatprep.subr.bf16.mxu0 0
  %493 = vmatpush1.bf16.xpose.msra.mxu0 0
  %494 = vmatprep.subr.bf16.mxu0 0
  %495 = vmatpush1.bf16.xpose.msra.mxu0 0
  %496 = vmatprep.subr.bf16.mxu0 0
  %497 = vmatpush1.bf16.xpose.msra.mxu0 0
  %498 = vmatprep.subr.bf16.mxu0 0
  %499 = vmatpush1.bf16.xpose.msra.mxu0 0
  %500 = vmatprep.subr.bf16.mxu0 0
  %501 = vmatpush1.bf16.xpose.msra.mxu0 0
  %502 = vmatprep.subr.bf16.mxu0 0
  %503 = vmatpush1.bf16.xpose.msra.mxu0 0
  %504 = vmatprep.subr.bf16.mxu0 0
  %505 = vmatpush1.bf16.xpose.msra.mxu0 0
  %506 = vmatprep.subr.bf16.mxu0 0
  %507 = vmatpush1.bf16.xpose.msra.mxu0 0
  %508 = vmatprep.subr.bf16.mxu0 0
  %509 = vmatpush1.bf16.xpose.msra.mxu0 0
  %510 = vmatprep.subr.bf16.mxu0 0
  %511 = vmatpush1.bf16.xpose.msra.mxu0 0
  %512 = vmatprep.subr.bf16.mxu0 0
  %513 = vmatpush1.bf16.xpose.msra.mxu0 0
  %514 = vmatprep.subr.bf16.mxu0 0
  %515 = vmatpush1.bf16.xpose.msra.mxu0 0
  %516 = vmatprep.subr.bf16.mxu0 0
  %517 = vmatpush1.bf16.xpose.msra.mxu0 0
  %518 = vmatprep.mubr.bf16.mxu0 0
  %519 = vmatmul.mubr.bf16.gmra.mrb[0].mxu0 %v481
  %v520 = vpop.f32.mrb[0].mxu0
  %v521 = vadd.f32 0.0, %v520
  %v522 = vpop.f32.mrb[0].mxu0
  %v523 = vpop.f32.mrb[0].mxu0
  %v524 = vpop.f32.mrb[0].mxu0
  %525 = vdwg.mxu0
  %527 = vrot.lane.b32.xlu0 %v325, 96
  %v528 = vpop.permute.xlu0 %527
  %v530 = vsel %vm332, %v325, 0
  %v533 = vsel %vm332, %v528, 0
  %535 = vmatprep.subr.bf16.mxu0 0
  %536 = vmatpush1.bf16.xpose.msra.mxu0 %v533
  %537 = vmatprep.subr.bf16.mxu0 0
  %538 = vmatpush1.bf16.xpose.msra.mxu0 0
  %539 = vmatprep.subr.bf16.mxu0 0
  %540 = vmatpush1.bf16.xpose.msra.mxu0 0
  %541 = vmatprep.subr.bf16.mxu0 0
  %542 = vmatpush1.bf16.xpose.msra.mxu0 0
  %543 = vmatprep.subr.bf16.mxu0 0
  %544 = vmatpush1.bf16.xpose.msra.mxu0 0
  %545 = vmatprep.subr.bf16.mxu0 0
  %546 = vmatpush1.bf16.xpose.msra.mxu0 0
  %547 = vmatprep.subr.bf16.mxu0 0
  %548 = vmatpush1.bf16.xpose.msra.mxu0 0
  %549 = vmatprep.subr.bf16.mxu0 0
  %550 = vmatpush1.bf16.xpose.msra.mxu0 0
  %551 = vmatprep.subr.bf16.mxu0 0
  %552 = vmatpush1.bf16.xpose.msra.mxu0 0
  %553 = vmatprep.subr.bf16.mxu0 0
  %554 = vmatpush1.bf16.xpose.msra.mxu0 0
  %555 = vmatprep.subr.bf16.mxu0 0
  %556 = vmatpush1.bf16.xpose.msra.mxu0 0
  %557 = vmatprep.subr.bf16.mxu0 0
  %558 = vmatpush1.bf16.xpose.msra.mxu0 0
  %559 = vmatprep.subr.bf16.mxu0 0
  %560 = vmatpush1.bf16.xpose.msra.mxu0 0
  %561 = vmatprep.subr.bf16.mxu0 0
  %562 = vmatpush1.bf16.xpose.msra.mxu0 0
  %563 = vmatprep.subr.bf16.mxu0 0
  %564 = vmatpush1.bf16.xpose.msra.mxu0 0
  %565 = vmatprep.subr.bf16.mxu0 0
  %566 = vmatpush1.bf16.xpose.msra.mxu0 0
  %567 = vmatprep.mubr.bf16.mxu0 0
  %568 = vmatmul.mubr.bf16.gmra.mrb[0].mxu0 %v530
  %v569 = vpop.f32.mrb[0].mxu0
  %v570 = vadd.f32 0.0, %v569
  %v571 = vpop.f32.mrb[0].mxu0
  %v572 = vpop.f32.mrb[0].mxu0
  %v573 = vpop.f32.mrb[0].mxu0
  %574 = vdwg.mxu0
  %576 = vrot.lane.b32.xlu0 %v326, 96
  %v577 = vpop.permute.xlu0 %576
  %v579 = vsel %vm332, %v326, 0
  %v582 = vsel %vm332, %v577, 0
  %584 = vmatprep.subr.bf16.mxu0 0
  %585 = vmatpush1.bf16.xpose.msra.mxu0 %v582
  %586 = vmatprep.subr.bf16.mxu0 0
  %587 = vmatpush1.bf16.xpose.msra.mxu0 0
  %588 = vmatprep.subr.bf16.mxu0 0
  %589 = vmatpush1.bf16.xpose.msra.mxu0 0
  %590 = vmatprep.subr.bf16.mxu0 0
  %591 = vmatpush1.bf16.xpose.msra.mxu0 0
  %592 = vmatprep.subr.bf16.mxu0 0
  %593 = vmatpush1.bf16.xpose.msra.mxu0 0
  %594 = vmatprep.subr.bf16.mxu0 0
  %595 = vmatpush1.bf16.xpose.msra.mxu0 0
  %596 = vmatprep.subr.bf16.mxu0 0
  %597 = vmatpush1.bf16.xpose.msra.mxu0 0
  %598 = vmatprep.subr.bf16.mxu0 0
  %599 = vmatpush1.bf16.xpose.msra.mxu0 0
  %600 = vmatprep.subr.bf16.mxu0 0
  %601 = vmatpush1.bf16.xpose.msra.mxu0 0
  %602 = vmatprep.subr.bf16.mxu0 0
  %603 = vmatpush1.bf16.xpose.msra.mxu0 0
  %604 = vmatprep.subr.bf16.mxu0 0
  %605 = vmatpush1.bf16.xpose.msra.mxu0 0
  %606 = vmatprep.subr.bf16.mxu0 0
  %607 = vmatpush1.bf16.xpose.msra.mxu0 0
  %608 = vmatprep.subr.bf16.mxu0 0
  %609 = vmatpush1.bf16.xpose.msra.mxu0 0
  %610 = vmatprep.subr.bf16.mxu0 0
  %611 = vmatpush1.bf16.xpose.msra.mxu0 0
  %612 = vmatprep.subr.bf16.mxu0 0
  %613 = vmatpush1.bf16.xpose.msra.mxu0 0
  %614 = vmatprep.subr.bf16.mxu0 0
  %615 = vmatpush1.bf16.xpose.msra.mxu0 0
  %616 = vmatprep.mubr.bf16.mxu0 0
  %617 = vmatmul.mubr.bf16.gmra.mrb[0].mxu0 %v579
  %v618 = vpop.f32.mrb[0].mxu0
  %v619 = vadd.f32 0.0, %v618
  %v620 = vpop.f32.mrb[0].mxu0
  %v621 = vpop.f32.mrb[0].mxu0
  %v622 = vpop.f32.mrb[0].mxu0
  %623 = vdwg.mxu0
  %625 = vrot.lane.b32.xlu0 %v327, 96
  %v626 = vpop.permute.xlu0 %625
  %v628 = vsel %vm332, %v327, 0
  %v631 = vsel %vm332, %v626, 0
  %633 = vmatprep.subr.bf16.mxu0 0
  %634 = vmatpush1.bf16.xpose.msra.mxu0 %v631
  %635 = vmatprep.subr.bf16.mxu0 0
  %636 = vmatpush1.bf16.xpose.msra.mxu0 0
  %637 = vmatprep.subr.bf16.mxu0 0
  %638 = vmatpush1.bf16.xpose.msra.mxu0 0
  %639 = vmatprep.subr.bf16.mxu0 0
  %640 = vmatpush1.bf16.xpose.msra.mxu0 0
  %641 = vmatprep.subr.bf16.mxu0 0
  %642 = vmatpush1.bf16.xpose.msra.mxu0 0
  %643 = vmatprep.subr.bf16.mxu0 0
  %644 = vmatpush1.bf16.xpose.msra.mxu0 0
  %645 = vmatprep.subr.bf16.mxu0 0
  %646 = vmatpush1.bf16.xpose.msra.mxu0 0
  %647 = vmatprep.subr.bf16.mxu0 0
  %648 = vmatpush1.bf16.xpose.msra.mxu0 0
  %649 = vmatprep.subr.bf16.mxu0 0
  %650 = vmatpush1.bf16.xpose.msra.mxu0 0
  %651 = vmatprep.subr.bf16.mxu0 0
  %652 = vmatpush1.bf16.xpose.msra.mxu0 0
  %653 = vmatprep.subr.bf16.mxu0 0
  %654 = vmatpush1.bf16.xpose.msra.mxu0 0
  %655 = vmatprep.subr.bf16.mxu0 0
  %656 = vmatpush1.bf16.xpose.msra.mxu0 0
  %657 = vmatprep.subr.bf16.mxu0 0
  %658 = vmatpush1.bf16.xpose.msra.mxu0 0
  %659 = vmatprep.subr.bf16.mxu0 0
  %660 = vmatpush1.bf16.xpose.msra.mxu0 0
  %661 = vmatprep.subr.bf16.mxu0 0
  %662 = vmatpush1.bf16.xpose.msra.mxu0 0
  %663 = vmatprep.subr.bf16.mxu0 0
  %664 = vmatpush1.bf16.xpose.msra.mxu0 0
  %665 = vmatprep.mubr.bf16.mxu0 0
  %666 = vmatmul.mubr.bf16.gmra.mrb[0].mxu0 %v628
  %v667 = vpop.f32.mrb[0].mxu0
  %v668 = vadd.f32 0.0, %v667
  %v669 = vpop.f32.mrb[0].mxu0
  %v670 = vpop.f32.mrb[0].mxu0
  %v671 = vpop.f32.mrb[0].mxu0
  %672 = vdwg.mxu0
  %674 = vrot.lane.b32.xlu0 %v328, 96
  %v675 = vpop.permute.xlu0 %674
  %v677 = vsel %vm332, %v328, 0
  %v680 = vsel %vm332, %v675, 0
  %682 = vmatprep.subr.bf16.mxu0 0
  %683 = vmatpush1.bf16.xpose.msra.mxu0 %v680
  %684 = vmatprep.subr.bf16.mxu0 0
  %685 = vmatpush1.bf16.xpose.msra.mxu0 0
  %686 = vmatprep.subr.bf16.mxu0 0
  %687 = vmatpush1.bf16.xpose.msra.mxu0 0
  %688 = vmatprep.subr.bf16.mxu0 0
  %689 = vmatpush1.bf16.xpose.msra.mxu0 0
  %690 = vmatprep.subr.bf16.mxu0 0
  %691 = vmatpush1.bf16.xpose.msra.mxu0 0
  %692 = vmatprep.subr.bf16.mxu0 0
  %693 = vmatpush1.bf16.xpose.msra.mxu0 0
  %694 = vmatprep.subr.bf16.mxu0 0
  %695 = vmatpush1.bf16.xpose.msra.mxu0 0
  %696 = vmatprep.subr.bf16.mxu0 0
  %697 = vmatpush1.bf16.xpose.msra.mxu0 0
  %698 = vmatprep.subr.bf16.mxu0 0
  %699 = vmatpush1.bf16.xpose.msra.mxu0 0
  %700 = vmatprep.subr.bf16.mxu0 0
  %701 = vmatpush1.bf16.xpose.msra.mxu0 0
  %702 = vmatprep.subr.bf16.mxu0 0
  %703 = vmatpush1.bf16.xpose.msra.mxu0 0
  %704 = vmatprep.subr.bf16.mxu0 0
  %705 = vmatpush1.bf16.xpose.msra.mxu0 0
  %706 = vmatprep.subr.bf16.mxu0 0
  %707 = vmatpush1.bf16.xpose.msra.mxu0 0
  %708 = vmatprep.subr.bf16.mxu0 0
  %709 = vmatpush1.bf16.xpose.msra.mxu0 0
  %710 = vmatprep.subr.bf16.mxu0 0
  %711 = vmatpush1.bf16.xpose.msra.mxu0 0
  %712 = vmatprep.subr.bf16.mxu0 0
  %713 = vmatpush1.bf16.xpose.msra.mxu0 0
  %714 = vmatprep.mubr.bf16.mxu0 0
  %715 = vmatmul.mubr.bf16.gmra.mrb[0].mxu0 %v677
  %v716 = vpop.f32.mrb[0].mxu0
  %v717 = vadd.f32 0.0, %v716
  %v718 = vpop.f32.mrb[0].mxu0
  %v719 = vpop.f32.mrb[0].mxu0
  %v720 = vpop.f32.mrb[0].mxu0
  %721 = vdwg.mxu0
  %v722 = vmul.f32 %v374, 0.35355338
  %v723 = vmul.f32 %v423, 0.35355338
  %v724 = vmul.f32 %v472, 0.35355338
  %v725 = vmul.f32 %v521, 0.35355338
  %v726 = vmul.f32 %v570, 0.35355338
  %v727 = vmul.f32 %v619, 0.35355338
  %v728 = vmul.f32 %v668, 0.35355338
  %v729 = vmul.f32 %v717, 0.35355338
  %v730 = vlaneseq
  %v731 = vshrl.u32 %v730, 7
  %v732 = vsub.s32 0, %v731
  %v733 = vrot.slane %v208, %v732
  %v734 = vlaneseq
  %v735 = vshrl.u32 %v734, 7
  %v736 = vsub.s32 0, %v735
  %v737 = vrot.slane %v215, %v736
  %v740 = vadd.f32 %v722, %v733
  %v741 = vadd.f32 %v723, %v733
  %v742 = vadd.f32 %v724, %v733
  %v743 = vadd.f32 %v725, %v733
  %v744 = vadd.f32 %v726, %v737
  %v745 = vadd.f32 %v727, %v737
  %v746 = vadd.f32 %v728, %v737
  %v747 = vadd.f32 %v729, %v737
  %v748 = vsel %vm332, %v740, -inf
  %749 = vmax.xlane.f32.xlu0 %v748
  %v750 = vpop.xlane.xlu0 %749
  %v751 = vsel %vm332, %v741, -inf
  %752 = vmax.xlane.f32.xlu0 %v751
  %v753 = vpop.xlane.xlu0 %752
  %v754 = vsel %vm332, %v742, -inf
  %755 = vmax.xlane.f32.xlu0 %v754
  %v756 = vpop.xlane.xlu0 %755
  %v757 = vsel %vm332, %v743, -inf
  %758 = vmax.xlane.f32.xlu0 %v757
  %v759 = vpop.xlane.xlu0 %758
  %v760 = vsel %vm332, %v744, -inf
  %761 = vmax.xlane.f32.xlu0 %v760
  %v762 = vpop.xlane.xlu0 %761
  %v763 = vsel %vm332, %v745, -inf
  %764 = vmax.xlane.f32.xlu0 %v763
  %v765 = vpop.xlane.xlu0 %764
  %v766 = vsel %vm332, %v746, -inf
  %767 = vmax.xlane.f32.xlu0 %v766
  %v768 = vpop.xlane.xlu0 %767
  %v769 = vsel %vm332, %v747, -inf
  %770 = vmax.xlane.f32.xlu0 %v769
  %v771 = vpop.xlane.xlu0 %770
  %v772 = vsub.f32 %v740, %v750
  %v773 = vsub.f32 %v741, %v753
  %v774 = vsub.f32 %v742, %v756
  %v775 = vsub.f32 %v743, %v759
  %v776 = vsub.f32 %v744, %v762
  %v777 = vsub.f32 %v745, %v765
  %v778 = vsub.f32 %v746, %v768
  %v779 = vsub.f32 %v747, %v771
  %v780 = vmul.f32 %v772, 1.442695
  %v781 = vpow.pop %v780
  %v782 = vmul.f32 %v773, 1.442695
  %v783 = vpow.pop %v782
  %v784 = vmul.f32 %v774, 1.442695
  %v785 = vpow.pop %v784
  %v786 = vmul.f32 %v775, 1.442695
  %v787 = vpow.pop %v786
  %v788 = vmul.f32 %v776, 1.442695
  %v789 = vpow.pop %v788
  %v790 = vmul.f32 %v777, 1.442695
  %v791 = vpow.pop %v790
  %v792 = vmul.f32 %v778, 1.442695
  %v793 = vpow.pop %v792
  %v794 = vmul.f32 %v779, 1.442695
  %v795 = vpow.pop %v794
  %v796 = vsel %vm332, %v781, 0.0
  %797 = vadd.xlane.f32.xlu0 %v796
  %v798 = vpop.xlane.xlu0 %797
  %v799 = vsel %vm332, %v783, 0.0
  %800 = vadd.xlane.f32.xlu0 %v799
  %v801 = vpop.xlane.xlu0 %800
  %v802 = vsel %vm332, %v785, 0.0
  %803 = vadd.xlane.f32.xlu0 %v802
  %v804 = vpop.xlane.xlu0 %803
  %v805 = vsel %vm332, %v787, 0.0
  %806 = vadd.xlane.f32.xlu0 %v805
  %v807 = vpop.xlane.xlu0 %806
  %v808 = vsel %vm332, %v789, 0.0
  %809 = vadd.xlane.f32.xlu0 %v808
  %v810 = vpop.xlane.xlu0 %809
  %v811 = vsel %vm332, %v791, 0.0
  %812 = vadd.xlane.f32.xlu0 %v811
  %v813 = vpop.xlane.xlu0 %812
  %v814 = vsel %vm332, %v793, 0.0
  %815 = vadd.xlane.f32.xlu0 %v814
  %v816 = vpop.xlane.xlu0 %815
  %v817 = vsel %vm332, %v795, 0.0
  %818 = vadd.xlane.f32.xlu0 %v817
  %v819 = vpop.xlane.xlu0 %818
  %v820 = vrcp.pop %v798
  %v821 = vrcp.pop %v801
  %v822 = vrcp.pop %v804
  %v823 = vrcp.pop %v807
  %v824 = vrcp.pop %v810
  %v825 = vrcp.pop %v813
  %v826 = vrcp.pop %v816
  %v827 = vrcp.pop %v819
  %v828 = vmul.f32 %v781, %v820
  %v829 = vmul.f32 %v783, %v821
  %v830 = vmul.f32 %v785, %v822
  %v831 = vmul.f32 %v787, %v823
  %v832 = vmul.f32 %v789, %v824
  %v833 = vmul.f32 %v791, %v825
  %v834 = vmul.f32 %v793, %v826
  %v835 = vmul.f32 %v795, %v827
  %v836 = vpack.c.bf16 %v828, %v828
  %v837 = vpack.c.bf16 %v829, %v829
  %v838 = vpack.c.bf16 %v830, %v830
  %v839 = vpack.c.bf16 %v831, %v831
  %v840 = vpack.c.bf16 %v832, %v832
  %v841 = vpack.c.bf16 %v833, %v833
  %v842 = vpack.c.bf16 %v834, %v834
  %v843 = vpack.c.bf16 %v835, %v835
  %844 = vrot.lane.b32.xlu0 %v321, 64
  %v845 = vpop.permute.xlu0 %844
  %v847 = vsel %vm332, %v836, 0
  %vm849 = vcmask 1043456
  %v851 = vsel %vm849, %v845, 0
  %853 = vmatprep.subr.bf16.mxu0 0
  %854 = vmatpush1.bf16.msra.mxu0 %v851
  %855 = vmatprep.subr.bf16.mxu0 0
  %856 = vmatpush1.bf16.msra.mxu0 0
  %857 = vmatprep.subr.bf16.mxu0 0
  %858 = vmatpush1.bf16.msra.mxu0 0
  %859 = vmatprep.subr.bf16.mxu0 0
  %860 = vmatpush1.bf16.msra.mxu0 0
  %861 = vmatprep.subr.bf16.mxu0 0
  %862 = vmatpush1.bf16.msra.mxu0 0
  %863 = vmatprep.subr.bf16.mxu0 0
  %864 = vmatpush1.bf16.msra.mxu0 0
  %865 = vmatprep.subr.bf16.mxu0 0
  %866 = vmatpush1.bf16.msra.mxu0 0
  %867 = vmatprep.subr.bf16.mxu0 0
  %868 = vmatpush1.bf16.msra.mxu0 0
  %869 = vmatprep.subr.bf16.mxu0 0
  %870 = vmatpush1.bf16.msra.mxu0 0
  %871 = vmatprep.subr.bf16.mxu0 0
  %872 = vmatpush1.bf16.msra.mxu0 0
  %873 = vmatprep.subr.bf16.mxu0 0
  %874 = vmatpush1.bf16.msra.mxu0 0
  %875 = vmatprep.subr.bf16.mxu0 0
  %876 = vmatpush1.bf16.msra.mxu0 0
  %877 = vmatprep.subr.bf16.mxu0 0
  %878 = vmatpush1.bf16.msra.mxu0 0
  %879 = vmatprep.subr.bf16.mxu0 0
  %880 = vmatpush1.bf16.msra.mxu0 0
  %881 = vmatprep.subr.bf16.mxu0 0
  %882 = vmatpush1.bf16.msra.mxu0 0
  %883 = vmatprep.subr.bf16.mxu0 0
  %884 = vmatpush1.bf16.msra.mxu0 0
  %885 = vmatprep.mubr.bf16.mxu0 0
  %886 = vmatmul.mubr.bf16.gmra.mrb[0].mxu0 %v847
  %v887 = vpop.f32.mrb[0].mxu0
  %v888 = vadd.f32 0.0, %v887
  %v889 = vpop.f32.mrb[0].mxu0
  %v890 = vpop.f32.mrb[0].mxu0
  %v891 = vpop.f32.mrb[0].mxu0
  %892 = vdwg.mxu0
  %893 = vrot.lane.b32.xlu0 %v322, 64
  %v894 = vpop.permute.xlu0 %893
  %v896 = vsel %vm332, %v837, 0
  %v899 = vsel %vm849, %v894, 0
  %901 = vmatprep.subr.bf16.mxu0 0
  %902 = vmatpush1.bf16.msra.mxu0 %v899
  %903 = vmatprep.subr.bf16.mxu0 0
  %904 = vmatpush1.bf16.msra.mxu0 0
  %905 = vmatprep.subr.bf16.mxu0 0
  %906 = vmatpush1.bf16.msra.mxu0 0
  %907 = vmatprep.subr.bf16.mxu0 0
  %908 = vmatpush1.bf16.msra.mxu0 0
  %909 = vmatprep.subr.bf16.mxu0 0
  %910 = vmatpush1.bf16.msra.mxu0 0
  %911 = vmatprep.subr.bf16.mxu0 0
  %912 = vmatpush1.bf16.msra.mxu0 0
  %913 = vmatprep.subr.bf16.mxu0 0
  %914 = vmatpush1.bf16.msra.mxu0 0
  %915 = vmatprep.subr.bf16.mxu0 0
  %916 = vmatpush1.bf16.msra.mxu0 0
  %917 = vmatprep.subr.bf16.mxu0 0
  %918 = vmatpush1.bf16.msra.mxu0 0
  %919 = vmatprep.subr.bf16.mxu0 0
  %920 = vmatpush1.bf16.msra.mxu0 0
  %921 = vmatprep.subr.bf16.mxu0 0
  %922 = vmatpush1.bf16.msra.mxu0 0
  %923 = vmatprep.subr.bf16.mxu0 0
  %924 = vmatpush1.bf16.msra.mxu0 0
  %925 = vmatprep.subr.bf16.mxu0 0
  %926 = vmatpush1.bf16.msra.mxu0 0
  %927 = vmatprep.subr.bf16.mxu0 0
  %928 = vmatpush1.bf16.msra.mxu0 0
  %929 = vmatprep.subr.bf16.mxu0 0
  %930 = vmatpush1.bf16.msra.mxu0 0
  %931 = vmatprep.subr.bf16.mxu0 0
  %932 = vmatpush1.bf16.msra.mxu0 0
  %933 = vmatprep.mubr.bf16.mxu0 0
  %934 = vmatmul.mubr.bf16.gmra.mrb[0].mxu0 %v896
  %v935 = vpop.f32.mrb[0].mxu0
  %v936 = vadd.f32 0.0, %v935
  %v937 = vpop.f32.mrb[0].mxu0
  %v938 = vpop.f32.mrb[0].mxu0
  %v939 = vpop.f32.mrb[0].mxu0
  %940 = vdwg.mxu0
  %941 = vrot.lane.b32.xlu0 %v323, 64
  %v942 = vpop.permute.xlu0 %941
  %v944 = vsel %vm332, %v838, 0
  %v947 = vsel %vm849, %v942, 0
  %949 = vmatprep.subr.bf16.mxu0 0
  %950 = vmatpush1.bf16.msra.mxu0 %v947
  %951 = vmatprep.subr.bf16.mxu0 0
  %952 = vmatpush1.bf16.msra.mxu0 0
  %953 = vmatprep.subr.bf16.mxu0 0
  %954 = vmatpush1.bf16.msra.mxu0 0
  %955 = vmatprep.subr.bf16.mxu0 0
  %956 = vmatpush1.bf16.msra.mxu0 0
  %957 = vmatprep.subr.bf16.mxu0 0
  %958 = vmatpush1.bf16.msra.mxu0 0
  %959 = vmatprep.subr.bf16.mxu0 0
  %960 = vmatpush1.bf16.msra.mxu0 0
  %961 = vmatprep.subr.bf16.mxu0 0
  %962 = vmatpush1.bf16.msra.mxu0 0
  %963 = vmatprep.subr.bf16.mxu0 0
  %964 = vmatpush1.bf16.msra.mxu0 0
  %965 = vmatprep.subr.bf16.mxu0 0
  %966 = vmatpush1.bf16.msra.mxu0 0
  %967 = vmatprep.subr.bf16.mxu0 0
  %968 = vmatpush1.bf16.msra.mxu0 0
  %969 = vmatprep.subr.bf16.mxu0 0
  %970 = vmatpush1.bf16.msra.mxu0 0
  %971 = vmatprep.subr.bf16.mxu0 0
  %972 = vmatpush1.bf16.msra.mxu0 0
  %973 = vmatprep.subr.bf16.mxu0 0
  %974 = vmatpush1.bf16.msra.mxu0 0
  %975 = vmatprep.subr.bf16.mxu0 0
  %976 = vmatpush1.bf16.msra.mxu0 0
  %977 = vmatprep.subr.bf16.mxu0 0
  %978 = vmatpush1.bf16.msra.mxu0 0
  %979 = vmatprep.subr.bf16.mxu0 0
  %980 = vmatpush1.bf16.msra.mxu0 0
  %981 = vmatprep.mubr.bf16.mxu0 0
  %982 = vmatmul.mubr.bf16.gmra.mrb[0].mxu0 %v944
  %v983 = vpop.f32.mrb[0].mxu0
  %v984 = vadd.f32 0.0, %v983
  %v985 = vpop.f32.mrb[0].mxu0
  %v986 = vpop.f32.mrb[0].mxu0
  %v987 = vpop.f32.mrb[0].mxu0
  %988 = vdwg.mxu0
  %989 = vrot.lane.b32.xlu0 %v324, 64
  %v990 = vpop.permute.xlu0 %989
  %v992 = vsel %vm332, %v839, 0
  %v995 = vsel %vm849, %v990, 0
  %997 = vmatprep.subr.bf16.mxu0 0
  %998 = vmatpush1.bf16.msra.mxu0 %v995
  %999 = vmatprep.subr.bf16.mxu0 0
  %1000 = vmatpush1.bf16.msra.mxu0 0
  %1001 = vmatprep.subr.bf16.mxu0 0
  %1002 = vmatpush1.bf16.msra.mxu0 0
  %1003 = vmatprep.subr.bf16.mxu0 0
  %1004 = vmatpush1.bf16.msra.mxu0 0
  %1005 = vmatprep.subr.bf16.mxu0 0
  %1006 = vmatpush1.bf16.msra.mxu0 0
  %1007 = vmatprep.subr.bf16.mxu0 0
  %1008 = vmatpush1.bf16.msra.mxu0 0
  %1009 = vmatprep.subr.bf16.mxu0 0
  %1010 = vmatpush1.bf16.msra.mxu0 0
  %1011 = vmatprep.subr.bf16.mxu0 0
  %1012 = vmatpush1.bf16.msra.mxu0 0
  %1013 = vmatprep.subr.bf16.mxu0 0
  %1014 = vmatpush1.bf16.msra.mxu0 0
  %1015 = vmatprep.subr.bf16.mxu0 0
  %1016 = vmatpush1.bf16.msra.mxu0 0
  %1017 = vmatprep.subr.bf16.mxu0 0
  %1018 = vmatpush1.bf16.msra.mxu0 0
  %1019 = vmatprep.subr.bf16.mxu0 0
  %1020 = vmatpush1.bf16.msra.mxu0 0
  %1021 = vmatprep.subr.bf16.mxu0 0
  %1022 = vmatpush1.bf16.msra.mxu0 0
  %1023 = vmatprep.subr.bf16.mxu0 0
  %1024 = vmatpush1.bf16.msra.mxu0 0
  %1025 = vmatprep.subr.bf16.mxu0 0
  %1026 = vmatpush1.bf16.msra.mxu0 0
  %1027 = vmatprep.subr.bf16.mxu0 0
  %1028 = vmatpush1.bf16.msra.mxu0 0
  %1029 = vmatprep.mubr.bf16.mxu0 0
  %1030 = vmatmul.mubr.bf16.gmra.mrb[0].mxu0 %v992
  %v1031 = vpop.f32.mrb[0].mxu0
  %v1032 = vadd.f32 0.0, %v1031
  %v1033 = vpop.f32.mrb[0].mxu0
  %v1034 = vpop.f32.mrb[0].mxu0
  %v1035 = vpop.f32.mrb[0].mxu0
  %1036 = vdwg.mxu0
  %1037 = vrot.lane.b32.xlu0 %v325, 64
  %v1038 = vpop.permute.xlu0 %1037
  %v1040 = vsel %vm332, %v840, 0
  %v1043 = vsel %vm849, %v1038, 0
  %1045 = vmatprep.subr.bf16.mxu0 0
  %1046 = vmatpush1.bf16.msra.mxu0 %v1043
  %1047 = vmatprep.subr.bf16.mxu0 0
  %1048 = vmatpush1.bf16.msra.mxu0 0
  %1049 = vmatprep.subr.bf16.mxu0 0
  %1050 = vmatpush1.bf16.msra.mxu0 0
  %1051 = vmatprep.subr.bf16.mxu0 0
  %1052 = vmatpush1.bf16.msra.mxu0 0
  %1053 = vmatprep.subr.bf16.mxu0 0
  %1054 = vmatpush1.bf16.msra.mxu0 0
  %1055 = vmatprep.subr.bf16.mxu0 0
  %1056 = vmatpush1.bf16.msra.mxu0 0
  %1057 = vmatprep.subr.bf16.mxu0 0
  %1058 = vmatpush1.bf16.msra.mxu0 0
  %1059 = vmatprep.subr.bf16.mxu0 0
  %1060 = vmatpush1.bf16.msra.mxu0 0
  %1061 = vmatprep.subr.bf16.mxu0 0
  %1062 = vmatpush1.bf16.msra.mxu0 0
  %1063 = vmatprep.subr.bf16.mxu0 0
  %1064 = vmatpush1.bf16.msra.mxu0 0
  %1065 = vmatprep.subr.bf16.mxu0 0
  %1066 = vmatpush1.bf16.msra.mxu0 0
  %1067 = vmatprep.subr.bf16.mxu0 0
  %1068 = vmatpush1.bf16.msra.mxu0 0
  %1069 = vmatprep.subr.bf16.mxu0 0
  %1070 = vmatpush1.bf16.msra.mxu0 0
  %1071 = vmatprep.subr.bf16.mxu0 0
  %1072 = vmatpush1.bf16.msra.mxu0 0
  %1073 = vmatprep.subr.bf16.mxu0 0
  %1074 = vmatpush1.bf16.msra.mxu0 0
  %1075 = vmatprep.subr.bf16.mxu0 0
  %1076 = vmatpush1.bf16.msra.mxu0 0
  %1077 = vmatprep.mubr.bf16.mxu0 0
  %1078 = vmatmul.mubr.bf16.gmra.mrb[0].mxu0 %v1040
  %v1079 = vpop.f32.mrb[0].mxu0
  %v1080 = vadd.f32 0.0, %v1079
  %v1081 = vpop.f32.mrb[0].mxu0
  %v1082 = vpop.f32.mrb[0].mxu0
  %v1083 = vpop.f32.mrb[0].mxu0
  %1084 = vdwg.mxu0
  %1085 = vrot.lane.b32.xlu0 %v326, 64
  %v1086 = vpop.permute.xlu0 %1085
  %v1088 = vsel %vm332, %v841, 0
  %v1091 = vsel %vm849, %v1086, 0
  %1093 = vmatprep.subr.bf16.mxu0 0
  %1094 = vmatpush1.bf16.msra.mxu0 %v1091
  %1095 = vmatprep.subr.bf16.mxu0 0
  %1096 = vmatpush1.bf16.msra.mxu0 0
  %1097 = vmatprep.subr.bf16.mxu0 0
  %1098 = vmatpush1.bf16.msra.mxu0 0
  %1099 = vmatprep.subr.bf16.mxu0 0
  %1100 = vmatpush1.bf16.msra.mxu0 0
  %1101 = vmatprep.subr.bf16.mxu0 0
  %1102 = vmatpush1.bf16.msra.mxu0 0
  %1103 = vmatprep.subr.bf16.mxu0 0
  %1104 = vmatpush1.bf16.msra.mxu0 0
  %1105 = vmatprep.subr.bf16.mxu0 0
  %1106 = vmatpush1.bf16.msra.mxu0 0
  %1107 = vmatprep.subr.bf16.mxu0 0
  %1108 = vmatpush1.bf16.msra.mxu0 0
  %1109 = vmatprep.subr.bf16.mxu0 0
  %1110 = vmatpush1.bf16.msra.mxu0 0
  %1111 = vmatprep.subr.bf16.mxu0 0
  %1112 = vmatpush1.bf16.msra.mxu0 0
  %1113 = vmatprep.subr.bf16.mxu0 0
  %1114 = vmatpush1.bf16.msra.mxu0 0
  %1115 = vmatprep.subr.bf16.mxu0 0
  %1116 = vmatpush1.bf16.msra.mxu0 0
  %1117 = vmatprep.subr.bf16.mxu0 0
  %1118 = vmatpush1.bf16.msra.mxu0 0
  %1119 = vmatprep.subr.bf16.mxu0 0
  %1120 = vmatpush1.bf16.msra.mxu0 0
  %1121 = vmatprep.subr.bf16.mxu0 0
  %1122 = vmatpush1.bf16.msra.mxu0 0
  %1123 = vmatprep.subr.bf16.mxu0 0
  %1124 = vmatpush1.bf16.msra.mxu0 0
  %1125 = vmatprep.mubr.bf16.mxu0 0
  %1126 = vmatmul.mubr.bf16.gmra.mrb[0].mxu0 %v1088
  %v1127 = vpop.f32.mrb[0].mxu0
  %v1128 = vadd.f32 0.0, %v1127
  %v1129 = vpop.f32.mrb[0].mxu0
  %v1130 = vpop.f32.mrb[0].mxu0
  %v1131 = vpop.f32.mrb[0].mxu0
  %1132 = vdwg.mxu0
  %1133 = vrot.lane.b32.xlu0 %v327, 64
  %v1134 = vpop.permute.xlu0 %1133
  %v1136 = vsel %vm332, %v842, 0
  %v1139 = vsel %vm849, %v1134, 0
  %1141 = vmatprep.subr.bf16.mxu0 0
  %1142 = vmatpush1.bf16.msra.mxu0 %v1139
  %1143 = vmatprep.subr.bf16.mxu0 0
  %1144 = vmatpush1.bf16.msra.mxu0 0
  %1145 = vmatprep.subr.bf16.mxu0 0
  %1146 = vmatpush1.bf16.msra.mxu0 0
  %1147 = vmatprep.subr.bf16.mxu0 0
  %1148 = vmatpush1.bf16.msra.mxu0 0
  %1149 = vmatprep.subr.bf16.mxu0 0
  %1150 = vmatpush1.bf16.msra.mxu0 0
  %1151 = vmatprep.subr.bf16.mxu0 0
  %1152 = vmatpush1.bf16.msra.mxu0 0
  %1153 = vmatprep.subr.bf16.mxu0 0
  %1154 = vmatpush1.bf16.msra.mxu0 0
  %1155 = vmatprep.subr.bf16.mxu0 0
  %1156 = vmatpush1.bf16.msra.mxu0 0
  %1157 = vmatprep.subr.bf16.mxu0 0
  %1158 = vmatpush1.bf16.msra.mxu0 0
  %1159 = vmatprep.subr.bf16.mxu0 0
  %1160 = vmatpush1.bf16.msra.mxu0 0
  %1161 = vmatprep.subr.bf16.mxu0 0
  %1162 = vmatpush1.bf16.msra.mxu0 0
  %1163 = vmatprep.subr.bf16.mxu0 0
  %1164 = vmatpush1.bf16.msra.mxu0 0
  %1165 = vmatprep.subr.bf16.mxu0 0
  %1166 = vmatpush1.bf16.msra.mxu0 0
  %1167 = vmatprep.subr.bf16.mxu0 0
  %1168 = vmatpush1.bf16.msra.mxu0 0
  %1169 = vmatprep.subr.bf16.mxu0 0
  %1170 = vmatpush1.bf16.msra.mxu0 0
  %1171 = vmatprep.subr.bf16.mxu0 0
  %1172 = vmatpush1.bf16.msra.mxu0 0
  %1173 = vmatprep.mubr.bf16.mxu0 0
  %1174 = vmatmul.mubr.bf16.gmra.mrb[0].mxu0 %v1136
  %v1175 = vpop.f32.mrb[0].mxu0
  %v1176 = vadd.f32 0.0, %v1175
  %v1177 = vpop.f32.mrb[0].mxu0
  %v1178 = vpop.f32.mrb[0].mxu0
  %v1179 = vpop.f32.mrb[0].mxu0
  %1180 = vdwg.mxu0
  %1181 = vrot.lane.b32.xlu0 %v328, 64
  %v1182 = vpop.permute.xlu0 %1181
  %v1184 = vsel %vm332, %v843, 0
  %v1187 = vsel %vm849, %v1182, 0
  %1189 = vmatprep.subr.bf16.mxu0 0
  %1190 = vmatpush1.bf16.msra.mxu0 %v1187
  %1191 = vmatprep.subr.bf16.mxu0 0
  %1192 = vmatpush1.bf16.msra.mxu0 0
  %1193 = vmatprep.subr.bf16.mxu0 0
  %1194 = vmatpush1.bf16.msra.mxu0 0
  %1195 = vmatprep.subr.bf16.mxu0 0
  %1196 = vmatpush1.bf16.msra.mxu0 0
  %1197 = vmatprep.subr.bf16.mxu0 0
  %1198 = vmatpush1.bf16.msra.mxu0 0
  %1199 = vmatprep.subr.bf16.mxu0 0
  %1200 = vmatpush1.bf16.msra.mxu0 0
  %1201 = vmatprep.subr.bf16.mxu0 0
  %1202 = vmatpush1.bf16.msra.mxu0 0
  %1203 = vmatprep.subr.bf16.mxu0 0
  %1204 = vmatpush1.bf16.msra.mxu0 0
  %1205 = vmatprep.subr.bf16.mxu0 0
  %1206 = vmatpush1.bf16.msra.mxu0 0
  %1207 = vmatprep.subr.bf16.mxu0 0
  %1208 = vmatpush1.bf16.msra.mxu0 0
  %1209 = vmatprep.subr.bf16.mxu0 0
  %1210 = vmatpush1.bf16.msra.mxu0 0
  %1211 = vmatprep.subr.bf16.mxu0 0
  %1212 = vmatpush1.bf16.msra.mxu0 0
  %1213 = vmatprep.subr.bf16.mxu0 0
  %1214 = vmatpush1.bf16.msra.mxu0 0
  %1215 = vmatprep.subr.bf16.mxu0 0
  %1216 = vmatpush1.bf16.msra.mxu0 0
  %1217 = vmatprep.subr.bf16.mxu0 0
  %1218 = vmatpush1.bf16.msra.mxu0 0
  %1219 = vmatprep.subr.bf16.mxu0 0
  %1220 = vmatpush1.bf16.msra.mxu0 0
  %1221 = vmatprep.mubr.bf16.mxu0 0
  %1222 = vmatmul.mubr.bf16.gmra.mrb[0].mxu0 %v1184
  %v1223 = vpop.f32.mrb[0].mxu0
  %v1224 = vadd.f32 0.0, %v1223
  %v1225 = vpop.f32.mrb[0].mxu0
  %v1226 = vpop.f32.mrb[0].mxu0
  %v1227 = vpop.f32.mrb[0].mxu0
  %1228 = vdwg.mxu0
  %1231 = vrot.lane.b32.xlu0 %v936, 8
  %v1232 = vpop.permute.xlu0 %1231
  %1233 = vrot.lane.b32.xlu0 %v1128, 8
  %v1234 = vpop.permute.xlu0 %1233
  %1239 = vrot.lane.b32.xlu0 %v984, 16
  %v1240 = vpop.permute.xlu0 %1239
  %1241 = vrot.lane.b32.xlu0 %v1176, 16
  %v1242 = vpop.permute.xlu0 %1241
  %1247 = vrot.lane.b32.xlu0 %v1032, 24
  %v1248 = vpop.permute.xlu0 %1247
  %1249 = vrot.lane.b32.xlu0 %v1224, 24
  %v1250 = vpop.permute.xlu0 %1249
  %v1253 = vsel %vm332, %v888, %v1232
  %v1254 = vsel %vm332, %v1080, %v1234
  %vm1255 = vcmask 130048
  %v1256 = vsel %vm1255, %v1253, %v1240
  %v1257 = vsel %vm1255, %v1254, %v1242
  %vm1258 = vcmask 195584
  %v1259 = vsel %vm1258, %v1256, %v1248
  %v1260 = vsel %vm1258, %v1257, %v1250
  %v1261 = vpack.c.bf16 %v1260, %v1259
  %v1262 = vlaneseq
  %v1263 = vshrl.u32 %v1262, 7
  %v1264 = vsub.s32 0, %v1263
  %v1265 = vrot.slane %v233, %v1264
  %1266 = vrot.lane.b32.xlu0 %v253, 32
  %v1267 = vpop.permute.xlu0 %1266
  %1268 = vrot.lane.b32.xlu0 %v254, 32
  %v1269 = vpop.permute.xlu0 %1268
  %v1273 = vsel %vm152, %v1261, 0
  %1275 = vmatprep.subr.bf16.mxu0 0
  %1276 = vmatpush1.bf16.msra.mxu0 %v1267
  %1277 = vmatprep.subr.bf16.mxu0 0
  %1278 = vmatpush1.bf16.msra.mxu0 %v1269
  %1279 = vmatprep.subr.bf16.mxu0 0
  %1280 = vmatpush1.bf16.msra.mxu0 0
  %1281 = vmatprep.subr.bf16.mxu0 0
  %1282 = vmatpush1.bf16.msra.mxu0 0
  %1283 = vmatprep.subr.bf16.mxu0 0
  %1284 = vmatpush1.bf16.msra.mxu0 0
  %1285 = vmatprep.subr.bf16.mxu0 0
  %1286 = vmatpush1.bf16.msra.mxu0 0
  %1287 = vmatprep.subr.bf16.mxu0 0
  %1288 = vmatpush1.bf16.msra.mxu0 0
  %1289 = vmatprep.subr.bf16.mxu0 0
  %1290 = vmatpush1.bf16.msra.mxu0 0
  %1291 = vmatprep.subr.bf16.mxu0 0
  %1292 = vmatpush1.bf16.msra.mxu0 0
  %1293 = vmatprep.subr.bf16.mxu0 0
  %1294 = vmatpush1.bf16.msra.mxu0 0
  %1295 = vmatprep.subr.bf16.mxu0 0
  %1296 = vmatpush1.bf16.msra.mxu0 0
  %1297 = vmatprep.subr.bf16.mxu0 0
  %1298 = vmatpush1.bf16.msra.mxu0 0
  %1299 = vmatprep.subr.bf16.mxu0 0
  %1300 = vmatpush1.bf16.msra.mxu0 0
  %1301 = vmatprep.subr.bf16.mxu0 0
  %1302 = vmatpush1.bf16.msra.mxu0 0
  %1303 = vmatprep.subr.bf16.mxu0 0
  %1304 = vmatpush1.bf16.msra.mxu0 0
  %1305 = vmatprep.subr.bf16.mxu0 0
  %1306 = vmatpush1.bf16.msra.mxu0 0
  %1307 = vmatprep.mubr.bf16.mxu0 0
  %1308 = vmatmul.mubr.bf16.gmra.mrb[0].mxu0 %v1273
  %v1309 = vpop.f32.mrb[0].mxu0
  %v1310 = vadd.f32 %v1265, %v1309
  %v1311 = vpop.f32.mrb[0].mxu0
  %v1312 = vpop.f32.mrb[0].mxu0
  %v1313 = vadd.f32 %v1265, %v1312
  %v1314 = vpop.f32.mrb[0].mxu0
  %1315 = vdwg.mxu0
  %v1316 = vadd.f32 %v190, %v1310
  %v1317 = vadd.f32 %v191, %v1313
  %v1318 = vsel %vm152, %v1316, 0.0
  %1319 = vadd.xlane.f32.xlu0 %v1318
  %v1320 = vpop.xlane.xlu0 %1319
  %v1321 = vsel %vm152, %v1317, 0.0
  %1322 = vadd.xlane.f32.xlu0 %v1321
  %v1323 = vpop.xlane.xlu0 %1322
  %v1324 = vmul.f32 %v1320, %v159
  %v1325 = vmul.f32 %v1323, %v159
  %v1326 = vsub.f32 %v1316, %v1324
  %v1327 = vsub.f32 %v1317, %v1325
  %v1328 = vmul.f32 %v1326, %v1326
  %v1329 = vmul.f32 %v1327, %v1327
  %v1330 = vsel %vm152, %v1328, 0.0
  %1331 = vadd.xlane.f32.xlu0 %v1330
  %v1332 = vpop.xlane.xlu0 %1331
  %v1333 = vsel %vm152, %v1329, 0.0
  %1334 = vadd.xlane.f32.xlu0 %v1333
  %v1335 = vpop.xlane.xlu0 %1334
  %v1336 = vmul.f32 %v1332, %v159
  %v1337 = vmul.f32 %v1335, %v159
  %v1338 = vadd.f32 %v1336, 1e-12
  %v1339 = vadd.f32 %v1337, 1e-12
  %v1340 = vrsqrt.pop %v1338
  %v1341 = vrsqrt.pop %v1339
  %v1342 = vmul.f32 %v1326, %v1340
  %v1343 = vmul.f32 %v1327, %v1341
  %v1344 = vlaneseq
  %v1345 = vshrl.u32 %v1344, 7
  %v1346 = vsub.s32 0, %v1345
  %v1347 = vrot.slane %v234, %v1346
  %v1348 = vmul.f32 %v1342, %v1347
  %v1349 = vmul.f32 %v1343, %v1347
  %v1350 = vlaneseq
  %v1351 = vshrl.u32 %v1350, 7
  %v1352 = vsub.s32 0, %v1351
  %v1353 = vrot.slane %v235, %v1352
  %v1354 = vadd.f32 %v1348, %v1353
  %v1355 = vadd.f32 %v1349, %v1353
  %v1356 = vpack.c.bf16 %v1355, %v1354
  %v1357 = vlaneseq
  %v1358 = vshrl.u32 %v1357, 7
  %v1359 = vsub.s32 0, %v1358
  %v1360 = vrot.slane %v236, %v1359
  %v1365 = vunpack.c.l.b16 %v220
  %v1366 = vunpack.c.l.b16 %v221
  %v1367 = vunpack.c.l.b16 %v222
  %v1368 = vunpack.c.l.b16 %v223
  %v1369 = vpack.c.b16 %v1366, %v1365
  %v1370 = vpack.c.b16 %v1368, %v1367
  %v1374 = vsel %vm152, %v1356, 0
  %1376 = vmatprep.subr.bf16.mxu0 0
  %1377 = vmatpush1.bf16.msra.mxu0 %v1369
  %1378 = vmatprep.subr.bf16.mxu0 0
  %1379 = vmatpush1.bf16.msra.mxu0 %v1370
  %1380 = vmatprep.subr.bf16.mxu0 0
  %1381 = vmatpush1.bf16.msra.mxu0 0
  %1382 = vmatprep.subr.bf16.mxu0 0
  %1383 = vmatpush1.bf16.msra.mxu0 0
  %1384 = vmatprep.subr.bf16.mxu0 0
  %1385 = vmatpush1.bf16.msra.mxu0 0
  %1386 = vmatprep.subr.bf16.mxu0 0
  %1387 = vmatpush1.bf16.msra.mxu0 0
  %1388 = vmatprep.subr.bf16.mxu0 0
  %1389 = vmatpush1.bf16.msra.mxu0 0
  %1390 = vmatprep.subr.bf16.mxu0 0
  %1391 = vmatpush1.bf16.msra.mxu0 0
  %1392 = vmatprep.subr.bf16.mxu0 0
  %1393 = vmatpush1.bf16.msra.mxu0 0
  %1394 = vmatprep.subr.bf16.mxu0 0
  %1395 = vmatpush1.bf16.msra.mxu0 0
  %1396 = vmatprep.subr.bf16.mxu0 0
  %1397 = vmatpush1.bf16.msra.mxu0 0
  %1398 = vmatprep.subr.bf16.mxu0 0
  %1399 = vmatpush1.bf16.msra.mxu0 0
  %1400 = vmatprep.subr.bf16.mxu0 0
  %1401 = vmatpush1.bf16.msra.mxu0 0
  %1402 = vmatprep.subr.bf16.mxu0 0
  %1403 = vmatpush1.bf16.msra.mxu0 0
  %1404 = vmatprep.subr.bf16.mxu0 0
  %1405 = vmatpush1.bf16.msra.mxu0 0
  %1406 = vmatprep.subr.bf16.mxu0 0
  %1407 = vmatpush1.bf16.msra.mxu0 0
  %1408 = vmatprep.mubr.bf16.mxu0 0
  %1409 = vmatmul.mubr.bf16.gmra.mrb[0].mxu0 %v1374
  %v1410 = vpop.f32.mrb[0].mxu0
  %v1411 = vadd.f32 %v1360, %v1410
  %v1412 = vpop.f32.mrb[0].mxu0
  %v1413 = vpop.f32.mrb[0].mxu0
  %v1414 = vadd.f32 %v1360, %v1413
  %v1415 = vpop.f32.mrb[0].mxu0
  %1416 = vdwg.mxu0
  %v1417 = vmul.f32 %v1411, 0.5
  %v1418 = vmul.f32 %v1414, 0.5
  %v1419 = vmul.f32 %v1411, 0.044715
  %v1420 = vmul.f32 %v1414, 0.044715
  %v1421 = vmul.f32 %v1419, %v1411
  %v1422 = vmul.f32 %v1420, %v1414
  %v1423 = vmul.f32 %v1421, %v1411
  %v1424 = vmul.f32 %v1422, %v1414
  %v1425 = vadd.f32 %v1411, %v1423
  %v1426 = vadd.f32 %v1414, %v1424
  %v1427 = vmul.f32 %v1425, 0.7978846
  %v1428 = vmul.f32 %v1426, 0.7978846
  %v1429 = vtanh.pop %v1427
  %v1430 = vtanh.pop %v1428
  %v1431 = vadd.f32 %v1429, 1.0
  %v1432 = vadd.f32 %v1430, 1.0
  %v1433 = vmul.f32 %v1417, %v1431
  %v1434 = vmul.f32 %v1418, %v1432
  %v1435 = vpack.c.bf16 %v1434, %v1433
  %v1436 = vlaneseq
  %v1437 = vshrl.u32 %v1436, 7
  %v1438 = vsub.s32 0, %v1437
  %v1439 = vrot.slane %v237, %v1438
  %v1448 = vunpack.c.l.b16 %v224
  %v1449 = vunpack.c.l.b16 %v225
  %v1450 = vunpack.c.l.b16 %v226
  %v1451 = vunpack.c.l.b16 %v227
  %v1452 = vunpack.c.l.b16 %v228
  %v1453 = vunpack.c.l.b16 %v229
  %v1454 = vunpack.c.l.b16 %v230
  %v1455 = vunpack.c.l.b16 %v231
  %v1456 = vpack.c.b16 %v1449, %v1448
  %v1457 = vpack.c.b16 %v1451, %v1450
  %v1458 = vpack.c.b16 %v1453, %v1452
  %v1459 = vpack.c.b16 %v1455, %v1454
  %vm1464 = vcmask 523264
  %v1466 = vsel %vm1464, %v1435, 0
  %1468 = vmatprep.subr.bf16.mxu0 0
  %1469 = vmatpush1.bf16.msra.mxu0 %v1456
  %1470 = vmatprep.subr.bf16.mxu0 0
  %1471 = vmatpush1.bf16.msra.mxu0 %v1457
  %1472 = vmatprep.subr.bf16.mxu0 0
  %1473 = vmatpush1.bf16.msra.mxu0 %v1458
  %1474 = vmatprep.subr.bf16.mxu0 0
  %1475 = vmatpush1.bf16.msra.mxu0 %v1459
  %1476 = vmatprep.subr.bf16.mxu0 0
  %1477 = vmatpush1.bf16.msra.mxu0 0
  %1478 = vmatprep.subr.bf16.mxu0 0
  %1479 = vmatpush1.bf16.msra.mxu0 0
  %1480 = vmatprep.subr.bf16.mxu0 0
  %1481 = vmatpush1.bf16.msra.mxu0 0
  %1482 = vmatprep.subr.bf16.mxu0 0
  %1483 = vmatpush1.bf16.msra.mxu0 0
  %1484 = vmatprep.subr.bf16.mxu0 0
  %1485 = vmatpush1.bf16.msra.mxu0 0
  %1486 = vmatprep.subr.bf16.mxu0 0
  %1487 = vmatpush1.bf16.msra.mxu0 0
  %1488 = vmatprep.subr.bf16.mxu0 0
  %1489 = vmatpush1.bf16.msra.mxu0 0
  %1490 = vmatprep.subr.bf16.mxu0 0
  %1491 = vmatpush1.bf16.msra.mxu0 0
  %1492 = vmatprep.subr.bf16.mxu0 0
  %1493 = vmatpush1.bf16.msra.mxu0 0
  %1494 = vmatprep.subr.bf16.mxu0 0
  %1495 = vmatpush1.bf16.msra.mxu0 0
  %1496 = vmatprep.subr.bf16.mxu0 0
  %1497 = vmatpush1.bf16.msra.mxu0 0
  %1498 = vmatprep.subr.bf16.mxu0 0
  %1499 = vmatpush1.bf16.msra.mxu0 0
  %1500 = vmatprep.mubr.bf16.mxu0 0
  %1501 = vmatmul.mubr.bf16.gmra.mrb[0].mxu0 %v1466
  %v1502 = vpop.f32.mrb[0].mxu0
  %v1503 = vadd.f32 %v1439, %v1502
  %v1504 = vpop.f32.mrb[0].mxu0
  %v1505 = vpop.f32.mrb[0].mxu0
  %v1506 = vadd.f32 %v1439, %v1505
  %v1507 = vpop.f32.mrb[0].mxu0
  %1508 = vdwg.mxu0
  %v1509 = vadd.f32 %v1354, %v1503
  %v1510 = vadd.f32 %v1355, %v1506
  %v1511 = vsel %vm152, %v1509, 0.0
  %1512 = vadd.xlane.f32.xlu0 %v1511
  %v1513 = vpop.xlane.xlu0 %1512
  %v1514 = vsel %vm152, %v1510, 0.0
  %1515 = vadd.xlane.f32.xlu0 %v1514
  %v1516 = vpop.xlane.xlu0 %1515
  %v1517 = vmul.f32 %v1513, %v159
  %v1518 = vmul.f32 %v1516, %v159
  %v1519 = vsub.f32 %v1509, %v1517
  %v1520 = vsub.f32 %v1510, %v1518
  %v1521 = vmul.f32 %v1519, %v1519
  %v1522 = vmul.f32 %v1520, %v1520
  %v1523 = vsel %vm152, %v1521, 0.0
  %1524 = vadd.xlane.f32.xlu0 %v1523
  %v1525 = vpop.xlane.xlu0 %1524
  %v1526 = vsel %vm152, %v1522, 0.0
  %1527 = vadd.xlane.f32.xlu0 %v1526
  %v1528 = vpop.xlane.xlu0 %1527
  %v1529 = vmul.f32 %v1525, %v159
  %v1530 = vmul.f32 %v1528, %v159
  %v1531 = vadd.f32 %v1529, 1e-12
  %v1532 = vadd.f32 %v1530, 1e-12
  %v1533 = vrsqrt.pop %v1531
  %v1534 = vrsqrt.pop %v1532
  %v1535 = vmul.f32 %v1519, %v1533
  %v1536 = vmul.f32 %v1520, %v1534
  %v1537 = vlaneseq
  %v1538 = vshrl.u32 %v1537, 7
  %v1539 = vsub.s32 0, %v1538
  %v1540 = vrot.slane %v238, %v1539
  %v1541 = vmul.f32 %v1535, %v1540
  %v1542 = vmul.f32 %v1536, %v1540
  %v1543 = vlaneseq
  %v1544 = vshrl.u32 %v1543, 7
  %v1545 = vsub.s32 0, %v1544
  %v1546 = vrot.slane %v239, %v1545
  %v1547 = vadd.f32 %v1541, %v1546
  %v1548 = vadd.f32 %v1542, %v1546
  %s1549 = scalar_lea.vmem %s3, 32
  %v1550 = vld [vmem:[%s1549] sm:$0xf]
  %v1551 = vld [vmem:[%s1549 + $0x8] sm:$0xf]
  %v1552 = vld [vmem:[%s1549 + $0x10] sm:$0xf]
  %v1553 = vld [vmem:[%s1549 + $0x18] sm:$0xf]
  %v1554 = vld [vmem:[%s1549 + $0x4] sm:$0xf]
  %v1555 = vld [vmem:[%s1549 + $0xc] sm:$0xf]
  %v1556 = vld [vmem:[%s1549 + $0x14] sm:$0xf]
  %v1557 = vld [vmem:[%s1549 + $0x1c] sm:$0xf]
  %s1558 = scalar_lea.vmem %s4, 32
  %v1559 = vld [vmem:[%s1558] sm:$0xf]
  %v1560 = vld [vmem:[%s1558 + $0x4] sm:$0xf]
  %v1561 = vld [vmem:[%s1558 + $0x8] sm:$0xf]
  %v1562 = vld [vmem:[%s1558 + $0xc] sm:$0xf]
  %v1563 = vld [vmem:[%s1558 + $0x10] sm:$0xf]
  %v1564 = vld [vmem:[%s1558 + $0x14] sm:$0xf]
  %v1565 = vld [vmem:[%s1558 + $0x18] sm:$0xf]
  %v1566 = vld [vmem:[%s1558 + $0x1c] sm:$0xf]
  %s1567 = scalar_lea.vmem %s5, 8
  %v1568 = vld [vmem:[%s1567] sm:$0x1]
  %v1569 = vld [vmem:[%s1567 + $0x1] sm:$0x1]
  %v1570 = vld [vmem:[%s1567 + $0x2] sm:$0x1]
  %v1571 = vld [vmem:[%s1567 + $0x3] sm:$0x1]
  %v1572 = vld [vmem:[%s1567 + $0x4] sm:$0x1]
  %v1573 = vld [vmem:[%s1567 + $0x5] sm:$0x1]
  %v1574 = vld [vmem:[%s1567 + $0x6] sm:$0x1]
  %v1575 = vld [vmem:[%s1567 + $0x7] sm:$0x1]
  %v1576 = vpack.c.bf16 %v1548, %v1547
  %v1577 = vlaneseq
  %v1578 = vshrl.u32 %v1577, 7
  %v1579 = vsub.s32 0, %v1578
  %v1580 = vrot.slane %v1568, %v1579
  %v1585 = vunpack.c.l.b16 %v1550
  %v1586 = vunpack.c.l.b16 %v1551
  %v1587 = vunpack.c.l.b16 %v1552
  %v1588 = vunpack.c.l.b16 %v1553
  %v1589 = vpack.c.b16 %v1586, %v1585
  %v1590 = vpack.c.b16 %v1588, %v1587
  %v1594 = vsel %vm152, %v1576, 0
  %1596 = vmatprep.subr.bf16.mxu0 0
  %1597 = vmatpush1.bf16.msra.mxu0 %v1589
  %1598 = vmatprep.subr.bf16.mxu0 0
  %1599 = vmatpush1.bf16.msra.mxu0 %v1590
  %1600 = vmatprep.subr.bf16.mxu0 0
  %1601 = vmatpush1.bf16.msra.mxu0 0
  %1602 = vmatprep.subr.bf16.mxu0 0
  %1603 = vmatpush1.bf16.msra.mxu0 0
  %1604 = vmatprep.subr.bf16.mxu0 0
  %1605 = vmatpush1.bf16.msra.mxu0 0
  %1606 = vmatprep.subr.bf16.mxu0 0
  %1607 = vmatpush1.bf16.msra.mxu0 0
  %1608 = vmatprep.subr.bf16.mxu0 0
  %1609 = vmatpush1.bf16.msra.mxu0 0
  %1610 = vmatprep.subr.bf16.mxu0 0
  %1611 = vmatpush1.bf16.msra.mxu0 0
  %1612 = vmatprep.subr.bf16.mxu0 0
  %1613 = vmatpush1.bf16.msra.mxu0 0
  %1614 = vmatprep.subr.bf16.mxu0 0
  %1615 = vmatpush1.bf16.msra.mxu0 0
  %1616 = vmatprep.subr.bf16.mxu0 0
  %1617 = vmatpush1.bf16.msra.mxu0 0
  %1618 = vmatprep.subr.bf16.mxu0 0
  %1619 = vmatpush1.bf16.msra.mxu0 0
  %1620 = vmatprep.subr.bf16.mxu0 0
  %1621 = vmatpush1.bf16.msra.mxu0 0
  %1622 = vmatprep.subr.bf16.mxu0 0
  %1623 = vmatpush1.bf16.msra.mxu0 0
  %1624 = vmatprep.subr.bf16.mxu0 0
  %1625 = vmatpush1.bf16.msra.mxu0 0
  %1626 = vmatprep.subr.bf16.mxu0 0
  %1627 = vmatpush1.bf16.msra.mxu0 0
  %1628 = vmatprep.mubr.bf16.mxu0 0
  %1629 = vmatmul.mubr.bf16.gmra.mrb[0].mxu0 %v1594
  %v1630 = vpop.f32.mrb[0].mxu0
  %v1631 = vadd.f32 %v1580, %v1630
  %v1632 = vpop.f32.mrb[0].mxu0
  %v1633 = vpop.f32.mrb[0].mxu0
  %v1634 = vadd.f32 %v1580, %v1633
  %v1635 = vpop.f32.mrb[0].mxu0
  %1636 = vdwg.mxu0
  %1639 = vrot.lane.b32.xlu0 %v1631, 120
  %v1640 = vpop.permute.xlu0 %1639
  %1641 = vrot.lane.b32.xlu0 %v1634, 120
  %v1642 = vpop.permute.xlu0 %1641
  %1645 = vrot.lane.b32.xlu0 %v1631, 112
  %v1646 = vpop.permute.xlu0 %1645
  %1647 = vrot.lane.b32.xlu0 %v1634, 112
  %v1648 = vpop.permute.xlu0 %1647
  %1651 = vrot.lane.b32.xlu0 %v1631, 104
  %v1652 = vpop.permute.xlu0 %1651
  %1653 = vrot.lane.b32.xlu0 %v1634, 104
  %v1654 = vpop.permute.xlu0 %1653
  %v1657 = vpack.c.bf16 %v1631, %v1631
  %v1658 = vpack.c.bf16 %v1640, %v1640
  %v1659 = vpack.c.bf16 %v1646, %v1646
  %v1660 = vpack.c.bf16 %v1652, %v1652
  %v1661 = vpack.c.bf16 %v1634, %v1634
  %v1662 = vpack.c.bf16 %v1642, %v1642
  %v1663 = vpack.c.bf16 %v1648, %v1648
  %v1664 = vpack.c.bf16 %v1654, %v1654
  %1666 = vrot.lane.b32.xlu0 %v1657, 96
  %v1667 = vpop.permute.xlu0 %1666
  %v1669 = vsel %vm332, %v1657, 0
  %v1672 = vsel %vm332, %v1667, 0
  %1674 = vmatprep.subr.bf16.mxu0 0
  %1675 = vmatpush1.bf16.xpose.msra.mxu0 %v1672
  %1676 = vmatprep.subr.bf16.mxu0 0
  %1677 = vmatpush1.bf16.xpose.msra.mxu0 0
  %1678 = vmatprep.subr.bf16.mxu0 0
  %1679 = vmatpush1.bf16.xpose.msra.mxu0 0
  %1680 = vmatprep.subr.bf16.mxu0 0
  %1681 = vmatpush1.bf16.xpose.msra.mxu0 0
  %1682 = vmatprep.subr.bf16.mxu0 0
  %1683 = vmatpush1.bf16.xpose.msra.mxu0 0
  %1684 = vmatprep.subr.bf16.mxu0 0
  %1685 = vmatpush1.bf16.xpose.msra.mxu0 0
  %1686 = vmatprep.subr.bf16.mxu0 0
  %1687 = vmatpush1.bf16.xpose.msra.mxu0 0
  %1688 = vmatprep.subr.bf16.mxu0 0
  %1689 = vmatpush1.bf16.xpose.msra.mxu0 0
  %1690 = vmatprep.subr.bf16.mxu0 0
  %1691 = vmatpush1.bf16.xpose.msra.mxu0 0
  %1692 = vmatprep.subr.bf16.mxu0 0
  %1693 = vmatpush1.bf16.xpose.msra.mxu0 0
  %1694 = vmatprep.subr.bf16.mxu0 0
  %1695 = vmatpush1.bf16.xpose.msra.mxu0 0
  %1696 = vmatprep.subr.bf16.mxu0 0
  %1697 = vmatpush1.bf16.xpose.msra.mxu0 0
  %1698 = vmatprep.subr.bf16.mxu0 0
  %1699 = vmatpush1.bf16.xpose.msra.mxu0 0
  %1700 = vmatprep.subr.bf16.mxu0 0
  %1701 = vmatpush1.bf16.xpose.msra.mxu0 0
  %1702 = vmatprep.subr.bf16.mxu0 0
  %1703 = vmatpush1.bf16.xpose.msra.mxu0 0
  %1704 = vmatprep.subr.bf16.mxu0 0
  %1705 = vmatpush1.bf16.xpose.msra.mxu0 0
  %1706 = vmatprep.mubr.bf16.mxu0 0
  %1707 = vmatmul.mubr.bf16.gmra.mrb[0].mxu0 %v1669
  %v1708 = vpop.f32.mrb[0].mxu0
  %v1709 = vadd.f32 0.0, %v1708
  %v1710 = vpop.f32.mrb[0].mxu0
  %v1711 = vpop.f32.mrb[0].mxu0
  %v1712 = vpop.f32.mrb[0].mxu0
  %1713 = vdwg.mxu0
  %1715 = vrot.lane.b32.xlu0 %v1658, 96
  %v1716 = vpop.permute.xlu0 %1715
  %v1718 = vsel %vm332, %v1658, 0
  %v1721 = vsel %vm332, %v1716, 0
  %1723 = vmatprep.subr.bf16.mxu0 0
  %1724 = vmatpush1.bf16.xpose.msra.mxu0 %v1721
  %1725 = vmatprep.subr.bf16.mxu0 0
  %1726 = vmatpush1.bf16.xpose.msra.mxu0 0
  %1727 = vmatprep.subr.bf16.mxu0 0
  %1728 = vmatpush1.bf16.xpose.msra.mxu0 0
  %1729 = vmatprep.subr.bf16.mxu0 0
  %1730 = vmatpush1.bf16.xpose.msra.mxu0 0
  %1731 = vmatprep.subr.bf16.mxu0 0
  %1732 = vmatpush1.bf16.xpose.msra.mxu0 0
  %1733 = vmatprep.subr.bf16.mxu0 0
  %1734 = vmatpush1.bf16.xpose.msra.mxu0 0
  %1735 = vmatprep.subr.bf16.mxu0 0
  %1736 = vmatpush1.bf16.xpose.msra.mxu0 0
  %1737 = vmatprep.subr.bf16.mxu0 0
  %1738 = vmatpush1.bf16.xpose.msra.mxu0 0
  %1739 = vmatprep.subr.bf16.mxu0 0
  %1740 = vmatpush1.bf16.xpose.msra.mxu0 0
  %1741 = vmatprep.subr.bf16.mxu0 0
  %1742 = vmatpush1.bf16.xpose.msra.mxu0 0
  %1743 = vmatprep.subr.bf16.mxu0 0
  %1744 = vmatpush1.bf16.xpose.msra.mxu0 0
  %1745 = vmatprep.subr.bf16.mxu0 0
  %1746 = vmatpush1.bf16.xpose.msra.mxu0 0
  %1747 = vmatprep.subr.bf16.mxu0 0
  %1748 = vmatpush1.bf16.xpose.msra.mxu0 0
  %1749 = vmatprep.subr.bf16.mxu0 0
  %1750 = vmatpush1.bf16.xpose.msra.mxu0 0
  %1751 = vmatprep.subr.bf16.mxu0 0
  %1752 = vmatpush1.bf16.xpose.msra.mxu0 0
  %1753 = vmatprep.subr.bf16.mxu0 0
  %1754 = vmatpush1.bf16.xpose.msra.mxu0 0
  %1755 = vmatprep.mubr.bf16.mxu0 0
  %1756 = vmatmul.mubr.bf16.gmra.mrb[0].mxu0 %v1718
  %v1757 = vpop.f32.mrb[0].mxu0
  %v1758 = vadd.f32 0.0, %v1757
  %v1759 = vpop.f32.mrb[0].mxu0
  %v1760 = vpop.f32.mrb[0].mxu0
  %v1761 = vpop.f32.mrb[0].mxu0
  %1762 = vdwg.mxu0
  %1764 = vrot.lane.b32.xlu0 %v1659, 96
  %v1765 = vpop.permute.xlu0 %1764
  %v1767 = vsel %vm332, %v1659, 0
  %v1770 = vsel %vm332, %v1765, 0
  %1772 = vmatprep.subr.bf16.mxu0 0
  %1773 = vmatpush1.bf16.xpose.msra.mxu0 %v1770
  %1774 = vmatprep.subr.bf16.mxu0 0
  %1775 = vmatpush1.bf16.xpose.msra.mxu0 0
  %1776 = vmatprep.subr.bf16.mxu0 0
  %1777 = vmatpush1.bf16.xpose.msra.mxu0 0
  %1778 = vmatprep.subr.bf16.mxu0 0
  %1779 = vmatpush1.bf16.xpose.msra.mxu0 0
  %1780 = vmatprep.subr.bf16.mxu0 0
  %1781 = vmatpush1.bf16.xpose.msra.mxu0 0
  %1782 = vmatprep.subr.bf16.mxu0 0
  %1783 = vmatpush1.bf16.xpose.msra.mxu0 0
  %1784 = vmatprep.subr.bf16.mxu0 0
  %1785 = vmatpush1.bf16.xpose.msra.mxu0 0
  %1786 = vmatprep.subr.bf16.mxu0 0
  %1787 = vmatpush1.bf16.xpose.msra.mxu0 0
  %1788 = vmatprep.subr.bf16.mxu0 0
  %1789 = vmatpush1.bf16.xpose.msra.mxu0 0
  %1790 = vmatprep.subr.bf16.mxu0 0
  %1791 = vmatpush1.bf16.xpose.msra.mxu0 0
  %1792 = vmatprep.subr.bf16.mxu0 0
  %1793 = vmatpush1.bf16.xpose.msra.mxu0 0
  %1794 = vmatprep.subr.bf16.mxu0 0
  %1795 = vmatpush1.bf16.xpose.msra.mxu0 0
  %1796 = vmatprep.subr.bf16.mxu0 0
  %1797 = vmatpush1.bf16.xpose.msra.mxu0 0
  %1798 = vmatprep.subr.bf16.mxu0 0
  %1799 = vmatpush1.bf16.xpose.msra.mxu0 0
  %1800 = vmatprep.subr.bf16.mxu0 0
  %1801 = vmatpush1.bf16.xpose.msra.mxu0 0
  %1802 = vmatprep.subr.bf16.mxu0 0
  %1803 = vmatpush1.bf16.xpose.msra.mxu0 0
  %1804 = vmatprep.mubr.bf16.mxu0 0
  %1805 = vmatmul.mubr.bf16.gmra.mrb[0].mxu0 %v1767
  %v1806 = vpop.f32.mrb[0].mxu0
  %v1807 = vadd.f32 0.0, %v1806
  %v1808 = vpop.f32.mrb[0].mxu0
  %v1809 = vpop.f32.mrb[0].mxu0
  %v1810 = vpop.f32.mrb[0].mxu0
  %1811 = vdwg.mxu0
  %1813 = vrot.lane.b32.xlu0 %v1660, 96
  %v1814 = vpop.permute.xlu0 %1813
  %v1816 = vsel %vm332, %v1660, 0
  %v1819 = vsel %vm332, %v1814, 0
  %1821 = vmatprep.subr.bf16.mxu0 0
  %1822 = vmatpush1.bf16.xpose.msra.mxu0 %v1819
  %1823 = vmatprep.subr.bf16.mxu0 0
  %1824 = vmatpush1.bf16.xpose.msra.mxu0 0
  %1825 = vmatprep.subr.bf16.mxu0 0
  %1826 = vmatpush1.bf16.xpose.msra.mxu0 0
  %1827 = vmatprep.subr.bf16.mxu0 0
  %1828 = vmatpush1.bf16.xpose.msra.mxu0 0
  %1829 = vmatprep.subr.bf16.mxu0 0
  %1830 = vmatpush1.bf16.xpose.msra.mxu0 0
  %1831 = vmatprep.subr.bf16.mxu0 0
  %1832 = vmatpush1.bf16.xpose.msra.mxu0 0
  %1833 = vmatprep.subr.bf16.mxu0 0
  %1834 = vmatpush1.bf16.xpose.msra.mxu0 0
  %1835 = vmatprep.subr.bf16.mxu0 0
  %1836 = vmatpush1.bf16.xpose.msra.mxu0 0
  %1837 = vmatprep.subr.bf16.mxu0 0
  %1838 = vmatpush1.bf16.xpose.msra.mxu0 0
  %1839 = vmatprep.subr.bf16.mxu0 0
  %1840 = vmatpush1.bf16.xpose.msra.mxu0 0
  %1841 = vmatprep.subr.bf16.mxu0 0
  %1842 = vmatpush1.bf16.xpose.msra.mxu0 0
  %1843 = vmatprep.subr.bf16.mxu0 0
  %1844 = vmatpush1.bf16.xpose.msra.mxu0 0
  %1845 = vmatprep.subr.bf16.mxu0 0
  %1846 = vmatpush1.bf16.xpose.msra.mxu0 0
  %1847 = vmatprep.subr.bf16.mxu0 0
  %1848 = vmatpush1.bf16.xpose.msra.mxu0 0
  %1849 = vmatprep.subr.bf16.mxu0 0
  %1850 = vmatpush1.bf16.xpose.msra.mxu0 0
  %1851 = vmatprep.subr.bf16.mxu0 0
  %1852 = vmatpush1.bf16.xpose.msra.mxu0 0
  %1853 = vmatprep.mubr.bf16.mxu0 0
  %1854 = vmatmul.mubr.bf16.gmra.mrb[0].mxu0 %v1816
  %v1855 = vpop.f32.mrb[0].mxu0
  %v1856 = vadd.f32 0.0, %v1855
  %v1857 = vpop.f32.mrb[0].mxu0
  %v1858 = vpop.f32.mrb[0].mxu0
  %v1859 = vpop.f32.mrb[0].mxu0
  %1860 = vdwg.mxu0
  %1862 = vrot.lane.b32.xlu0 %v1661, 96
  %v1863 = vpop.permute.xlu0 %1862
  %v1865 = vsel %vm332, %v1661, 0
  %v1868 = vsel %vm332, %v1863, 0
  %1870 = vmatprep.subr.bf16.mxu0 0
  %1871 = vmatpush1.bf16.xpose.msra.mxu0 %v1868
  %1872 = vmatprep.subr.bf16.mxu0 0
  %1873 = vmatpush1.bf16.xpose.msra.mxu0 0
  %1874 = vmatprep.subr.bf16.mxu0 0
  %1875 = vmatpush1.bf16.xpose.msra.mxu0 0
  %1876 = vmatprep.subr.bf16.mxu0 0
  %1877 = vmatpush1.bf16.xpose.msra.mxu0 0
  %1878 = vmatprep.subr.bf16.mxu0 0
  %1879 = vmatpush1.bf16.xpose.msra.mxu0 0
  %1880 = vmatprep.subr.bf16.mxu0 0
  %1881 = vmatpush1.bf16.xpose.msra.mxu0 0
  %1882 = vmatprep.subr.bf16.mxu0 0
  %1883 = vmatpush1.bf16.xpose.msra.mxu0 0
  %1884 = vmatprep.subr.bf16.mxu0 0
  %1885 = vmatpush1.bf16.xpose.msra.mxu0 0
  %1886 = vmatprep.subr.bf16.mxu0 0
  %1887 = vmatpush1.bf16.xpose.msra.mxu0 0
  %1888 = vmatprep.subr.bf16.mxu0 0
  %1889 = vmatpush1.bf16.xpose.msra.mxu0 0
  %1890 = vmatprep.subr.bf16.mxu0 0
  %1891 = vmatpush1.bf16.xpose.msra.mxu0 0
  %1892 = vmatprep.subr.bf16.mxu0 0
  %1893 = vmatpush1.bf16.xpose.msra.mxu0 0
  %1894 = vmatprep.subr.bf16.mxu0 0
  %1895 = vmatpush1.bf16.xpose.msra.mxu0 0
  %1896 = vmatprep.subr.bf16.mxu0 0
  %1897 = vmatpush1.bf16.xpose.msra.mxu0 0
  %1898 = vmatprep.subr.bf16.mxu0 0
  %1899 = vmatpush1.bf16.xpose.msra.mxu0 0
  %1900 = vmatprep.subr.bf16.mxu0 0
  %1901 = vmatpush1.bf16.xpose.msra.mxu0 0
  %1902 = vmatprep.mubr.bf16.mxu0 0
  %1903 = vmatmul.mubr.bf16.gmra.mrb[0].mxu0 %v1865
  %v1904 = vpop.f32.mrb[0].mxu0
  %v1905 = vadd.f32 0.0, %v1904
  %v1906 = vpop.f32.mrb[0].mxu0
  %v1907 = vpop.f32.mrb[0].mxu0
  %v1908 = vpop.f32.mrb[0].mxu0
  %1909 = vdwg.mxu0
  %1911 = vrot.lane.b32.xlu0 %v1662, 96
  %v1912 = vpop.permute.xlu0 %1911
  %v1914 = vsel %vm332, %v1662, 0
  %v1917 = vsel %vm332, %v1912, 0
  %1919 = vmatprep.subr.bf16.mxu0 0
  %1920 = vmatpush1.bf16.xpose.msra.mxu0 %v1917
  %1921 = vmatprep.subr.bf16.mxu0 0
  %1922 = vmatpush1.bf16.xpose.msra.mxu0 0
  %1923 = vmatprep.subr.bf16.mxu0 0
  %1924 = vmatpush1.bf16.xpose.msra.mxu0 0
  %1925 = vmatprep.subr.bf16.mxu0 0
  %1926 = vmatpush1.bf16.xpose.msra.mxu0 0
  %1927 = vmatprep.subr.bf16.mxu0 0
  %1928 = vmatpush1.bf16.xpose.msra.mxu0 0
  %1929 = vmatprep.subr.bf16.mxu0 0
  %1930 = vmatpush1.bf16.xpose.msra.mxu0 0
  %1931 = vmatprep.subr.bf16.mxu0 0
  %1932 = vmatpush1.bf16.xpose.msra.mxu0 0
  %1933 = vmatprep.subr.bf16.mxu0 0
  %1934 = vmatpush1.bf16.xpose.msra.mxu0 0
  %1935 = vmatprep.subr.bf16.mxu0 0
  %1936 = vmatpush1.bf16.xpose.msra.mxu0 0
  %1937 = vmatprep.subr.bf16.mxu0 0
  %1938 = vmatpush1.bf16.xpose.msra.mxu0 0
  %1939 = vmatprep.subr.bf16.mxu0 0
  %1940 = vmatpush1.bf16.xpose.msra.mxu0 0
  %1941 = vmatprep.subr.bf16.mxu0 0
  %1942 = vmatpush1.bf16.xpose.msra.mxu0 0
  %1943 = vmatprep.subr.bf16.mxu0 0
  %1944 = vmatpush1.bf16.xpose.msra.mxu0 0
  %1945 = vmatprep.subr.bf16.mxu0 0
  %1946 = vmatpush1.bf16.xpose.msra.mxu0 0
  %1947 = vmatprep.subr.bf16.mxu0 0
  %1948 = vmatpush1.bf16.xpose.msra.mxu0 0
  %1949 = vmatprep.subr.bf16.mxu0 0
  %1950 = vmatpush1.bf16.xpose.msra.mxu0 0
  %1951 = vmatprep.mubr.bf16.mxu0 0
  %1952 = vmatmul.mubr.bf16.gmra.mrb[0].mxu0 %v1914
  %v1953 = vpop.f32.mrb[0].mxu0
  %v1954 = vadd.f32 0.0, %v1953
  %v1955 = vpop.f32.mrb[0].mxu0
  %v1956 = vpop.f32.mrb[0].mxu0
  %v1957 = vpop.f32.mrb[0].mxu0
  %1958 = vdwg.mxu0
  %1960 = vrot.lane.b32.xlu0 %v1663, 96
  %v1961 = vpop.permute.xlu0 %1960
  %v1963 = vsel %vm332, %v1663, 0
  %v1966 = vsel %vm332, %v1961, 0
  %1968 = vmatprep.subr.bf16.mxu0 0
  %1969 = vmatpush1.bf16.xpose.msra.mxu0 %v1966
  %1970 = vmatprep.subr.bf16.mxu0 0
  %1971 = vmatpush1.bf16.xpose.msra.mxu0 0
  %1972 = vmatprep.subr.bf16.mxu0 0
  %1973 = vmatpush1.bf16.xpose.msra.mxu0 0
  %1974 = vmatprep.subr.bf16.mxu0 0
  %1975 = vmatpush1.bf16.xpose.msra.mxu0 0
  %1976 = vmatprep.subr.bf16.mxu0 0
  %1977 = vmatpush1.bf16.xpose.msra.mxu0 0
  %1978 = vmatprep.subr.bf16.mxu0 0
  %1979 = vmatpush1.bf16.xpose.msra.mxu0 0
  %1980 = vmatprep.subr.bf16.mxu0 0
  %1981 = vmatpush1.bf16.xpose.msra.mxu0 0
  %1982 = vmatprep.subr.bf16.mxu0 0
  %1983 = vmatpush1.bf16.xpose.msra.mxu0 0
  %1984 = vmatprep.subr.bf16.mxu0 0
  %1985 = vmatpush1.bf16.xpose.msra.mxu0 0
  %1986 = vmatprep.subr.bf16.mxu0 0
  %1987 = vmatpush1.bf16.xpose.msra.mxu0 0
  %1988 = vmatprep.subr.bf16.mxu0 0
  %1989 = vmatpush1.bf16.xpose.msra.mxu0 0
  %1990 = vmatprep.subr.bf16.mxu0 0
  %1991 = vmatpush1.bf16.xpose.msra.mxu0 0
  %1992 = vmatprep.subr.bf16.mxu0 0
  %1993 = vmatpush1.bf16.xpose.msra.mxu0 0
  %1994 = vmatprep.subr.bf16.mxu0 0
  %1995 = vmatpush1.bf16.xpose.msra.mxu0 0
  %1996 = vmatprep.subr.bf16.mxu0 0
  %1997 = vmatpush1.bf16.xpose.msra.mxu0 0
  %1998 = vmatprep.subr.bf16.mxu0 0
  %1999 = vmatpush1.bf16.xpose.msra.mxu0 0
  %2000 = vmatprep.mubr.bf16.mxu0 0
  %2001 = vmatmul.mubr.bf16.gmra.mrb[0].mxu0 %v1963
  %v2002 = vpop.f32.mrb[0].mxu0
  %v2003 = vadd.f32 0.0, %v2002
  %v2004 = vpop.f32.mrb[0].mxu0
  %v2005 = vpop.f32.mrb[0].mxu0
  %v2006 = vpop.f32.mrb[0].mxu0
  %2007 = vdwg.mxu0
  %2009 = vrot.lane.b32.xlu0 %v1664, 96
  %v2010 = vpop.permute.xlu0 %2009
  %v2012 = vsel %vm332, %v1664, 0
  %v2015 = vsel %vm332, %v2010, 0
  %2017 = vmatprep.subr.bf16.mxu0 0
  %2018 = vmatpush1.bf16.xpose.msra.mxu0 %v2015
  %2019 = vmatprep.subr.bf16.mxu0 0
  %2020 = vmatpush1.bf16.xpose.msra.mxu0 0
  %2021 = vmatprep.subr.bf16.mxu0 0
  %2022 = vmatpush1.bf16.xpose.msra.mxu0 0
  %2023 = vmatprep.subr.bf16.mxu0 0
  %2024 = vmatpush1.bf16.xpose.msra.mxu0 0
  %2025 = vmatprep.subr.bf16.mxu0 0
  %2026 = vmatpush1.bf16.xpose.msra.mxu0 0
  %2027 = vmatprep.subr.bf16.mxu0 0
  %2028 = vmatpush1.bf16.xpose.msra.mxu0 0
  %2029 = vmatprep.subr.bf16.mxu0 0
  %2030 = vmatpush1.bf16.xpose.msra.mxu0 0
  %2031 = vmatprep.subr.bf16.mxu0 0
  %2032 = vmatpush1.bf16.xpose.msra.mxu0 0
  %2033 = vmatprep.subr.bf16.mxu0 0
  %2034 = vmatpush1.bf16.xpose.msra.mxu0 0
  %2035 = vmatprep.subr.bf16.mxu0 0
  %2036 = vmatpush1.bf16.xpose.msra.mxu0 0
  %2037 = vmatprep.subr.bf16.mxu0 0
  %2038 = vmatpush1.bf16.xpose.msra.mxu0 0
  %2039 = vmatprep.subr.bf16.mxu0 0
  %2040 = vmatpush1.bf16.xpose.msra.mxu0 0
  %2041 = vmatprep.subr.bf16.mxu0 0
  %2042 = vmatpush1.bf16.xpose.msra.mxu0 0
  %2043 = vmatprep.subr.bf16.mxu0 0
  %2044 = vmatpush1.bf16.xpose.msra.mxu0 0
  %2045 = vmatprep.subr.bf16.mxu0 0
  %2046 = vmatpush1.bf16.xpose.msra.mxu0 0
  %2047 = vmatprep.subr.bf16.mxu0 0
  %2048 = vmatpush1.bf16.xpose.msra.mxu0 0
  %2049 = vmatprep.mubr.bf16.mxu0 0
  %2050 = vmatmul.mubr.bf16.gmra.mrb[0].mxu0 %v2012
  %v2051 = vpop.f32.mrb[0].mxu0
  %v2052 = vadd.f32 0.0, %v2051
  %v2053 = vpop.f32.mrb[0].mxu0
  %v2054 = vpop.f32.mrb[0].mxu0
  %v2055 = vpop.f32.mrb[0].mxu0
  %2056 = vdwg.mxu0
  %v2057 = vmul.f32 %v1709, 0.35355338
  %v2058 = vmul.f32 %v1758, 0.35355338
  %v2059 = vmul.f32 %v1807, 0.35355338
  %v2060 = vmul.f32 %v1856, 0.35355338
  %v2061 = vmul.f32 %v1905, 0.35355338
  %v2062 = vmul.f32 %v1954, 0.35355338
  %v2063 = vmul.f32 %v2003, 0.35355338
  %v2064 = vmul.f32 %v2052, 0.35355338
  %v2065 = vadd.f32 %v2057, %v733
  %v2066 = vadd.f32 %v2058, %v733
  %v2067 = vadd.f32 %v2059, %v733
  %v2068 = vadd.f32 %v2060, %v733
  %v2069 = vadd.f32 %v2061, %v737
  %v2070 = vadd.f32 %v2062, %v737
  %v2071 = vadd.f32 %v2063, %v737
  %v2072 = vadd.f32 %v2064, %v737
  %v2073 = vsel %vm332, %v2065, -inf
  %2074 = vmax.xlane.f32.xlu0 %v2073
  %v2075 = vpop.xlane.xlu0 %2074
  %v2076 = vsel %vm332, %v2066, -inf
  %2077 = vmax.xlane.f32.xlu0 %v2076
  %v2078 = vpop.xlane.xlu0 %2077
  %v2079 = vsel %vm332, %v2067, -inf
  %2080 = vmax.xlane.f32.xlu0 %v2079
  %v2081 = vpop.xlane.xlu0 %2080
  %v2082 = vsel %vm332, %v2068, -inf
  %2083 = vmax.xlane.f32.xlu0 %v2082
  %v2084 = vpop.xlane.xlu0 %2083
  %v2085 = vsel %vm332, %v2069, -inf
  %2086 = vmax.xlane.f32.xlu0 %v2085
  %v2087 = vpop.xlane.xlu0 %2086
  %v2088 = vsel %vm332, %v2070, -inf
  %2089 = vmax.xlane.f32.xlu0 %v2088
  %v2090 = vpop.xlane.xlu0 %2089
  %v2091 = vsel %vm332, %v2071, -inf
  %2092 = vmax.xlane.f32.xlu0 %v2091
  %v2093 = vpop.xlane.xlu0 %2092
  %v2094 = vsel %vm332, %v2072, -inf
  %2095 = vmax.xlane.f32.xlu0 %v2094
  %v2096 = vpop.xlane.xlu0 %2095
  %v2097 = vsub.f32 %v2065, %v2075
  %v2098 = vsub.f32 %v2066, %v2078
  %v2099 = vsub.f32 %v2067, %v2081
  %v2100 = vsub.f32 %v2068, %v2084
  %v2101 = vsub.f32 %v2069, %v2087
  %v2102 = vsub.f32 %v2070, %v2090
  %v2103 = vsub.f32 %v2071, %v2093
  %v2104 = vsub.f32 %v2072, %v2096
  %v2105 = vmul.f32 %v2097, 1.442695
  %v2106 = vpow.pop %v2105
  %v2107 = vmul.f32 %v2098, 1.442695
  %v2108 = vpow.pop %v2107
  %v2109 = vmul.f32 %v2099, 1.442695
  %v2110 = vpow.pop %v2109
  %v2111 = vmul.f32 %v2100, 1.442695
  %v2112 = vpow.pop %v2111
  %v2113 = vmul.f32 %v2101, 1.442695
  %v2114 = vpow.pop %v2113
  %v2115 = vmul.f32 %v2102, 1.442695
  %v2116 = vpow.pop %v2115
  %v2117 = vmul.f32 %v2103, 1.442695
  %v2118 = vpow.pop %v2117
  %v2119 = vmul.f32 %v2104, 1.442695
  %v2120 = vpow.pop %v2119
  %v2121 = vsel %vm332, %v2106, 0.0
  %2122 = vadd.xlane.f32.xlu0 %v2121
  %v2123 = vpop.xlane.xlu0 %2122
  %v2124 = vsel %vm332, %v2108, 0.0
  %2125 = vadd.xlane.f32.xlu0 %v2124
  %v2126 = vpop.xlane.xlu0 %2125
  %v2127 = vsel %vm332, %v2110, 0.0
  %2128 = vadd.xlane.f32.xlu0 %v2127
  %v2129 = vpop.xlane.xlu0 %2128
  %v2130 = vsel %vm332, %v2112, 0.0
  %2131 = vadd.xlane.f32.xlu0 %v2130
  %v2132 = vpop.xlane.xlu0 %2131
  %v2133 = vsel %vm332, %v2114, 0.0
  %2134 = vadd.xlane.f32.xlu0 %v2133
  %v2135 = vpop.xlane.xlu0 %2134
  %v2136 = vsel %vm332, %v2116, 0.0
  %2137 = vadd.xlane.f32.xlu0 %v2136
  %v2138 = vpop.xlane.xlu0 %2137
  %v2139 = vsel %vm332, %v2118, 0.0
  %2140 = vadd.xlane.f32.xlu0 %v2139
  %v2141 = vpop.xlane.xlu0 %2140
  %v2142 = vsel %vm332, %v2120, 0.0
  %2143 = vadd.xlane.f32.xlu0 %v2142
  %v2144 = vpop.xlane.xlu0 %2143
  %v2145 = vrcp.pop %v2123
  %v2146 = vrcp.pop %v2126
  %v2147 = vrcp.pop %v2129
  %v2148 = vrcp.pop %v2132
  %v2149 = vrcp.pop %v2135
  %v2150 = vrcp.pop %v2138
  %v2151 = vrcp.pop %v2141
  %v2152 = vrcp.pop %v2144
  %v2153 = vmul.f32 %v2106, %v2145
  %v2154 = vmul.f32 %v2108, %v2146
  %v2155 = vmul.f32 %v2110, %v2147
  %v2156 = vmul.f32 %v2112, %v2148
  %v2157 = vmul.f32 %v2114, %v2149
  %v2158 = vmul.f32 %v2116, %v2150
  %v2159 = vmul.f32 %v2118, %v2151
  %v2160 = vmul.f32 %v2120, %v2152
  %v2161 = vpack.c.bf16 %v2153, %v2153
  %v2162 = vpack.c.bf16 %v2154, %v2154
  %v2163 = vpack.c.bf16 %v2155, %v2155
  %v2164 = vpack.c.bf16 %v2156, %v2156
  %v2165 = vpack.c.bf16 %v2157, %v2157
  %v2166 = vpack.c.bf16 %v2158, %v2158
  %v2167 = vpack.c.bf16 %v2159, %v2159
  %v2168 = vpack.c.bf16 %v2160, %v2160
  %2169 = vrot.lane.b32.xlu0 %v1657, 64
  %v2170 = vpop.permute.xlu0 %2169
  %v2172 = vsel %vm332, %v2161, 0
  %v2175 = vsel %vm849, %v2170, 0
  %2177 = vmatprep.subr.bf16.mxu0 0
  %2178 = vmatpush1.bf16.msra.mxu0 %v2175
  %2179 = vmatprep.subr.bf16.mxu0 0
  %2180 = vmatpush1.bf16.msra.mxu0 0
  %2181 = vmatprep.subr.bf16.mxu0 0
  %2182 = vmatpush1.bf16.msra.mxu0 0
  %2183 = vmatprep.subr.bf16.mxu0 0
  %2184 = vmatpush1.bf16.msra.mxu0 0
  %2185 = vmatprep.subr.bf16.mxu0 0
  %2186 = vmatpush1.bf16.msra.mxu0 0
  %2187 = vmatprep.subr.bf16.mxu0 0
  %2188 = vmatpush1.bf16.msra.mxu0 0
  %2189 = vmatprep.subr.bf16.mxu0 0
  %2190 = vmatpush1.bf16.msra.mxu0 0
  %2191 = vmatprep.subr.bf16.mxu0 0
  %2192 = vmatpush1.bf16.msra.mxu0 0
  %2193 = vmatprep.subr.bf16.mxu0 0
  %2194 = vmatpush1.bf16.msra.mxu0 0
  %2195 = vmatprep.subr.bf16.mxu0 0
  %2196 = vmatpush1.bf16.msra.mxu0 0
  %2197 = vmatprep.subr.bf16.mxu0 0
  %2198 = vmatpush1.bf16.msra.mxu0 0
  %2199 = vmatprep.subr.bf16.mxu0 0
  %2200 = vmatpush1.bf16.msra.mxu0 0
  %2201 = vmatprep.subr.bf16.mxu0 0
  %2202 = vmatpush1.bf16.msra.mxu0 0
  %2203 = vmatprep.subr.bf16.mxu0 0
  %2204 = vmatpush1.bf16.msra.mxu0 0
  %2205 = vmatprep.subr.bf16.mxu0 0
  %2206 = vmatpush1.bf16.msra.mxu0 0
  %2207 = vmatprep.subr.bf16.mxu0 0
  %2208 = vmatpush1.bf16.msra.mxu0 0
  %2209 = vmatprep.mubr.bf16.mxu0 0
  %2210 = vmatmul.mubr.bf16.gmra.mrb[0].mxu0 %v2172
  %v2211 = vpop.f32.mrb[0].mxu0
  %v2212 = vadd.f32 0.0, %v2211
  %v2213 = vpop.f32.mrb[0].mxu0
  %v2214 = vpop.f32.mrb[0].mxu0
  %v2215 = vpop.f32.mrb[0].mxu0
  %2216 = vdwg.mxu0
  %2217 = vrot.lane.b32.xlu0 %v1658, 64
  %v2218 = vpop.permute.xlu0 %2217
  %v2220 = vsel %vm332, %v2162, 0
  %v2223 = vsel %vm849, %v2218, 0
  %2225 = vmatprep.subr.bf16.mxu0 0
  %2226 = vmatpush1.bf16.msra.mxu0 %v2223
  %2227 = vmatprep.subr.bf16.mxu0 0
  %2228 = vmatpush1.bf16.msra.mxu0 0
  %2229 = vmatprep.subr.bf16.mxu0 0
  %2230 = vmatpush1.bf16.msra.mxu0 0
  %2231 = vmatprep.subr.bf16.mxu0 0
  %2232 = vmatpush1.bf16.msra.mxu0 0
  %2233 = vmatprep.subr.bf16.mxu0 0
  %2234 = vmatpush1.bf16.msra.mxu0 0
  %2235 = vmatprep.subr.bf16.mxu0 0
  %2236 = vmatpush1.bf16.msra.mxu0 0
  %2237 = vmatprep.subr.bf16.mxu0 0
  %2238 = vmatpush1.bf16.msra.mxu0 0
  %2239 = vmatprep.subr.bf16.mxu0 0
  %2240 = vmatpush1.bf16.msra.mxu0 0
  %2241 = vmatprep.subr.bf16.mxu0 0
  %2242 = vmatpush1.bf16.msra.mxu0 0
  %2243 = vmatprep.subr.bf16.mxu0 0
  %2244 = vmatpush1.bf16.msra.mxu0 0
  %2245 = vmatprep.subr.bf16.mxu0 0
  %2246 = vmatpush1.bf16.msra.mxu0 0
  %2247 = vmatprep.subr.bf16.mxu0 0
  %2248 = vmatpush1.bf16.msra.mxu0 0
  %2249 = vmatprep.subr.bf16.mxu0 0
  %2250 = vmatpush1.bf16.msra.mxu0 0
  %2251 = vmatprep.subr.bf16.mxu0 0
  %2252 = vmatpush1.bf16.msra.mxu0 0
  %2253 = vmatprep.subr.bf16.mxu0 0
  %2254 = vmatpush1.bf16.msra.mxu0 0
  %2255 = vmatprep.subr.bf16.mxu0 0
  %2256 = vmatpush1.bf16.msra.mxu0 0
  %2257 = vmatprep.mubr.bf16.mxu0 0
  %2258 = vmatmul.mubr.bf16.gmra.mrb[0].mxu0 %v2220
  %v2259 = vpop.f32.mrb[0].mxu0
  %v2260 = vadd.f32 0.0, %v2259
  %v2261 = vpop.f32.mrb[0].mxu0
  %v2262 = vpop.f32.mrb[0].mxu0
  %v2263 = vpop.f32.mrb[0].mxu0
  %2264 = vdwg.mxu0
  %2265 = vrot.lane.b32.xlu0 %v1659, 64
  %v2266 = vpop.permute.xlu0 %2265
  %v2268 = vsel %vm332, %v2163, 0
  %v2271 = vsel %vm849, %v2266, 0
  %2273 = vmatprep.subr.bf16.mxu0 0
  %2274 = vmatpush1.bf16.msra.mxu0 %v2271
  %2275 = vmatprep.subr.bf16.mxu0 0
  %2276 = vmatpush1.bf16.msra.mxu0 0
  %2277 = vmatprep.subr.bf16.mxu0 0
  %2278 = vmatpush1.bf16.msra.mxu0 0
  %2279 = vmatprep.subr.bf16.mxu0 0
  %2280 = vmatpush1.bf16.msra.mxu0 0
  %2281 = vmatprep.subr.bf16.mxu0 0
  %2282 = vmatpush1.bf16.msra.mxu0 0
  %2283 = vmatprep.subr.bf16.mxu0 0
  %2284 = vmatpush1.bf16.msra.mxu0 0
  %2285 = vmatprep.subr.bf16.mxu0 0
  %2286 = vmatpush1.bf16.msra.mxu0 0
  %2287 = vmatprep.subr.bf16.mxu0 0
  %2288 = vmatpush1.bf16.msra.mxu0 0
  %2289 = vmatprep.subr.bf16.mxu0 0
  %2290 = vmatpush1.bf16.msra.mxu0 0
  %2291 = vmatprep.subr.bf16.mxu0 0
  %2292 = vmatpush1.bf16.msra.mxu0 0
  %2293 = vmatprep.subr.bf16.mxu0 0
  %2294 = vmatpush1.bf16.msra.mxu0 0
  %2295 = vmatprep.subr.bf16.mxu0 0
  %2296 = vmatpush1.bf16.msra.mxu0 0
  %2297 = vmatprep.subr.bf16.mxu0 0
  %2298 = vmatpush1.bf16.msra.mxu0 0
  %2299 = vmatprep.subr.bf16.mxu0 0
  %2300 = vmatpush1.bf16.msra.mxu0 0
  %2301 = vmatprep.subr.bf16.mxu0 0
  %2302 = vmatpush1.bf16.msra.mxu0 0
  %2303 = vmatprep.subr.bf16.mxu0 0
  %2304 = vmatpush1.bf16.msra.mxu0 0
  %2305 = vmatprep.mubr.bf16.mxu0 0
  %2306 = vmatmul.mubr.bf16.gmra.mrb[0].mxu0 %v2268
  %v2307 = vpop.f32.mrb[0].mxu0
  %v2308 = vadd.f32 0.0, %v2307
  %v2309 = vpop.f32.mrb[0].mxu0
  %v2310 = vpop.f32.mrb[0].mxu0
  %v2311 = vpop.f32.mrb[0].mxu0
  %2312 = vdwg.mxu0
  %2313 = vrot.lane.b32.xlu0 %v1660, 64
  %v2314 = vpop.permute.xlu0 %2313
  %v2316 = vsel %vm332, %v2164, 0
  %v2319 = vsel %vm849, %v2314, 0
  %2321 = vmatprep.subr.bf16.mxu0 0
  %2322 = vmatpush1.bf16.msra.mxu0 %v2319
  %2323 = vmatprep.subr.bf16.mxu0 0
  %2324 = vmatpush1.bf16.msra.mxu0 0
  %2325 = vmatprep.subr.bf16.mxu0 0
  %2326 = vmatpush1.bf16.msra.mxu0 0
  %2327 = vmatprep.subr.bf16.mxu0 0
  %2328 = vmatpush1.bf16.msra.mxu0 0
  %2329 = vmatprep.subr.bf16.mxu0 0
  %2330 = vmatpush1.bf16.msra.mxu0 0
  %2331 = vmatprep.subr.bf16.mxu0 0
  %2332 = vmatpush1.bf16.msra.mxu0 0
  %2333 = vmatprep.subr.bf16.mxu0 0
  %2334 = vmatpush1.bf16.msra.mxu0 0
  %2335 = vmatprep.subr.bf16.mxu0 0
  %2336 = vmatpush1.bf16.msra.mxu0 0
  %2337 = vmatprep.subr.bf16.mxu0 0
  %2338 = vmatpush1.bf16.msra.mxu0 0
  %2339 = vmatprep.subr.bf16.mxu0 0
  %2340 = vmatpush1.bf16.msra.mxu0 0
  %2341 = vmatprep.subr.bf16.mxu0 0
  %2342 = vmatpush1.bf16.msra.mxu0 0
  %2343 = vmatprep.subr.bf16.mxu0 0
  %2344 = vmatpush1.bf16.msra.mxu0 0
  %2345 = vmatprep.subr.bf16.mxu0 0
  %2346 = vmatpush1.bf16.msra.mxu0 0
  %2347 = vmatprep.subr.bf16.mxu0 0
  %2348 = vmatpush1.bf16.msra.mxu0 0
  %2349 = vmatprep.subr.bf16.mxu0 0
  %2350 = vmatpush1.bf16.msra.mxu0 0
  %2351 = vmatprep.subr.bf16.mxu0 0
  %2352 = vmatpush1.bf16.msra.mxu0 0
  %2353 = vmatprep.mubr.bf16.mxu0 0
  %2354 = vmatmul.mubr.bf16.gmra.mrb[0].mxu0 %v2316
  %v2355 = vpop.f32.mrb[0].mxu0
  %v2356 = vadd.f32 0.0, %v2355
  %v2357 = vpop.f32.mrb[0].mxu0
  %v2358 = vpop.f32.mrb[0].mxu0
  %v2359 = vpop.f32.mrb[0].mxu0
  %2360 = vdwg.mxu0
  %2361 = vrot.lane.b32.xlu0 %v1661, 64
  %v2362 = vpop.permute.xlu0 %2361
  %v2364 = vsel %vm332, %v2165, 0
  %v2367 = vsel %vm849, %v2362, 0
  %2369 = vmatprep.subr.bf16.mxu0 0
  %2370 = vmatpush1.bf16.msra.mxu0 %v2367
  %2371 = vmatprep.subr.bf16.mxu0 0
  %2372 = vmatpush1.bf16.msra.mxu0 0
  %2373 = vmatprep.subr.bf16.mxu0 0
  %2374 = vmatpush1.bf16.msra.mxu0 0
  %2375 = vmatprep.subr.bf16.mxu0 0
  %2376 = vmatpush1.bf16.msra.mxu0 0
  %2377 = vmatprep.subr.bf16.mxu0 0
  %2378 = vmatpush1.bf16.msra.mxu0 0
  %2379 = vmatprep.subr.bf16.mxu0 0
  %2380 = vmatpush1.bf16.msra.mxu0 0
  %2381 = vmatprep.subr.bf16.mxu0 0
  %2382 = vmatpush1.bf16.msra.mxu0 0
  %2383 = vmatprep.subr.bf16.mxu0 0
  %2384 = vmatpush1.bf16.msra.mxu0 0
  %2385 = vmatprep.subr.bf16.mxu0 0
  %2386 = vmatpush1.bf16.msra.mxu0 0
  %2387 = vmatprep.subr.bf16.mxu0 0
  %2388 = vmatpush1.bf16.msra.mxu0 0
  %2389 = vmatprep.subr.bf16.mxu0 0
  %2390 = vmatpush1.bf16.msra.mxu0 0
  %2391 = vmatprep.subr.bf16.mxu0 0
  %2392 = vmatpush1.bf16.msra.mxu0 0
  %2393 = vmatprep.subr.bf16.mxu0 0
  %2394 = vmatpush1.bf16.msra.mxu0 0
  %2395 = vmatprep.subr.bf16.mxu0 0
  %2396 = vmatpush1.bf16.msra.mxu0 0
  %2397 = vmatprep.subr.bf16.mxu0 0
  %2398 = vmatpush1.bf16.msra.mxu0 0
  %2399 = vmatprep.subr.bf16.mxu0 0
  %2400 = vmatpush1.bf16.msra.mxu0 0
  %2401 = vmatprep.mubr.bf16.mxu0 0
  %2402 = vmatmul.mubr.bf16.gmra.mrb[0].mxu0 %v2364
  %v2403 = vpop.f32.mrb[0].mxu0
  %v2404 = vadd.f32 0.0, %v2403
  %v2405 = vpop.f32.mrb[0].mxu0
  %v2406 = vpop.f32.mrb[0].mxu0
  %v2407 = vpop.f32.mrb[0].mxu0
  %2408 = vdwg.mxu0
  %2409 = vrot.lane.b32.xlu0 %v1662, 64
  %v2410 = vpop.permute.xlu0 %2409
  %v2412 = vsel %vm332, %v2166, 0
  %v2415 = vsel %vm849, %v2410, 0
  %2417 = vmatprep.subr.bf16.mxu0 0
  %2418 = vmatpush1.bf16.msra.mxu0 %v2415
  %2419 = vmatprep.subr.bf16.mxu0 0
  %2420 = vmatpush1.bf16.msra.mxu0 0
  %2421 = vmatprep.subr.bf16.mxu0 0
  %2422 = vmatpush1.bf16.msra.mxu0 0
  %2423 = vmatprep.subr.bf16.mxu0 0
  %2424 = vmatpush1.bf16.msra.mxu0 0
  %2425 = vmatprep.subr.bf16.mxu0 0
  %2426 = vmatpush1.bf16.msra.mxu0 0
  %2427 = vmatprep.subr.bf16.mxu0 0
  %2428 = vmatpush1.bf16.msra.mxu0 0
  %2429 = vmatprep.subr.bf16.mxu0 0
  %2430 = vmatpush1.bf16.msra.mxu0 0
  %2431 = vmatprep.subr.bf16.mxu0 0
  %2432 = vmatpush1.bf16.msra.mxu0 0
  %2433 = vmatprep.subr.bf16.mxu0 0
  %2434 = vmatpush1.bf16.msra.mxu0 0
  %2435 = vmatprep.subr.bf16.mxu0 0
  %2436 = vmatpush1.bf16.msra.mxu0 0
  %2437 = vmatprep.subr.bf16.mxu0 0
  %2438 = vmatpush1.bf16.msra.mxu0 0
  %2439 = vmatprep.subr.bf16.mxu0 0
  %2440 = vmatpush1.bf16.msra.mxu0 0
  %2441 = vmatprep.subr.bf16.mxu0 0
  %2442 = vmatpush1.bf16.msra.mxu0 0
  %2443 = vmatprep.subr.bf16.mxu0 0
  %2444 = vmatpush1.bf16.msra.mxu0 0
  %2445 = vmatprep.subr.bf16.mxu0 0
  %2446 = vmatpush1.bf16.msra.mxu0 0
  %2447 = vmatprep.subr.bf16.mxu0 0
  %2448 = vmatpush1.bf16.msra.mxu0 0
  %2449 = vmatprep.mubr.bf16.mxu0 0
  %2450 = vmatmul.mubr.bf16.gmra.mrb[0].mxu0 %v2412
  %v2451 = vpop.f32.mrb[0].mxu0
  %v2452 = vadd.f32 0.0, %v2451
  %v2453 = vpop.f32.mrb[0].mxu0
  %v2454 = vpop.f32.mrb[0].mxu0
  %v2455 = vpop.f32.mrb[0].mxu0
  %2456 = vdwg.mxu0
  %2457 = vrot.lane.b32.xlu0 %v1663, 64
  %v2458 = vpop.permute.xlu0 %2457
  %v2460 = vsel %vm332, %v2167, 0
  %v2463 = vsel %vm849, %v2458, 0
  %2465 = vmatprep.subr.bf16.mxu0 0
  %2466 = vmatpush1.bf16.msra.mxu0 %v2463
  %2467 = vmatprep.subr.bf16.mxu0 0
  %2468 = vmatpush1.bf16.msra.mxu0 0
  %2469 = vmatprep.subr.bf16.mxu0 0
  %2470 = vmatpush1.bf16.msra.mxu0 0
  %2471 = vmatprep.subr.bf16.mxu0 0
  %2472 = vmatpush1.bf16.msra.mxu0 0
  %2473 = vmatprep.subr.bf16.mxu0 0
  %2474 = vmatpush1.bf16.msra.mxu0 0
  %2475 = vmatprep.subr.bf16.mxu0 0
  %2476 = vmatpush1.bf16.msra.mxu0 0
  %2477 = vmatprep.subr.bf16.mxu0 0
  %2478 = vmatpush1.bf16.msra.mxu0 0
  %2479 = vmatprep.subr.bf16.mxu0 0
  %2480 = vmatpush1.bf16.msra.mxu0 0
  %2481 = vmatprep.subr.bf16.mxu0 0
  %2482 = vmatpush1.bf16.msra.mxu0 0
  %2483 = vmatprep.subr.bf16.mxu0 0
  %2484 = vmatpush1.bf16.msra.mxu0 0
  %2485 = vmatprep.subr.bf16.mxu0 0
  %2486 = vmatpush1.bf16.msra.mxu0 0
  %2487 = vmatprep.subr.bf16.mxu0 0
  %2488 = vmatpush1.bf16.msra.mxu0 0
  %2489 = vmatprep.subr.bf16.mxu0 0
  %2490 = vmatpush1.bf16.msra.mxu0 0
  %2491 = vmatprep.subr.bf16.mxu0 0
  %2492 = vmatpush1.bf16.msra.mxu0 0
  %2493 = vmatprep.subr.bf16.mxu0 0
  %2494 = vmatpush1.bf16.msra.mxu0 0
  %2495 = vmatprep.subr.bf16.mxu0 0
  %2496 = vmatpush1.bf16.msra.mxu0 0
  %2497 = vmatprep.mubr.bf16.mxu0 0
  %2498 = vmatmul.mubr.bf16.gmra.mrb[0].mxu0 %v2460
  %v2499 = vpop.f32.mrb[0].mxu0
  %v2500 = vadd.f32 0.0, %v2499
  %v2501 = vpop.f32.mrb[0].mxu0
  %v2502 = vpop.f32.mrb[0].mxu0
  %v2503 = vpop.f32.mrb[0].mxu0
  %2504 = vdwg.mxu0
  %2505 = vrot.lane.b32.xlu0 %v1664, 64
  %v2506 = vpop.permute.xlu0 %2505
  %v2508 = vsel %vm332, %v2168, 0
  %v2511 = vsel %vm849, %v2506, 0
  %2513 = vmatprep.subr.bf16.mxu0 0
  %2514 = vmatpush1.bf16.msra.mxu0 %v2511
  %2515 = vmatprep.subr.bf16.mxu0 0
  %2516 = vmatpush1.bf16.msra.mxu0 0
  %2517 = vmatprep.subr.bf16.mxu0 0
  %2518 = vmatpush1.bf16.msra.mxu0 0
  %2519 = vmatprep.subr.bf16.mxu0 0
  %2520 = vmatpush1.bf16.msra.mxu0 0
  %2521 = vmatprep.subr.bf16.mxu0 0
  %2522 = vmatpush1.bf16.msra.mxu0 0
  %2523 = vmatprep.subr.bf16.mxu0 0
  %2524 = vmatpush1.bf16.msra.mxu0 0
  %2525 = vmatprep.subr.bf16.mxu0 0
  %2526 = vmatpush1.bf16.msra.mxu0 0
  %2527 = vmatprep.subr.bf16.mxu0 0
  %2528 = vmatpush1.bf16.msra.mxu0 0
  %2529 = vmatprep.subr.bf16.mxu0 0
  %2530 = vmatpush1.bf16.msra.mxu0 0
  %2531 = vmatprep.subr.bf16.mxu0 0
  %2532 = vmatpush1.bf16.msra.mxu0 0
  %2533 = vmatprep.subr.bf16.mxu0 0
  %2534 = vmatpush1.bf16.msra.mxu0 0
  %2535 = vmatprep.subr.bf16.mxu0 0
  %2536 = vmatpush1.bf16.msra.mxu0 0
  %2537 = vmatprep.subr.bf16.mxu0 0
  %2538 = vmatpush1.bf16.msra.mxu0 0
  %2539 = vmatprep.subr.bf16.mxu0 0
  %2540 = vmatpush1.bf16.msra.mxu0 0
  %2541 = vmatprep.subr.bf16.mxu0 0
  %2542 = vmatpush1.bf16.msra.mxu0 0
  %2543 = vmatprep.subr.bf16.mxu0 0
  %2544 = vmatpush1.bf16.msra.mxu0 0
  %2545 = vmatprep.mubr.bf16.mxu0 0
  %2546 = vmatmul.mubr.bf16.gmra.mrb[0].mxu0 %v2508
  %v2547 = vpop.f32.mrb[0].mxu0
  %v2548 = vadd.f32 0.0, %v2547
  %v2549 = vpop.f32.mrb[0].mxu0
  %v2550 = vpop.f32.mrb[0].mxu0
  %v2551 = vpop.f32.mrb[0].mxu0
  %2552 = vdwg.mxu0
  %2555 = vrot.lane.b32.xlu0 %v2260, 8
  %v2556 = vpop.permute.xlu0 %2555
  %2557 = vrot.lane.b32.xlu0 %v2452, 8
  %v2558 = vpop.permute.xlu0 %2557
  %2563 = vrot.lane.b32.xlu0 %v2308, 16
  %v2564 = vpop.permute.xlu0 %2563
  %2565 = vrot.lane.b32.xlu0 %v2500, 16
  %v2566 = vpop.permute.xlu0 %2565
  %2571 = vrot.lane.b32.xlu0 %v2356, 24
  %v2572 = vpop.permute.xlu0 %2571
  %2573 = vrot.lane.b32.xlu0 %v2548, 24
  %v2574 = vpop.permute.xlu0 %2573
  %v2577 = vsel %vm332, %v2212, %v2556
  %v2578 = vsel %vm332, %v2404, %v2558
  %v2579 = vsel %vm1255, %v2577, %v2564
  %v2580 = vsel %vm1255, %v2578, %v2566
  %v2581 = vsel %vm1258, %v2579, %v2572
  %v2582 = vsel %vm1258, %v2580, %v2574
  %v2583 = vpack.c.bf16 %v2582, %v2581
  %v2584 = vlaneseq
  %v2585 = vshrl.u32 %v2584, 7
  %v2586 = vsub.s32 0, %v2585
  %v2587 = vrot.slane %v1569, %v2586
  %2588 = vrot.lane.b32.xlu0 %v1589, 32
  %v2589 = vpop.permute.xlu0 %2588
  %2590 = vrot.lane.b32.xlu0 %v1590, 32
  %v2591 = vpop.permute.xlu0 %2590
  %v2595 = vsel %vm152, %v2583, 0
  %2597 = vmatprep.subr.bf16.mxu0 0
  %2598 = vmatpush1.bf16.msra.mxu0 %v2589
  %2599 = vmatprep.subr.bf16.mxu0 0
  %2600 = vmatpush1.bf16.msra.mxu0 %v2591
  %2601 = vmatprep.subr.bf16.mxu0 0
  %2602 = vmatpush1.bf16.msra.mxu0 0
  %2603 = vmatprep.subr.bf16.mxu0 0
  %2604 = vmatpush1.bf16.msra.mxu0 0
  %2605 = vmatprep.subr.bf16.mxu0 0
  %2606 = vmatpush1.bf16.msra.mxu0 0
  %2607 = vmatprep.subr.bf16.mxu0 0
  %2608 = vmatpush1.bf16.msra.mxu0 0
  %2609 = vmatprep.subr.bf16.mxu0 0
  %2610 = vmatpush1.bf16.msra.mxu0 0
  %2611 = vmatprep.subr.bf16.mxu0 0
  %2612 = vmatpush1.bf16.msra.mxu0 0
  %2613 = vmatprep.subr.bf16.mxu0 0
  %2614 = vmatpush1.bf16.msra.mxu0 0
  %2615 = vmatprep.subr.bf16.mxu0 0
  %2616 = vmatpush1.bf16.msra.mxu0 0
  %2617 = vmatprep.subr.bf16.mxu0 0
  %2618 = vmatpush1.bf16.msra.mxu0 0
  %2619 = vmatprep.subr.bf16.mxu0 0
  %2620 = vmatpush1.bf16.msra.mxu0 0
  %2621 = vmatprep.subr.bf16.mxu0 0
  %2622 = vmatpush1.bf16.msra.mxu0 0
  %2623 = vmatprep.subr.bf16.mxu0 0
  %2624 = vmatpush1.bf16.msra.mxu0 0
  %2625 = vmatprep.subr.bf16.mxu0 0
  %2626 = vmatpush1.bf16.msra.mxu0 0
  %2627 = vmatprep.subr.bf16.mxu0 0
  %2628 = vmatpush1.bf16.msra.mxu0 0
  %2629 = vmatprep.mubr.bf16.mxu0 0
  %2630 = vmatmul.mubr.bf16.gmra.mrb[0].mxu0 %v2595
  %v2631 = vpop.f32.mrb[0].mxu0
  %v2632 = vadd.f32 %v2587, %v2631
  %v2633 = vpop.f32.mrb[0].mxu0
  %v2634 = vpop.f32.mrb[0].mxu0
  %v2635 = vadd.f32 %v2587, %v2634
  %v2636 = vpop.f32.mrb[0].mxu0
  %2637 = vdwg.mxu0
  %v2638 = vadd.f32 %v1547, %v2632
  %v2639 = vadd.f32 %v1548, %v2635
  %v2640 = vsel %vm152, %v2638, 0.0
  %2641 = vadd.xlane.f32.xlu0 %v2640
  %v2642 = vpop.xlane.xlu0 %2641
  %v2643 = vsel %vm152, %v2639, 0.0
  %2644 = vadd.xlane.f32.xlu0 %v2643
  %v2645 = vpop.xlane.xlu0 %2644
  %v2646 = vmul.f32 %v2642, %v159
  %v2647 = vmul.f32 %v2645, %v159
  %v2648 = vsub.f32 %v2638, %v2646
  %v2649 = vsub.f32 %v2639, %v2647
  %v2650 = vmul.f32 %v2648, %v2648
  %v2651 = vmul.f32 %v2649, %v2649
  %v2652 = vsel %vm152, %v2650, 0.0
  %2653 = vadd.xlane.f32.xlu0 %v2652
  %v2654 = vpop.xlane.xlu0 %2653
  %v2655 = vsel %vm152, %v2651, 0.0
  %2656 = vadd.xlane.f32.xlu0 %v2655
  %v2657 = vpop.xlane.xlu0 %2656
  %v2658 = vmul.f32 %v2654, %v159
  %v2659 = vmul.f32 %v2657, %v159
  %v2660 = vadd.f32 %v2658, 1e-12
  %v2661 = vadd.f32 %v2659, 1e-12
  %v2662 = vrsqrt.pop %v2660
  %v2663 = vrsqrt.pop %v2661
  %v2664 = vmul.f32 %v2648, %v2662
  %v2665 = vmul.f32 %v2649, %v2663
  %v2666 = vlaneseq
  %v2667 = vshrl.u32 %v2666, 7
  %v2668 = vsub.s32 0, %v2667
  %v2669 = vrot.slane %v1570, %v2668
  %v2670 = vmul.f32 %v2664, %v2669
  %v2671 = vmul.f32 %v2665, %v2669
  %v2672 = vlaneseq
  %v2673 = vshrl.u32 %v2672, 7
  %v2674 = vsub.s32 0, %v2673
  %v2675 = vrot.slane %v1571, %v2674
  %v2676 = vadd.f32 %v2670, %v2675
  %v2677 = vadd.f32 %v2671, %v2675
  %v2678 = vpack.c.bf16 %v2677, %v2676
  %v2679 = vlaneseq
  %v2680 = vshrl.u32 %v2679, 7
  %v2681 = vsub.s32 0, %v2680
  %v2682 = vrot.slane %v1572, %v2681
  %v2687 = vunpack.c.l.b16 %v1554
  %v2688 = vunpack.c.l.b16 %v1555
  %v2689 = vunpack.c.l.b16 %v1556
  %v2690 = vunpack.c.l.b16 %v1557
  %v2691 = vpack.c.b16 %v2688, %v2687
  %v2692 = vpack.c.b16 %v2690, %v2689
  %v2696 = vsel %vm152, %v2678, 0
  %2698 = vmatprep.subr.bf16.mxu0 0
  %2699 = vmatpush1.bf16.msra.mxu0 %v2691
  %2700 = vmatprep.subr.bf16.mxu0 0
  %2701 = vmatpush1.bf16.msra.mxu0 %v2692
  %2702 = vmatprep.subr.bf16.mxu0 0
  %2703 = vmatpush1.bf16.msra.mxu0 0
  %2704 = vmatprep.subr.bf16.mxu0 0
  %2705 = vmatpush1.bf16.msra.mxu0 0
  %2706 = vmatprep.subr.bf16.mxu0 0
  %2707 = vmatpush1.bf16.msra.mxu0 0
  %2708 = vmatprep.subr.bf16.mxu0 0
  %2709 = vmatpush1.bf16.msra.mxu0 0
  %2710 = vmatprep.subr.bf16.mxu0 0
  %2711 = vmatpush1.bf16.msra.mxu0 0
  %2712 = vmatprep.subr.bf16.mxu0 0
  %2713 = vmatpush1.bf16.msra.mxu0 0
  %2714 = vmatprep.subr.bf16.mxu0 0
  %2715 = vmatpush1.bf16.msra.mxu0 0
  %2716 = vmatprep.subr.bf16.mxu0 0
  %2717 = vmatpush1.bf16.msra.mxu0 0
  %2718 = vmatprep.subr.bf16.mxu0 0
  %2719 = vmatpush1.bf16.msra.mxu0 0
  %2720 = vmatprep.subr.bf16.mxu0 0
  %2721 = vmatpush1.bf16.msra.mxu0 0
  %2722 = vmatprep.subr.bf16.mxu0 0
  %2723 = vmatpush1.bf16.msra.mxu0 0
  %2724 = vmatprep.subr.bf16.mxu0 0
  %2725 = vmatpush1.bf16.msra.mxu0 0
  %2726 = vmatprep.subr.bf16.mxu0 0
  %2727 = vmatpush1.bf16.msra.mxu0 0
  %2728 = vmatprep.subr.bf16.mxu0 0
  %2729 = vmatpush1.bf16.msra.mxu0 0
  %2730 = vmatprep.mubr.bf16.mxu0 0
  %2731 = vmatmul.mubr.bf16.gmra.mrb[0].mxu0 %v2696
  %v2732 = vpop.f32.mrb[0].mxu0
  %v2733 = vadd.f32 %v2682, %v2732
  %v2734 = vpop.f32.mrb[0].mxu0
  %v2735 = vpop.f32.mrb[0].mxu0
  %v2736 = vadd.f32 %v2682, %v2735
  %v2737 = vpop.f32.mrb[0].mxu0
  %2738 = vdwg.mxu0
  %v2739 = vmul.f32 %v2733, 0.5
  %v2740 = vmul.f32 %v2736, 0.5
  %v2741 = vmul.f32 %v2733, 0.044715
  %v2742 = vmul.f32 %v2736, 0.044715
  %v2743 = vmul.f32 %v2741, %v2733
  %v2744 = vmul.f32 %v2742, %v2736
  %v2745 = vmul.f32 %v2743, %v2733
  %v2746 = vmul.f32 %v2744, %v2736
  %v2747 = vadd.f32 %v2733, %v2745
  %v2748 = vadd.f32 %v2736, %v2746
  %v2749 = vmul.f32 %v2747, 0.7978846
  %v2750 = vmul.f32 %v2748, 0.7978846
  %v2751 = vtanh.pop %v2749
  %v2752 = vtanh.pop %v2750
  %v2753 = vadd.f32 %v2751, 1.0
  %v2754 = vadd.f32 %v2752, 1.0
  %v2755 = vmul.f32 %v2739, %v2753
  %v2756 = vmul.f32 %v2740, %v2754
  %v2757 = vpack.c.bf16 %v2756, %v2755
  %v2758 = vlaneseq
  %v2759 = vshrl.u32 %v2758, 7
  %v2760 = vsub.s32 0, %v2759
  %v2761 = vrot.slane %v1573, %v2760
  %v2770 = vunpack.c.l.b16 %v1559
  %v2771 = vunpack.c.l.b16 %v1560
  %v2772 = vunpack.c.l.b16 %v1561
  %v2773 = vunpack.c.l.b16 %v1562
  %v2774 = vunpack.c.l.b16 %v1563
  %v2775 = vunpack.c.l.b16 %v1564
  %v2776 = vunpack.c.l.b16 %v1565
  %v2777 = vunpack.c.l.b16 %v1566
  %v2778 = vpack.c.b16 %v2771, %v2770
  %v2779 = vpack.c.b16 %v2773, %v2772
  %v2780 = vpack.c.b16 %v2775, %v2774
  %v2781 = vpack.c.b16 %v2777, %v2776
  %v2787 = vsel %vm1464, %v2757, 0
  %2789 = vmatprep.subr.bf16.mxu0 0
  %2790 = vmatpush1.bf16.msra.mxu0 %v2778
  %2791 = vmatprep.subr.bf16.mxu0 0
  %2792 = vmatpush1.bf16.msra.mxu0 %v2779
  %2793 = vmatprep.subr.bf16.mxu0 0
  %2794 = vmatpush1.bf16.msra.mxu0 %v2780
  %2795 = vmatprep.subr.bf16.mxu0 0
  %2796 = vmatpush1.bf16.msra.mxu0 %v2781
  %2797 = vmatprep.subr.bf16.mxu0 0
  %2798 = vmatpush1.bf16.msra.mxu0 0
  %2799 = vmatprep.subr.bf16.mxu0 0
  %2800 = vmatpush1.bf16.msra.mxu0 0
  %2801 = vmatprep.subr.bf16.mxu0 0
  %2802 = vmatpush1.bf16.msra.mxu0 0
  %2803 = vmatprep.subr.bf16.mxu0 0
  %2804 = vmatpush1.bf16.msra.mxu0 0
  %2805 = vmatprep.subr.bf16.mxu0 0
  %2806 = vmatpush1.bf16.msra.mxu0 0
  %2807 = vmatprep.subr.bf16.mxu0 0
  %2808 = vmatpush1.bf16.msra.mxu0 0
  %2809 = vmatprep.subr.bf16.mxu0 0
  %2810 = vmatpush1.bf16.msra.mxu0 0
  %2811 = vmatprep.subr.bf16.mxu0 0
  %2812 = vmatpush1.bf16.msra.mxu0 0
  %2813 = vmatprep.subr.bf16.mxu0 0
  %2814 = vmatpush1.bf16.msra.mxu0 0
  %2815 = vmatprep.subr.bf16.mxu0 0
  %2816 = vmatpush1.bf16.msra.mxu0 0
  %2817 = vmatprep.subr.bf16.mxu0 0
  %2818 = vmatpush1.bf16.msra.mxu0 0
  %2819 = vmatprep.subr.bf16.mxu0 0
  %2820 = vmatpush1.bf16.msra.mxu0 0
  %2821 = vmatprep.mubr.bf16.mxu0 0
  %2822 = vmatmul.mubr.bf16.gmra.mrb[0].mxu0 %v2787
  %v2823 = vpop.f32.mrb[0].mxu0
  %v2824 = vadd.f32 %v2761, %v2823
  %v2825 = vpop.f32.mrb[0].mxu0
  %v2826 = vpop.f32.mrb[0].mxu0
  %v2827 = vadd.f32 %v2761, %v2826
  %v2828 = vpop.f32.mrb[0].mxu0
  %2829 = vdwg.mxu0
  %v2830 = vadd.f32 %v2676, %v2824
  %v2831 = vadd.f32 %v2677, %v2827
  %v2832 = vsel %vm152, %v2830, 0.0
  %2833 = vadd.xlane.f32.xlu0 %v2832
  %v2834 = vpop.xlane.xlu0 %2833
  %v2835 = vsel %vm152, %v2831, 0.0
  %2836 = vadd.xlane.f32.xlu0 %v2835
  %v2837 = vpop.xlane.xlu0 %2836
  %v2838 = vmul.f32 %v2834, %v159
  %v2839 = vmul.f32 %v2837, %v159
  %v2840 = vsub.f32 %v2830, %v2838
  %v2841 = vsub.f32 %v2831, %v2839
  %v2842 = vmul.f32 %v2840, %v2840
  %v2843 = vmul.f32 %v2841, %v2841
  %v2844 = vsel %vm152, %v2842, 0.0
  %2845 = vadd.xlane.f32.xlu0 %v2844
  %v2846 = vpop.xlane.xlu0 %2845
  %v2847 = vsel %vm152, %v2843, 0.0
  %2848 = vadd.xlane.f32.xlu0 %v2847
  %v2849 = vpop.xlane.xlu0 %2848
  %v2850 = vmul.f32 %v2846, %v159
  %v2851 = vmul.f32 %v2849, %v159
  %v2852 = vadd.f32 %v2850, 1e-12
  %v2853 = vadd.f32 %v2851, 1e-12
  %v2854 = vrsqrt.pop %v2852
  %v2855 = vrsqrt.pop %v2853
  %v2856 = vmul.f32 %v2840, %v2854
  %v2857 = vmul.f32 %v2841, %v2855
  %v2858 = vlaneseq
  %v2859 = vshrl.u32 %v2858, 7
  %v2860 = vsub.s32 0, %v2859
  %v2861 = vrot.slane %v1574, %v2860
  %v2862 = vmul.f32 %v2856, %v2861
  %v2863 = vmul.f32 %v2857, %v2861
  %v2864 = vlaneseq
  %v2865 = vshrl.u32 %v2864, 7
  %v2866 = vsub.s32 0, %v2865
  %v2867 = vrot.slane %v1575, %v2866
  %v2868 = vadd.f32 %v2862, %v2867
  %v2869 = vadd.f32 %v2863, %v2867
  %s2870 = scalar_lea.vmem %s3, 64
  %v2871 = vld [vmem:[%s2870] sm:$0xf]
  %v2872 = vld [vmem:[%s2870 + $0x8] sm:$0xf]
  %v2873 = vld [vmem:[%s2870 + $0x10] sm:$0xf]
  %v2874 = vld [vmem:[%s2870 + $0x18] sm:$0xf]
  %v2875 = vld [vmem:[%s6 + $0xa] sm:$0x1]
  %v2876 = vld [vmem:[%s6 + $0xb] sm:$0x1]
  %v2877 = vpack.c.bf16 %v2868, %v2868
  %v2878 = vpack.c.bf16 %v2869, %v2869
  %v2879 = vlaneseq
  %v2880 = vshrl.u32 %v2879, 7
  %v2881 = vsub.s32 0, %v2880
  %v2882 = vrot.slane %v2875, %v2881
  %v2885 = vunpack.c.l.b16 %v2877
  %v2886 = vunpack.c.l.b16 %v2878
  %v2887 = vrot.slane %v2886, 7
  %vm2888 = vcmask 1041409
  %v2889 = vsel %vm2888, %v2887, %v2885
  %v2890 = vpack.c.b16 %v2889, %v2889
  %v2895 = vunpack.c.l.b16 %v2871
  %v2896 = vunpack.c.l.b16 %v2872
  %v2897 = vunpack.c.l.b16 %v2873
  %v2898 = vunpack.c.l.b16 %v2874
  %v2899 = vpack.c.b16 %v2896, %v2895
  %v2900 = vpack.c.b16 %v2898, %v2897
  %v2904 = vsel %vm152, %v2890, 0
  %2906 = vmatprep.subr.bf16.mxu0 0
  %2907 = vmatpush1.bf16.msra.mxu0 %v2899
  %2908 = vmatprep.subr.bf16.mxu0 0
  %2909 = vmatpush1.bf16.msra.mxu0 %v2900
  %2910 = vmatprep.subr.bf16.mxu0 0
  %2911 = vmatpush1.bf16.msra.mxu0 0
  %2912 = vmatprep.subr.bf16.mxu0 0
  %2913 = vmatpush1.bf16.msra.mxu0 0
  %2914 = vmatprep.subr.bf16.mxu0 0
  %2915 = vmatpush1.bf16.msra.mxu0 0
  %2916 = vmatprep.subr.bf16.mxu0 0
  %2917 = vmatpush1.bf16.msra.mxu0 0
  %2918 = vmatprep.subr.bf16.mxu0 0
  %2919 = vmatpush1.bf16.msra.mxu0 0
  %2920 = vmatprep.subr.bf16.mxu0 0
  %2921 = vmatpush1.bf16.msra.mxu0 0
  %2922 = vmatprep.subr.bf16.mxu0 0
  %2923 = vmatpush1.bf16.msra.mxu0 0
  %2924 = vmatprep.subr.bf16.mxu0 0
  %2925 = vmatpush1.bf16.msra.mxu0 0
  %2926 = vmatprep.subr.bf16.mxu0 0
  %2927 = vmatpush1.bf16.msra.mxu0 0
  %2928 = vmatprep.subr.bf16.mxu0 0
  %2929 = vmatpush1.bf16.msra.mxu0 0
  %2930 = vmatprep.subr.bf16.mxu0 0
  %2931 = vmatpush1.bf16.msra.mxu0 0
  %2932 = vmatprep.subr.bf16.mxu0 0
  %2933 = vmatpush1.bf16.msra.mxu0 0
  %2934 = vmatprep.subr.bf16.mxu0 0
  %2935 = vmatpush1.bf16.msra.mxu0 0
  %2936 = vmatprep.subr.bf16.mxu0 0
  %2937 = vmatpush1.bf16.msra.mxu0 0
  %2938 = vmatprep.mubr.bf16.mxu0 0
  %2939 = vmatmul.mubr.bf16.gmra.mrb[0].mxu0 %v2904
  %v2940 = vpop.f32.mrb[0].mxu0
  %v2941 = vadd.f32 %v2882, %v2940
  %v2942 = vpop.f32.mrb[0].mxu0
  %v2943 = vpop.f32.mrb[0].mxu0
  %v2944 = vpop.f32.mrb[0].mxu0
  %2945 = vdwg.mxu0
  %v2946 = vtanh.pop %v2941
  %v2947 = vpack.c.bf16 %v2946, %v2946
  %v2948 = vlaneseq
  %v2949 = vshrl.u32 %v2948, 7
  %v2950 = vsub.s32 0, %v2949
  %v2951 = vrot.slane %v2876, %v2950
  %2952 = vrot.lane.b32.xlu0 %v2899, 96
  %v2953 = vpop.permute.xlu0 %2952
  %2954 = vrot.lane.b32.xlu0 %v2900, 96
  %v2955 = vpop.permute.xlu0 %2954
  %v2959 = vsel %vm152, %v2947, 0
  %2961 = vmatprep.subr.bf16.mxu0 0
  %2962 = vmatpush1.bf16.msra.mxu0 %v2953
  %2963 = vmatprep.subr.bf16.mxu0 0
  %2964 = vmatpush1.bf16.msra.mxu0 %v2955
  %2965 = vmatprep.subr.bf16.mxu0 0
  %2966 = vmatpush1.bf16.msra.mxu0 0
  %2967 = vmatprep.subr.bf16.mxu0 0
  %2968 = vmatpush1.bf16.msra.mxu0 0
  %2969 = vmatprep.subr.bf16.mxu0 0
  %2970 = vmatpush1.bf16.msra.mxu0 0
  %2971 = vmatprep.subr.bf16.mxu0 0
  %2972 = vmatpush1.bf16.msra.mxu0 0
  %2973 = vmatprep.subr.bf16.mxu0 0
  %2974 = vmatpush1.bf16.msra.mxu0 0
  %2975 = vmatprep.subr.bf16.mxu0 0
  %2976 = vmatpush1.bf16.msra.mxu0 0
  %2977 = vmatprep.subr.bf16.mxu0 0
  %2978 = vmatpush1.bf16.msra.mxu0 0
  %2979 = vmatprep.subr.bf16.mxu0 0
  %2980 = vmatpush1.bf16.msra.mxu0 0
  %2981 = vmatprep.subr.bf16.mxu0 0
  %2982 = vmatpush1.bf16.msra.mxu0 0
  %2983 = vmatprep.subr.bf16.mxu0 0
  %2984 = vmatpush1.bf16.msra.mxu0 0
  %2985 = vmatprep.subr.bf16.mxu0 0
  %2986 = vmatpush1.bf16.msra.mxu0 0
  %2987 = vmatprep.subr.bf16.mxu0 0
  %2988 = vmatpush1.bf16.msra.mxu0 0
  %2989 = vmatprep.subr.bf16.mxu0 0
  %2990 = vmatpush1.bf16.msra.mxu0 0
  %2991 = vmatprep.subr.bf16.mxu0 0
  %2992 = vmatpush1.bf16.msra.mxu0 0
  %2993 = vmatprep.mubr.bf16.mxu0 0
  %2994 = vmatmul.mubr.bf16.gmra.mrb[0].mxu0 %v2959
  %v2995 = vpop.f32.mrb[0].mxu0
  %v2996 = vadd.f32 %v2951, %v2995
  %v2997 = vpop.f32.mrb[0].mxu0
  %v2998 = vpop.f32.mrb[0].mxu0
  %v2999 = vpop.f32.mrb[0].mxu0
  %3000 = vdwg.mxu0
  %vm3001 = vcmask 1024
  %3002 = vst.msk [vmem:[%s7] sm:$0x3] %vm3001, %v2996
  // Predicated region
  $region30: #{tpu_custom_call.1} parent=0 // pred_check
    _
  $region31: #{tpu_custom_call.1} parent=0 // pred_check_branch
    %3004 = sbr.rel (0) target = $region33
  $region32: #{tpu_custom_call.1} parent=0 // pred_region
    _
  $region33: #{tpu_custom_call.1} parent=0 // pred_fallthru
    _
  // Predicated region
  $region34: #{tpu_custom_call.1} parent=0 // pred_check
    _
  $region35: #{tpu_custom_call.1} parent=0 // pred_check_branch
    %3006 = sbr.rel (0) target = $region37
  $region36: #{tpu_custom_call.1} parent=0 // pred_region
    _
  $region37: #{tpu_custom_call.1} parent=0 // pred_fallthru
    _

</llo_original>
